<compile_context>
chip_gen: v7x
topology: tpu7x:2x2x1
jax: 0.10.0
libtpu: 0.0.40
codegen_flags: <defaults>
</compile_context>

<pallas_src>
import functools
import math

import jax
import jax.numpy as jnp
from jax import lax
from jax.experimental import pallas as pl
from jax.experimental.pallas import tpu as pltpu


def _mhsa_kernel(xq_ref, xkv_ref, wq_ref, bq_ref, wkv_ref, bkv_ref,
                 wp_ref, bp_ref, o_ref, kv_scr, *, num_heads, d_k, d_v):
    # Blocks:
    #   xq_ref : (1, TQ, d_model) bf16   query rows for this grid step
    #   xkv_ref: (1, L,  d_model) bf16   full sequence (keys / values)
    #   wq_ref : (d_model, H*d_k) bf16
    #   wkv_ref: (d_model, H*(d_k+d_v)) bf16   [Wk | Wv] fused
    #   wp_ref : (H*d_v, d_model) bf16
    #   b*_ref : f32 biases, shape (1, fan_out)
    #   o_ref  : (1, TQ, d_model) f32
    #   kv_scr : (L, H*(d_k+d_v)) bf16 VMEM scratch (K/V projections cached
    #            across all query tiles of one batch element)
    qi = pl.program_id(1)

    # K/V projection: compute once per batch element (qi == 0), reuse after.
    @pl.when(qi == 0)
    def _():
        xkv = xkv_ref[0]                              # (L, d_model) bf16
        kv = jnp.dot(xkv, wkv_ref[...],
                     preferred_element_type=jnp.float32) + bkv_ref[...]
        kv_scr[...] = kv.astype(jnp.bfloat16)

    xq = xq_ref[0]                                    # (TQ, d_model) bf16
    q = jnp.dot(xq, wq_ref[...],
                preferred_element_type=jnp.float32) + bq_ref[...]
    q_b = q.astype(jnp.bfloat16)
    kv_b = kv_scr[...]                                # (L, H*(d_k+d_v)) bf16

    scale = 1.0 / math.sqrt(d_k)
    v_off = num_heads * d_k                           # column where V starts

    tq = xq.shape[0]
    d_model = o_ref.shape[-1]
    y = jnp.zeros((tq, d_model), jnp.float32)

    # Static head loop: contraction on last dims (no kh.T transpose), output
    # projection folded in per head and accumulated in f32 (no concatenate).
    for h in range(num_heads):
        qh = q_b[:, h * d_k:(h + 1) * d_k]                    # (TQ, d_k)
        kh = kv_b[:, h * d_k:(h + 1) * d_k]                   # (L,  d_k)
        vh = kv_b[:, v_off + h * d_v:v_off + (h + 1) * d_v]   # (L,  d_v)

        s = lax.dot_general(qh, kh, (((1,), (1,)), ((), ())),
                            preferred_element_type=jnp.float32) * scale
        s = s - jnp.max(s, axis=-1, keepdims=True)            # f32 softmax
        p = jnp.exp(s)
        p = p * pl.reciprocal(jnp.sum(p, axis=-1, keepdims=True), approx=True)

        oh = jnp.dot(p.astype(jnp.bfloat16), vh,
                     preferred_element_type=jnp.float32)       # (TQ, d_v)

        y = y + jnp.dot(oh.astype(jnp.bfloat16),
                        wp_ref[h * d_v:(h + 1) * d_v, :],
                        preferred_element_type=jnp.float32)

    o_ref[0] = (y + bp_ref[...]).astype(o_ref.dtype)


def multi_headed_self_attention(x, params, *, num_heads, d_k, d_v, q_tile=128):
    """x: (B, L, d_model) float32 -> (B, L, d_model) float32."""
    B, L, d_model = x.shape
    wq, bq, wk, bk, wv, bv, wp, bp = params

    # Fuse K and V projections (same LHS inside the kernel); cast all MXU
    # operands to bf16 once on the host; biases stay f32.
    w_kv = jnp.concatenate([wk, wv], axis=1)          # (d_model, H*(d_k+d_v))
    b_kv = jnp.concatenate([bk, bv], axis=1)          # (1, H*(d_k+d_v))
    x_b = x.astype(jnp.bfloat16)
    wq_b = wq.astype(jnp.bfloat16)
    w_kv_b = w_kv.astype(jnp.bfloat16)
    wp_b = wp.astype(jnp.bfloat16)

    tq = min(q_tile, L)
    assert L % tq == 0, "L must be divisible by the query tile"
    n_q = L // tq
    kv_cols = num_heads * (d_k + d_v)

    def full(arr):
        nd = arr.ndim
        return pl.BlockSpec(arr.shape, lambda b, qi: (0,) * nd)

    kernel = functools.partial(_mhsa_kernel,
                               num_heads=num_heads, d_k=d_k, d_v=d_v)

    return pl.pallas_call(
        kernel,
        out_shape=jax.ShapeDtypeStruct((B, L, d_model), jnp.float32),
        grid_spec=pltpu.PrefetchScalarGridSpec(
            num_scalar_prefetch=0,
            grid=(B, n_q),
            in_specs=[
                pl.BlockSpec((1, tq, d_model), lambda b, qi: (b, qi, 0)),  # x (query rows)
                pl.BlockSpec((1, L, d_model), lambda b, qi: (b, 0, 0)),    # x (key/value rows)
                full(wq_b), full(bq),
                full(w_kv_b), full(b_kv),
                full(wp_b), full(bp),
            ],
            out_specs=pl.BlockSpec((1, tq, d_model), lambda b, qi: (b, qi, 0)),
            scratch_shapes=[pltpu.VMEM((L, kv_cols), jnp.bfloat16)],
        ),
        compiler_params=pltpu.CompilerParams(
            # batch axis sharded across cores; query-tile axis sequential so
            # the cached K/V projection in scratch is valid across tiles.
            dimension_semantics=("parallel", "arbitrary"),
        ),
    )(x_b, x_b, wq_b, bq, w_kv_b, b_kv, wp_b, bp)


def _reference(x, params, *, num_heads, d_k, d_v):
    """Pure-JAX f32 reference mirroring the PyTorch forward (dropout = identity)."""
    wq, bq, wk, bk, wv, bv, wp, bp = params
    B, L, d_model = x.shape
    q = (x @ wq + bq).reshape(B, L, num_heads, d_k).transpose(0, 2, 1, 3)
    k = (x @ wk + bk).reshape(B, L, num_heads, d_k).transpose(0, 2, 1, 3)
    v = (x @ wv + bv).reshape(B, L, num_heads, d_v).transpose(0, 2, 1, 3)
    att = jnp.einsum("bhqd,bhkd->bhqk", q, k) / math.sqrt(d_k)
    s = jax.nn.softmax(att, axis=-1)
    o = jnp.einsum("bhqk,bhkd->bhqd", s, v)
    o = o.transpose(0, 2, 1, 3).reshape(B, L, num_heads * d_v)
    return o @ wp + bp


if __name__ == "__main__":
    # Small but TPU-friendly shapes consistent with the module
    # (d_model divisible by num_heads, lane-dense last dim).
    B, L, d_model, num_heads = 2, 128, 128, 4
    d_k = d_model // num_heads
    d_v = d_k

    key = jax.random.PRNGKey(0)
    ks = jax.random.split(key, 9)

    def init_linear(kw, fan_in, fan_out):
        bound = 1.0 / math.sqrt(fan_in)
        w = jax.random.uniform(kw, (fan_in, fan_out), jnp.float32, -bound, bound)
        b = jax.random.uniform(jax.random.fold_in(kw, 1), (1, fan_out),
                               jnp.float32, -bound, bound)
        return w, b

    wq, bq = init_linear(ks[0], d_model, num_heads * d_k)
    wk, bk = init_linear(ks[1], d_model, num_heads * d_k)
    wv, bv = init_linear(ks[2], d_model, num_heads * d_v)
    wp, bp = init_linear(ks[3], num_heads * d_v, d_model)
    params = (wq, bq, wk, bk, wv, bv, wp, bp)

    x = jax.random.normal(ks[4], (B, L, d_model), jnp.float32)

    y = multi_headed_self_attention(x, params,
                                    num_heads=num_heads, d_k=d_k, d_v=d_v)
    y = jax.block_until_ready(y)

    y_ref = _reference(x, params, num_heads=num_heads, d_k=d_k, d_v=d_v)
    assert y.shape == (B, L, d_model)
    # bf16 MXU inputs -> ~1e-2 relative tolerance vs the f32 reference.
    assert jnp.allclose(y, y_ref, atol=2e-2, rtol=2e-2), "mismatch vs reference"

    print("KERNEL_OK")
</pallas_src>

<mosaic_0001>
module attributes {stable_mosaic.version = 11 : i64} {
  func.func @_mhsa_kernel(%arg0: i32, %arg1: i32, %arg2: memref<1x128x128xbf16, #tpu.memory_space<vmem>>, %arg3: memref<1x128x128xbf16, #tpu.memory_space<vmem>>, %arg4: memref<128x128xbf16, #tpu.memory_space<vmem>>, %arg5: memref<1x128xf32, #tpu.memory_space<vmem>>, %arg6: memref<128x256xbf16, #tpu.memory_space<vmem>>, %arg7: memref<1x256xf32, #tpu.memory_space<vmem>>, %arg8: memref<128x128xbf16, #tpu.memory_space<vmem>>, %arg9: memref<1x128xf32, #tpu.memory_space<vmem>>, %arg10: memref<1x128x128xf32, #tpu.memory_space<vmem>>, %arg11: memref<128x256xbf16, #tpu.memory_space<vmem>>) attributes {dimension_semantics = [#tpu.dimension_semantics<parallel>, #tpu.dimension_semantics<arbitrary>], iteration_bounds = array<i64: 2, 1>, scalar_prefetch = 0 : i64, scratch_operands = 1 : i64, tpu.core_type = #tpu.core_type<tc>, window_params = [{transform_indices = @transform_0, window_bounds = array<i64: 1, 128, 128>}, {transform_indices = @transform_1, window_bounds = array<i64: 1, 128, 128>}, {pipeline_mode = #tpu.pipeline_mode<synchronous>, transform_indices = @transform_2, window_bounds = array<i64: 128, 128>}, {pipeline_mode = #tpu.pipeline_mode<synchronous>, transform_indices = @transform_3, window_bounds = array<i64: 1, 128>}, {pipeline_mode = #tpu.pipeline_mode<synchronous>, transform_indices = @transform_4, window_bounds = array<i64: 128, 256>}, {pipeline_mode = #tpu.pipeline_mode<synchronous>, transform_indices = @transform_5, window_bounds = array<i64: 1, 256>}, {pipeline_mode = #tpu.pipeline_mode<synchronous>, transform_indices = @transform_6, window_bounds = array<i64: 128, 128>}, {pipeline_mode = #tpu.pipeline_mode<synchronous>, transform_indices = @transform_7, window_bounds = array<i64: 1, 128>}, {transform_indices = @transform_8, window_bounds = array<i64: 1, 128, 128>}]} {
    %c0_i32 = arith.constant 0 : i32
    %0 = arith.cmpi eq, %arg1, %c0_i32 : i32
    %1 = arith.extui %0 : i1 to i32
    %c0_i32_0 = arith.constant 0 : i32
    %2 = arith.cmpi ne, %1, %c0_i32_0 : i32
    scf.if %2 {
      %c0_44 = arith.constant 0 : index
      %c0_45 = arith.constant 0 : index
      %c0_46 = arith.constant 0 : index
      %107 = vector.load %arg3[%c0_44, %c0_45, %c0_46] : memref<1x128x128xbf16, #tpu.memory_space<vmem>>, vector<1x128x128xbf16>
      %108 = vector.shape_cast %107 : vector<1x128x128xbf16> to vector<128x128xbf16>
      %c0_47 = arith.constant 0 : index
      %c0_48 = arith.constant 0 : index
      %109 = vector.load %arg6[%c0_47, %c0_48] : memref<128x256xbf16, #tpu.memory_space<vmem>>, vector<128x256xbf16>
      %cst_49 = arith.constant dense<0.000000e+00> : vector<128x256xf32>
      %110 = tpu.matmul %108, %109, %cst_49 {dimension_numbers = #tpu.dot_dimension_numbers<[1], [0], [0], [1], [0, 0, 1, 1], [], []>} : vector<128x128xbf16>, vector<128x256xbf16>, vector<128x256xf32> -> vector<128x256xf32>
      %c0_50 = arith.constant 0 : index
      %c0_51 = arith.constant 0 : index
      %111 = vector.load %arg7[%c0_50, %c0_51] : memref<1x256xf32, #tpu.memory_space<vmem>>, vector<1x256xf32>
      %112 = vector.broadcast %111 : vector<1x256xf32> to vector<128x256xf32>
      %113 = arith.addf %110, %112 : vector<128x256xf32>
      %114 = arith.truncf %113 : vector<128x256xf32> to vector<128x256xbf16>
      %c0_52 = arith.constant 0 : index
      %c0_53 = arith.constant 0 : index
      %115 = vector.load %arg11[%c0_52, %c0_53] : memref<128x256xbf16, #tpu.memory_space<vmem>>, vector<128x256xbf16>
      tpu.vector_store %arg11[%c0_52, %c0_53], %114 {strides = array<i32>} : memref<128x256xbf16, #tpu.memory_space<vmem>>, vector<128x256xbf16>,
    } else {
    }
    %c0 = arith.constant 0 : index
    %c0_1 = arith.constant 0 : index
    %c0_2 = arith.constant 0 : index
    %3 = vector.load %arg2[%c0, %c0_1, %c0_2] : memref<1x128x128xbf16, #tpu.memory_space<vmem>>, vector<1x128x128xbf16>
    %4 = vector.shape_cast %3 : vector<1x128x128xbf16> to vector<128x128xbf16>
    %c0_3 = arith.constant 0 : index
    %c0_4 = arith.constant 0 : index
    %5 = vector.load %arg4[%c0_3, %c0_4] : memref<128x128xbf16, #tpu.memory_space<vmem>>, vector<128x128xbf16>
    %cst = arith.constant dense<0.000000e+00> : vector<128x128xf32>
    %6 = tpu.matmul %4, %5, %cst {dimension_numbers = #tpu.dot_dimension_numbers<[1], [0], [0], [1], [0, 0, 1, 1], [], []>} : vector<128x128xbf16>, vector<128x128xbf16>, vector<128x128xf32> -> vector<128x128xf32>
    %c0_5 = arith.constant 0 : index
    %c0_6 = arith.constant 0 : index
    %7 = vector.load %arg5[%c0_5, %c0_6] : memref<1x128xf32, #tpu.memory_space<vmem>>, vector<1x128xf32>
    %8 = vector.broadcast %7 : vector<1x128xf32> to vector<128x128xf32>
    %9 = arith.addf %6, %8 : vector<128x128xf32>
    %10 = arith.truncf %9 : vector<128x128xf32> to vector<128x128xbf16>
    %c0_7 = arith.constant 0 : index
    %c0_8 = arith.constant 0 : index
    %11 = vector.load %arg11[%c0_7, %c0_8] : memref<128x256xbf16, #tpu.memory_space<vmem>>, vector<128x256xbf16>
    %cst_9 = arith.constant 0.000000e+00 : f32
    %12 = vector.broadcast %cst_9 : f32 to vector<128x128xf32>
    %13 = vector.extract_strided_slice %10 {offsets = [0, 0], sizes = [128, 32], strides = [1, 1]} : vector<128x128xbf16> to vector<128x32xbf16>
    %14 = vector.extract_strided_slice %11 {offsets = [0, 0], sizes = [128, 32], strides = [1, 1]} : vector<128x256xbf16> to vector<128x32xbf16>
    %15 = vector.extract_strided_slice %11 {offsets = [0, 128], sizes = [128, 32], strides = [1, 1]} : vector<128x256xbf16> to vector<128x32xbf16>
    %cst_10 = arith.constant dense<0.000000e+00> : vector<128x128xf32>
    %16 = tpu.matmul %13, %14, %cst_10 {dimension_numbers = #tpu.dot_dimension_numbers<[1], [1], [0], [0], [0, 0, 1, 0], [], []>} : vector<128x32xbf16>, vector<128x32xbf16>, vector<128x128xf32> -> vector<128x128xf32>
    %cst_11 = arith.constant 0.176776692 : f32
    %17 = vector.broadcast %cst_11 : f32 to vector<128x128xf32>
    %18 = arith.mulf %16, %17 : vector<128x128xf32>
    %cst_12 = arith.constant dense<0xFF800000> : vector<128xf32>
    %19 = vector.multi_reduction <maximumf>, %18, %cst_12 [1] : vector<128x128xf32> to vector<128xf32>
    %20 = vector.shape_cast %19 : vector<128xf32> to vector<128x1xf32>
    %21 = vector.broadcast %20 : vector<128x1xf32> to vector<128x128xf32>
    %22 = arith.subf %18, %21 : vector<128x128xf32>
    %23 = math.exp %22 : vector<128x128xf32>
    %cst_13 = arith.constant dense<0.000000e+00> : vector<128xf32>
    %24 = vector.multi_reduction <add>, %23, %cst_13 [1] : vector<128x128xf32> to vector<128xf32>
    %25 = vector.shape_cast %24 : vector<128xf32> to vector<128x1xf32>
    %26 = tpu.reciprocal %25 {approx = true} : vector<128x1xf32> -> vector<128x1xf32>
    %27 = vector.broadcast %26 : vector<128x1xf32> to vector<128x128xf32>
    %28 = arith.mulf %23, %27 : vector<128x128xf32>
    %29 = arith.truncf %28 : vector<128x128xf32> to vector<128x128xbf16>
    %cst_14 = arith.constant dense<0.000000e+00> : vector<128x32xf32>
    %30 = tpu.matmul %29, %15, %cst_14 {dimension_numbers = #tpu.dot_dimension_numbers<[1], [0], [0], [1], [0, 0, 1, 1], [], []>} : vector<128x128xbf16>, vector<128x32xbf16>, vector<128x32xf32> -> vector<128x32xf32>
    %31 = arith.truncf %30 : vector<128x32xf32> to vector<128x32xbf16>
    %c0_15 = arith.constant 0 : index
    %c0_16 = arith.constant 0 : index
    %32 = vector.load %arg8[%c0_15, %c0_16] : memref<128x128xbf16, #tpu.memory_space<vmem>>, vector<32x128xbf16>
    %cst_17 = arith.constant dense<0.000000e+00> : vector<128x128xf32>
    %33 = tpu.matmul %31, %32, %cst_17 {dimension_numbers = #tpu.dot_dimension_numbers<[1], [0], [0], [1], [0, 0, 1, 1], [], []>} : vector<128x32xbf16>, vector<32x128xbf16>, vector<128x128xf32> -> vector<128x128xf32>
    %34 = arith.addf %12, %33 : vector<128x128xf32>
    %35 = vector.extract_strided_slice %10 {offsets = [0, 32], sizes = [128, 32], strides = [1, 1]} : vector<128x128xbf16> to vector<128x32xbf16>
    %36 = vector.extract_strided_slice %11 {offsets = [0, 32], sizes = [128, 32], strides = [1, 1]} : vector<128x256xbf16> to vector<128x32xbf16>
    %37 = vector.extract_strided_slice %11 {offsets = [0, 160], sizes = [128, 32], strides = [1, 1]} : vector<128x256xbf16> to vector<128x32xbf16>
    %cst_18 = arith.constant dense<0.000000e+00> : vector<128x128xf32>
    %38 = tpu.matmul %35, %36, %cst_18 {dimension_numbers = #tpu.dot_dimension_numbers<[1], [1], [0], [0], [0, 0, 1, 0], [], []>} : vector<128x32xbf16>, vector<128x32xbf16>, vector<128x128xf32> -> vector<128x128xf32>
    %cst_19 = arith.constant 0.176776692 : f32
    %39 = vector.broadcast %cst_19 : f32 to vector<128x128xf32>
    %40 = arith.mulf %38, %39 : vector<128x128xf32>
    %cst_20 = arith.constant dense<0xFF800000> : vector<128xf32>
    %41 = vector.multi_reduction <maximumf>, %40, %cst_20 [1] : vector<128x128xf32> to vector<128xf32>
    %42 = vector.shape_cast %41 : vector<128xf32> to vector<128x1xf32>
    %43 = vector.broadcast %42 : vector<128x1xf32> to vector<128x128xf32>
    %44 = arith.subf %40, %43 : vector<128x128xf32>
    %45 = math.exp %44 : vector<128x128xf32>
    %cst_21 = arith.constant dense<0.000000e+00> : vector<128xf32>
    %46 = vector.multi_reduction <add>, %45, %cst_21 [1] : vector<128x128xf32> to vector<128xf32>
    %47 = vector.shape_cast %46 : vector<128xf32> to vector<128x1xf32>
    %48 = tpu.reciprocal %47 {approx = true} : vector<128x1xf32> -> vector<128x1xf32>
    %49 = vector.broadcast %48 : vector<128x1xf32> to vector<128x128xf32>
    %50 = arith.mulf %45, %49 : vector<128x128xf32>
    %51 = arith.truncf %50 : vector<128x128xf32> to vector<128x128xbf16>
    %cst_22 = arith.constant dense<0.000000e+00> : vector<128x32xf32>
    %52 = tpu.matmul %51, %37, %cst_22 {dimension_numbers = #tpu.dot_dimension_numbers<[1], [0], [0], [1], [0, 0, 1, 1], [], []>} : vector<128x128xbf16>, vector<128x32xbf16>, vector<128x32xf32> -> vector<128x32xf32>
    %53 = arith.truncf %52 : vector<128x32xf32> to vector<128x32xbf16>
    %c32 = arith.constant 32 : index
    %c0_23 = arith.constant 0 : index
    %54 = vector.load %arg8[%c32, %c0_23] : memref<128x128xbf16, #tpu.memory_space<vmem>>, vector<32x128xbf16>
    %cst_24 = arith.constant dense<0.000000e+00> : vector<128x128xf32>
    %55 = tpu.matmul %53, %54, %cst_24 {dimension_numbers = #tpu.dot_dimension_numbers<[1], [0], [0], [1], [0, 0, 1, 1], [], []>} : vector<128x32xbf16>, vector<32x128xbf16>, vector<128x128xf32> -> vector<128x128xf32>
    %56 = arith.addf %34, %55 : vector<128x128xf32>
    %57 = vector.extract_strided_slice %10 {offsets = [0, 64], sizes = [128, 32], strides = [1, 1]} : vector<128x128xbf16> to vector<128x32xbf16>
    %58 = vector.extract_strided_slice %11 {offsets = [0, 64], sizes = [128, 32], strides = [1, 1]} : vector<128x256xbf16> to vector<128x32xbf16>
    %59 = vector.extract_strided_slice %11 {offsets = [0, 192], sizes = [128, 32], strides = [1, 1]} : vector<128x256xbf16> to vector<128x32xbf16>
    %cst_25 = arith.constant dense<0.000000e+00> : vector<128x128xf32>
    %60 = tpu.matmul %57, %58, %cst_25 {dimension_numbers = #tpu.dot_dimension_numbers<[1], [1], [0], [0], [0, 0, 1, 0], [], []>} : vector<128x32xbf16>, vector<128x32xbf16>, vector<128x128xf32> -> vector<128x128xf32>
    %cst_26 = arith.constant 0.176776692 : f32
    %61 = vector.broadcast %cst_26 : f32 to vector<128x128xf32>
    %62 = arith.mulf %60, %61 : vector<128x128xf32>
    %cst_27 = arith.constant dense<0xFF800000> : vector<128xf32>
    %63 = vector.multi_reduction <maximumf>, %62, %cst_27 [1] : vector<128x128xf32> to vector<128xf32>
    %64 = vector.shape_cast %63 : vector<128xf32> to vector<128x1xf32>
    %65 = vector.broadcast %64 : vector<128x1xf32> to vector<128x128xf32>
    %66 = arith.subf %62, %65 : vector<128x128xf32>
    %67 = math.exp %66 : vector<128x128xf32>
    %cst_28 = arith.constant dense<0.000000e+00> : vector<128xf32>
    %68 = vector.multi_reduction <add>, %67, %cst_28 [1] : vector<128x128xf32> to vector<128xf32>
    %69 = vector.shape_cast %68 : vector<128xf32> to vector<128x1xf32>
    %70 = tpu.reciprocal %69 {approx = true} : vector<128x1xf32> -> vector<128x1xf32>
    %71 = vector.broadcast %70 : vector<128x1xf32> to vector<128x128xf32>
    %72 = arith.mulf %67, %71 : vector<128x128xf32>
    %73 = arith.truncf %72 : vector<128x128xf32> to vector<128x128xbf16>
    %cst_29 = arith.constant dense<0.000000e+00> : vector<128x32xf32>
    %74 = tpu.matmul %73, %59, %cst_29 {dimension_numbers = #tpu.dot_dimension_numbers<[1], [0], [0], [1], [0, 0, 1, 1], [], []>} : vector<128x128xbf16>, vector<128x32xbf16>, vector<128x32xf32> -> vector<128x32xf32>
    %75 = arith.truncf %74 : vector<128x32xf32> to vector<128x32xbf16>
    %c64 = arith.constant 64 : index
    %c0_30 = arith.constant 0 : index
    %76 = vector.load %arg8[%c64, %c0_30] : memref<128x128xbf16, #tpu.memory_space<vmem>>, vector<32x128xbf16>
    %cst_31 = arith.constant dense<0.000000e+00> : vector<128x128xf32>
    %77 = tpu.matmul %75, %76, %cst_31 {dimension_numbers = #tpu.dot_dimension_numbers<[1], [0], [0], [1], [0, 0, 1, 1], [], []>} : vector<128x32xbf16>, vector<32x128xbf16>, vector<128x128xf32> -> vector<128x128xf32>
    %78 = arith.addf %56, %77 : vector<128x128xf32>
    %79 = vector.extract_strided_slice %10 {offsets = [0, 96], sizes = [128, 32], strides = [1, 1]} : vector<128x128xbf16> to vector<128x32xbf16>
    %80 = vector.extract_strided_slice %11 {offsets = [0, 96], sizes = [128, 32], strides = [1, 1]} : vector<128x256xbf16> to vector<128x32xbf16>
    %81 = vector.extract_strided_slice %11 {offsets = [0, 224], sizes = [128, 32], strides = [1, 1]} : vector<128x256xbf16> to vector<128x32xbf16>
    %cst_32 = arith.constant dense<0.000000e+00> : vector<128x128xf32>
    %82 = tpu.matmul %79, %80, %cst_32 {dimension_numbers = #tpu.dot_dimension_numbers<[1], [1], [0], [0], [0, 0, 1, 0], [], []>} : vector<128x32xbf16>, vector<128x32xbf16>, vector<128x128xf32> -> vector<128x128xf32>
    %cst_33 = arith.constant 0.176776692 : f32
    %83 = vector.broadcast %cst_33 : f32 to vector<128x128xf32>
    %84 = arith.mulf %82, %83 : vector<128x128xf32>
    %cst_34 = arith.constant dense<0xFF800000> : vector<128xf32>
    %85 = vector.multi_reduction <maximumf>, %84, %cst_34 [1] : vector<128x128xf32> to vector<128xf32>
    %86 = vector.shape_cast %85 : vector<128xf32> to vector<128x1xf32>
    %87 = vector.broadcast %86 : vector<128x1xf32> to vector<128x128xf32>
    %88 = arith.subf %84, %87 : vector<128x128xf32>
    %89 = math.exp %88 : vector<128x128xf32>
    %cst_35 = arith.constant dense<0.000000e+00> : vector<128xf32>
    %90 = vector.multi_reduction <add>, %89, %cst_35 [1] : vector<128x128xf32> to vector<128xf32>
    %91 = vector.shape_cast %90 : vector<128xf32> to vector<128x1xf32>
    %92 = tpu.reciprocal %91 {approx = true} : vector<128x1xf32> -> vector<128x1xf32>
    %93 = vector.broadcast %92 : vector<128x1xf32> to vector<128x128xf32>
    %94 = arith.mulf %89, %93 : vector<128x128xf32>
    %95 = arith.truncf %94 : vector<128x128xf32> to vector<128x128xbf16>
    %cst_36 = arith.constant dense<0.000000e+00> : vector<128x32xf32>
    %96 = tpu.matmul %95, %81, %cst_36 {dimension_numbers = #tpu.dot_dimension_numbers<[1], [0], [0], [1], [0, 0, 1, 1], [], []>} : vector<128x128xbf16>, vector<128x32xbf16>, vector<128x32xf32> -> vector<128x32xf32>
    %97 = arith.truncf %96 : vector<128x32xf32> to vector<128x32xbf16>
    %c96 = arith.constant 96 : index
    %c0_37 = arith.constant 0 : index
    %98 = vector.load %arg8[%c96, %c0_37] : memref<128x128xbf16, #tpu.memory_space<vmem>>, vector<32x128xbf16>
    %cst_38 = arith.constant dense<0.000000e+00> : vector<128x128xf32>
    %99 = tpu.matmul %97, %98, %cst_38 {dimension_numbers = #tpu.dot_dimension_numbers<[1], [0], [0], [1], [0, 0, 1, 1], [], []>} : vector<128x32xbf16>, vector<32x128xbf16>, vector<128x128xf32> -> vector<128x128xf32>
    %100 = arith.addf %78, %99 : vector<128x128xf32>
    %c0_39 = arith.constant 0 : index
    %c0_40 = arith.constant 0 : index
    %101 = vector.load %arg9[%c0_39, %c0_40] : memref<1x128xf32, #tpu.memory_space<vmem>>, vector<1x128xf32>
    %102 = vector.broadcast %101 : vector<1x128xf32> to vector<128x128xf32>
    %103 = arith.addf %100, %102 : vector<128x128xf32>
    %c0_41 = arith.constant 0 : index
    %c0_42 = arith.constant 0 : index
    %c0_43 = arith.constant 0 : index
    %104 = vector.load %arg10[%c0_41, %c0_42, %c0_43] : memref<1x128x128xf32, #tpu.memory_space<vmem>>, vector<1x128x128xf32>
    %105 = vector.shape_cast %104 : vector<1x128x128xf32> to vector<128x128xf32>
    %106 = vector.shape_cast %103 : vector<128x128xf32> to vector<1x128x128xf32>
    tpu.vector_store %arg10[%c0_41, %c0_42, %c0_43], %106 {strides = array<i32>} : memref<1x128x128xf32, #tpu.memory_space<vmem>>, vector<1x128x128xf32>,
    return
  }
  func.func @transform_0(%arg0: i32, %arg1: i32) -> (i32, i32, i32) {
    %c0_i32 = arith.constant 0 : i32
    %c0_i32_0 = arith.constant 0 : i32
    return %arg0, %arg1, %c0_i32 : i32, i32, i32
  }
  func.func @transform_1(%arg0: i32, %arg1: i32) -> (i32, i32, i32) {
    %c0_i32 = arith.constant 0 : i32
    %c0_i32_0 = arith.constant 0 : i32
    %c0_i32_1 = arith.constant 0 : i32
    return %arg0, %c0_i32, %c0_i32_0 : i32, i32, i32
  }
  func.func @transform_2(%arg0: i32, %arg1: i32) -> (i32, i32) {
    %c0_i32 = arith.constant 0 : i32
    %c0_i32_0 = arith.constant 0 : i32
    %c0_i32_1 = arith.constant 0 : i32
    return %c0_i32, %c0_i32_0 : i32, i32
  }
  func.func @transform_3(%arg0: i32, %arg1: i32) -> (i32, i32) {
    %c0_i32 = arith.constant 0 : i32
    %c0_i32_0 = arith.constant 0 : i32
    %c0_i32_1 = arith.constant 0 : i32
    return %c0_i32, %c0_i32_0 : i32, i32
  }
  func.func @transform_4(%arg0: i32, %arg1: i32) -> (i32, i32) {
    %c0_i32 = arith.constant 0 : i32
    %c0_i32_0 = arith.constant 0 : i32
    %c0_i32_1 = arith.constant 0 : i32
    return %c0_i32, %c0_i32_0 : i32, i32
  }
  func.func @transform_5(%arg0: i32, %arg1: i32) -> (i32, i32) {
    %c0_i32 = arith.constant 0 : i32
    %c0_i32_0 = arith.constant 0 : i32
    %c0_i32_1 = arith.constant 0 : i32
    return %c0_i32, %c0_i32_0 : i32, i32
  }
  func.func @transform_6(%arg0: i32, %arg1: i32) -> (i32, i32) {
    %c0_i32 = arith.constant 0 : i32
    %c0_i32_0 = arith.constant 0 : i32
    %c0_i32_1 = arith.constant 0 : i32
    return %c0_i32, %c0_i32_0 : i32, i32
  }
  func.func @transform_7(%arg0: i32, %arg1: i32) -> (i32, i32) {
    %c0_i32 = arith.constant 0 : i32
    %c0_i32_0 = arith.constant 0 : i32
    %c0_i32_1 = arith.constant 0 : i32
    return %c0_i32, %c0_i32_0 : i32, i32
  }
  func.func @transform_8(%arg0: i32, %arg1: i32) -> (i32, i32, i32) {
    %c0_i32 = arith.constant 0 : i32
    %c0_i32_0 = arith.constant 0 : i32
    return %arg0, %arg1, %c0_i32 : i32, i32, i32
  }
}

</mosaic_0001>

<llo_original>
// kernel: tpu_custom_call.1
$region0: #{tpu_custom_call.1}
  #allocation0 [shape = 'u32[]', space=smem, size = 0x4, offset = 0x4, fixed_abs, tag = 'smem constant byte address 0x4 - core index']
  #allocation1 [shape = 'u32[144,128]{1,0:T(1,128)}', space=vmem, size = 0x12000, scoped, tag = 'internal scratch']
  #allocation2 [shape = 'bf16[128,256]{1,0:T(16,128)(2,1)}', space=vmem, size = 0x10000, scoped, tag = 'scratch operand']
  %s0 = inlined_call_operand.hbm [shape: bf16[2,128,128], index: 0, kind: input, shape index: {}]
  %s1 = inlined_call_operand.hbm [shape: bf16[2,128,128], index: 1, kind: input, shape index: {}]
  %s2 = inlined_call_operand.hbm [shape: bf16[128,128], index: 2, kind: input, shape index: {}]
  %s3 = inlined_call_operand.vmem [shape: f32[1,128], index: 3, kind: input, shape index: {}]
  %s4 = inlined_call_operand.hbm [shape: bf16[128,256], index: 4, kind: input, shape index: {}]
  %s5 = inlined_call_operand.vmem [shape: f32[1,256], index: 5, kind: input, shape index: {}]
  %s6 = inlined_call_operand.hbm [shape: bf16[128,128], index: 6, kind: input, shape index: {}]
  %s7 = inlined_call_operand.vmem [shape: f32[1,128], index: 7, kind: input, shape index: {}]
  %s8 = inlined_call_operand.hbm [shape: f32[2,128,128], index: 8, kind: output, shape index: {}]
  %s9 = sld [smem:[#allocation0]]
  $region89: #{tpu_custom_call.1} parent=0
    _
  %s11 = ssub.s32 1, %s9
  %s12 = scalar_select 0, %s11, %s9
  $region1: #{tpu_custom_call.1} parent=0
    #allocation3 [shape = 'u8[65536]{0}', space=vmem, size = 0x10000, scoped, tag = 'input window, operand 0']
    #allocation4 [shape = 's32[2]{0}', space=sflag, size = 0x8, scoped, tag = 'scoped memory for tpu_custom_call.1']
    #allocation5 [shape = 's32[2]{0}', space=sflag, size = 0x8, scoped, tag = 'scoped memory for tpu_custom_call.1']
    #allocation6 [shape = 'u8[65536]{0}', space=vmem, size = 0x10000, scoped, tag = 'input window, operand 1']
    #allocation7 [shape = 's32[2]{0}', space=sflag, size = 0x8, scoped, tag = 'scoped memory for tpu_custom_call.1']
    #allocation8 [shape = 'u8[32768]{0}', space=vmem, size = 0x8000, scoped, tag = 'input window, operand 2, single buffered']
    #allocation9 [shape = 'u8[65536]{0}', space=vmem, size = 0x10000, scoped, tag = 'input window, operand 4, single buffered']
    #allocation10 [shape = 's32[1]{0}', space=sflag, size = 0x4, scoped, tag = 'scoped memory for tpu_custom_call.1']
    #allocation11 [shape = 'u8[32768]{0}', space=vmem, size = 0x8000, scoped, tag = 'input window, operand 6, single buffered']
    #allocation12 [shape = 'u8[131072]{0}', space=vmem, size = 0x20000, scoped, tag = 'output window, operand 0']
    %13 = vsyncpa [#allocation4], 0
    %s14 = scalar_lea.sflag [#allocation4], 1
    %15 = vsyncpa %s14, 0
    %16 = vsyncpa [#allocation7], 0
    %s17 = scalar_lea.sflag [#allocation7], 1
    %18 = vsyncpa %s17, 0
    %19 = vsyncpa [#allocation10], 0
    %20 = vsyncpa [#allocation5], 0
    %s21 = scalar_lea.sflag [#allocation5], 1
    %22 = vsyncpa %s21, 0
    loop: start=0, step=1, limit=4
    $region2: #{tpu_custom_call.1} parent=1 // loop_pre_header
      _
    $region3: #{tpu_custom_call.1} parent=1 // loop_header
      %s24 = sphi 0, %s28
      %p25 = scmp.ge.s32.totalorder %s24, 4
      %s31 = sphi 0, %s43
      %s32 = sphi 0, %s39
      %s33 = sphi 0, %s31
      %s34 = sphi 0, %s32
      %s35 = sphi 0, %s33
      %s36 = sphi 0, %s34
      %s48 = sphi 0, %s50
      %s51 = sphi 0, %s48
      %s52 = sphi 0, %s51
      %s68 = sphi 0, %s52
      %s74 = sphi 0, %s76
      %s77 = sphi 0, %s74
      %s78 = sphi 0, %s77
      %s94 = sphi 0, %s78
      %s98 = sphi 0, %s98
      %s100 = sphi 0, %s98
      %s101 = sphi 0, %s100
      %s115 = sphi 0, %s101
      %s119 = sphi 0, %s119
      %s121 = sphi 0, %s119
      %s122 = sphi 0, %s121
      %s136 = sphi 0, %s122
      %s140 = sphi 0, %s140
      %s142 = sphi 0, %s140
      %s143 = sphi 0, %s142
      %s157 = sphi 0, %s143
      %s161 = sphi 0, %s161
      %s163 = sphi 0, %s161
      %s164 = sphi 0, %s163
      %s178 = sphi 0, %s164
      %s182 = sphi 0, %s182
      %s184 = sphi 0, %s182
      %s185 = sphi 0, %s184
      %s199 = sphi 0, %s185
      %s203 = sphi 0, %s203
      %s205 = sphi 0, %s203
      %s206 = sphi 0, %s205
      %s220 = sphi 0, %s206
      %s228 = sphi 0, %s230
      %s231 = sphi 0, %s228
      %s232 = sphi 0, %s231
      %s248 = sphi 0, %s232
    $region4: #{tpu_custom_call.1} parent=1 // loop_header_branch
      %27 = sbr.rel (%p25) target = $region8
    $region5: #{tpu_custom_call.1} parent=1 // loop_body
      %s29 = ssub.s32 %s24, 1
      %s30 = ssub.s32 %s24, 2
      %s37 = sadd.s32 1, %s32
      %p38 = scmp.ge.s32.totalorder %s37, 1
      %s39 = scalar_select %p38, 0, %s37
      %s40 = sadd.s32 1, %s31
      %s41 = scalar_select %p38, %s40, %s31
      %p42 = scmp.ge.s32.totalorder %s41, 2
      %s43 = scalar_select %p42, 0, %s41
      %s44 = ssub.s32 %s31, %s43
      %s45 = ssub.s32 %s32, %s39
      %s46 = sor.u32 %s44, %s45
      %p47 = scmp.eq.s32.totalorder %s46, 0
      %s49 = sadd.s32 %s48, 1
      %s50 = scalar_select %p47, %s48, %s49
      %p53 = pneg %p47
      %p54 = scmp.eq.s32.totalorder %s24, 1
      %p55 = por %p53, %p54
      %p56 = scmp.ne.s32.totalorder %s48, %s51
      %p57 = scmp.eq.s32.totalorder %s24, 0
      %p58 = por %p56, %p57
      %p59 = scmp.ne.s32.totalorder %s48, %s51
      %p60 = scmp.eq.s32.totalorder %s29, 1
      %p61 = por %p59, %p60
      %p62 = scmp.ne.s32.totalorder %s51, %s52
      %p63 = scmp.eq.s32.totalorder %s29, 0
      %p64 = por %p62, %p63
      %p65 = scmp.ne.s32.totalorder %s51, %s52
      %p66 = scmp.eq.s32.totalorder %s30, 1
      %p67 = por %p65, %p66
      %p69 = scmp.ne.s32.totalorder %s52, %s68
      %p70 = scmp.eq.s32.totalorder %s30, 0
      %p71 = por %p69, %p70
      %s72 = ssub.s32 %s31, %s43
      %p73 = scmp.eq.s32.totalorder %s72, 0
      %s75 = sadd.s32 %s74, 1
      %s76 = scalar_select %p73, %s74, %s75
      %p79 = pneg %p73
      %p80 = scmp.eq.s32.totalorder %s24, 1
      %p81 = por %p79, %p80
      %p82 = scmp.ne.s32.totalorder %s74, %s77
      %p83 = scmp.eq.s32.totalorder %s24, 0
      %p84 = por %p82, %p83
      %p85 = scmp.ne.s32.totalorder %s74, %s77
      %p86 = scmp.eq.s32.totalorder %s29, 1
      %p87 = por %p85, %p86
      %p88 = scmp.ne.s32.totalorder %s77, %s78
      %p89 = scmp.eq.s32.totalorder %s29, 0
      %p90 = por %p88, %p89
      %p91 = scmp.ne.s32.totalorder %s77, %s78
      %p92 = scmp.eq.s32.totalorder %s30, 1
      %p93 = por %p91, %p92
      %p95 = scmp.ne.s32.totalorder %s78, %s94
      %p96 = scmp.eq.s32.totalorder %s30, 0
      %p97 = por %p95, %p96
      %s99 = sadd.s32 %s98, 1
      %p102 = scmp.eq.s32.totalorder %s24, 1
      %p103 = scmp.ne.s32.totalorder %s98, %s100
      %p104 = scmp.eq.s32.totalorder %s24, 0
      %p105 = por %p103, %p104
      %p106 = scmp.ne.s32.totalorder %s98, %s100
      %p107 = scmp.eq.s32.totalorder %s29, 1
      %p108 = por %p106, %p107
      %p109 = scmp.ne.s32.totalorder %s100, %s101
      %p110 = scmp.eq.s32.totalorder %s29, 0
      %p111 = por %p109, %p110
      %p112 = scmp.ne.s32.totalorder %s100, %s101
      %p113 = scmp.eq.s32.totalorder %s30, 1
      %p114 = por %p112, %p113
      %p116 = scmp.ne.s32.totalorder %s101, %s115
      %p117 = scmp.eq.s32.totalorder %s30, 0
      %p118 = por %p116, %p117
      %s120 = sadd.s32 %s119, 1
      %p123 = scmp.eq.s32.totalorder %s24, 1
      %p124 = scmp.ne.s32.totalorder %s119, %s121
      %p125 = scmp.eq.s32.totalorder %s24, 0
      %p126 = por %p124, %p125
      %p127 = scmp.ne.s32.totalorder %s119, %s121
      %p128 = scmp.eq.s32.totalorder %s29, 1
      %p129 = por %p127, %p128
      %p130 = scmp.ne.s32.totalorder %s121, %s122
      %p131 = scmp.eq.s32.totalorder %s29, 0
      %p132 = por %p130, %p131
      %p133 = scmp.ne.s32.totalorder %s121, %s122
      %p134 = scmp.eq.s32.totalorder %s30, 1
      %p135 = por %p133, %p134
      %p137 = scmp.ne.s32.totalorder %s122, %s136
      %p138 = scmp.eq.s32.totalorder %s30, 0
      %p139 = por %p137, %p138
      %s141 = sadd.s32 %s140, 1
      %p144 = scmp.eq.s32.totalorder %s24, 1
      %p145 = scmp.ne.s32.totalorder %s140, %s142
      %p146 = scmp.eq.s32.totalorder %s24, 0
      %p147 = por %p145, %p146
      %p148 = scmp.ne.s32.totalorder %s140, %s142
      %p149 = scmp.eq.s32.totalorder %s29, 1
      %p150 = por %p148, %p149
      %p151 = scmp.ne.s32.totalorder %s142, %s143
      %p152 = scmp.eq.s32.totalorder %s29, 0
      %p153 = por %p151, %p152
      %p154 = scmp.ne.s32.totalorder %s142, %s143
      %p155 = scmp.eq.s32.totalorder %s30, 1
      %p156 = por %p154, %p155
      %p158 = scmp.ne.s32.totalorder %s143, %s157
      %p159 = scmp.eq.s32.totalorder %s30, 0
      %p160 = por %p158, %p159
      %s162 = sadd.s32 %s161, 1
      %p165 = scmp.eq.s32.totalorder %s24, 1
      %p166 = scmp.ne.s32.totalorder %s161, %s163
      %p167 = scmp.eq.s32.totalorder %s24, 0
      %p168 = por %p166, %p167
      %p169 = scmp.ne.s32.totalorder %s161, %s163
      %p170 = scmp.eq.s32.totalorder %s29, 1
      %p171 = por %p169, %p170
      %p172 = scmp.ne.s32.totalorder %s163, %s164
      %p173 = scmp.eq.s32.totalorder %s29, 0
      %p174 = por %p172, %p173
      %p175 = scmp.ne.s32.totalorder %s163, %s164
      %p176 = scmp.eq.s32.totalorder %s30, 1
      %p177 = por %p175, %p176
      %p179 = scmp.ne.s32.totalorder %s164, %s178
      %p180 = scmp.eq.s32.totalorder %s30, 0
      %p181 = por %p179, %p180
      %s183 = sadd.s32 %s182, 1
      %p186 = scmp.eq.s32.totalorder %s24, 1
      %p187 = scmp.ne.s32.totalorder %s182, %s184
      %p188 = scmp.eq.s32.totalorder %s24, 0
      %p189 = por %p187, %p188
      %p190 = scmp.ne.s32.totalorder %s182, %s184
      %p191 = scmp.eq.s32.totalorder %s29, 1
      %p192 = por %p190, %p191
      %p193 = scmp.ne.s32.totalorder %s184, %s185
      %p194 = scmp.eq.s32.totalorder %s29, 0
      %p195 = por %p193, %p194
      %p196 = scmp.ne.s32.totalorder %s184, %s185
      %p197 = scmp.eq.s32.totalorder %s30, 1
      %p198 = por %p196, %p197
      %p200 = scmp.ne.s32.totalorder %s185, %s199
      %p201 = scmp.eq.s32.totalorder %s30, 0
      %p202 = por %p200, %p201
      %s204 = sadd.s32 %s203, 1
      %p207 = scmp.eq.s32.totalorder %s24, 1
      %p208 = scmp.ne.s32.totalorder %s203, %s205
      %p209 = scmp.eq.s32.totalorder %s24, 0
      %p210 = por %p208, %p209
      %p211 = scmp.ne.s32.totalorder %s203, %s205
      %p212 = scmp.eq.s32.totalorder %s29, 1
      %p213 = por %p211, %p212
      %p214 = scmp.ne.s32.totalorder %s205, %s206
      %p215 = scmp.eq.s32.totalorder %s29, 0
      %p216 = por %p214, %p215
      %p217 = scmp.ne.s32.totalorder %s205, %s206
      %p218 = scmp.eq.s32.totalorder %s30, 1
      %p219 = por %p217, %p218
      %p221 = scmp.ne.s32.totalorder %s206, %s220
      %p222 = scmp.eq.s32.totalorder %s30, 0
      %p223 = por %p221, %p222
      %s224 = ssub.s32 %s31, %s43
      %s225 = ssub.s32 %s32, %s39
      %s226 = sor.u32 %s224, %s225
      %p227 = scmp.eq.s32.totalorder %s226, 0
      %s229 = sadd.s32 %s228, 1
      %s230 = scalar_select %p227, %s228, %s229
      %p233 = pneg %p227
      %p234 = scmp.eq.s32.totalorder %s24, 1
      %p235 = por %p233, %p234
      %p236 = scmp.ne.s32.totalorder %s228, %s231
      %p237 = scmp.eq.s32.totalorder %s24, 0
      %p238 = por %p236, %p237
      %p239 = scmp.ne.s32.totalorder %s228, %s231
      %p240 = scmp.eq.s32.totalorder %s29, 1
      %p241 = por %p239, %p240
      %p242 = scmp.ne.s32.totalorder %s231, %s232
      %p243 = scmp.eq.s32.totalorder %s29, 0
      %p244 = por %p242, %p243
      %p245 = scmp.ne.s32.totalorder %s231, %s232
      %p246 = scmp.eq.s32.totalorder %s30, 1
      %p247 = por %p245, %p246
      %p249 = scmp.ne.s32.totalorder %s232, %s248
      %p250 = scmp.eq.s32.totalorder %s30, 0
      %p251 = por %p249, %p250
      %p252 = scmp.le.s32.totalorder 1, %s24
      %p253 = scmp.lt.s32.totalorder %s24, 3
      %p254 = pnand %p252, %p253
      %p255 = pneg %p254
      // Predicated region
      $region9: #{tpu_custom_call.1} parent=5 // pred_check
        _
      $region10: #{tpu_custom_call.1} parent=5 // pred_check_branch
        %257 = sbr.rel (%p254) target = $region12
      $region11: #{tpu_custom_call.1} parent=5 // pred_region
        %s258 = ssub.s32 %s24, 1
        // Predicated region
        $region13: #{tpu_custom_call.1} parent=11 // pred_check
          %p259 = pneg %p111
        $region14: #{tpu_custom_call.1} parent=11 // pred_check_branch
          %261 = sbr.rel (%p259) target = $region16
        $region15: #{tpu_custom_call.1} parent=11 // pred_region
          %s263 = ssub.s32 1024, 1024
          %264 = vsyncadd [#allocation7], %s263
          %s265 = sshll.u32 [#allocation8], 4
          %s266 = int_to_ptr.vmem [resolvable:$true] %s265
          %271 = dma.hbm_to_vmem [thread:$0]  %s2, 1024, %s266, [#allocation7], 64, 64, 4
        $region16: #{tpu_custom_call.1} parent=11 // pred_fallthru
          _
        // Predicated region
        $region17: #{tpu_custom_call.1} parent=11 // pred_check
          %p272 = pneg %p132
        $region18: #{tpu_custom_call.1} parent=11 // pred_check_branch
          %274 = sbr.rel (%p272) target = $region20
        $region19: #{tpu_custom_call.1} parent=11 // pred_region
          _
        $region20: #{tpu_custom_call.1} parent=11 // pred_fallthru
          _
        // Predicated region
        $region21: #{tpu_custom_call.1} parent=11 // pred_check
          %p275 = pneg %p153
        $region22: #{tpu_custom_call.1} parent=11 // pred_check_branch
          %277 = sbr.rel (%p275) target = $region24
        $region23: #{tpu_custom_call.1} parent=11 // pred_region
          %s279 = ssub.s32 2048, 2048
          %280 = vsyncadd [#allocation10], %s279
          %s281 = sshll.u32 [#allocation9], 4
          %s282 = int_to_ptr.vmem [resolvable:$true] %s281
          %287 = dma.hbm_to_vmem [thread:$0]  %s4, 2048, %s282, [#allocation10], 128, 128, 8
        $region24: #{tpu_custom_call.1} parent=11 // pred_fallthru
          _
        // Predicated region
        $region25: #{tpu_custom_call.1} parent=11 // pred_check
          %p288 = pneg %p174
        $region26: #{tpu_custom_call.1} parent=11 // pred_check_branch
          %290 = sbr.rel (%p288) target = $region28
        $region27: #{tpu_custom_call.1} parent=11 // pred_region
          _
        $region28: #{tpu_custom_call.1} parent=11 // pred_fallthru
          _
        // Predicated region
        $region29: #{tpu_custom_call.1} parent=11 // pred_check
          %p291 = pneg %p195
        $region30: #{tpu_custom_call.1} parent=11 // pred_check_branch
          %293 = sbr.rel (%p291) target = $region32
        $region31: #{tpu_custom_call.1} parent=11 // pred_region
          %s295 = ssub.s32 1024, 1024
          %296 = vsyncadd [#allocation10], %s295
          %s297 = sshll.u32 [#allocation11], 4
          %s298 = int_to_ptr.vmem [resolvable:$true] %s297
          %303 = dma.hbm_to_vmem [thread:$0]  %s6, 1024, %s298, [#allocation10], 64, 64, 4
        $region32: #{tpu_custom_call.1} parent=11 // pred_fallthru
          _
        // Predicated region
        $region33: #{tpu_custom_call.1} parent=11 // pred_check
          %p304 = pneg %p216
        $region34: #{tpu_custom_call.1} parent=11 // pred_check_branch
          %306 = sbr.rel (%p304) target = $region36
        $region35: #{tpu_custom_call.1} parent=11 // pred_region
          _
        $region36: #{tpu_custom_call.1} parent=11 // pred_fallthru
          _
      $region12: #{tpu_custom_call.1} parent=5 // pred_fallthru
        _
      %p307 = scmp.lt.s32.totalorder %s24, 2
      // Predicated region
      $region37: #{tpu_custom_call.1} parent=5 // pred_check
        %p308 = pneg %p307
      $region38: #{tpu_custom_call.1} parent=5 // pred_check_branch
        %310 = sbr.rel (%p308) target = $region40
      $region39: #{tpu_custom_call.1} parent=5 // pred_region
        // Predicated region
        $region41: #{tpu_custom_call.1} parent=39 // pred_check
          %p311 = pneg %p58
        $region42: #{tpu_custom_call.1} parent=39 // pred_check_branch
          %313 = sbr.rel (%p311) target = $region44
        $region43: #{tpu_custom_call.1} parent=39 // pred_region
          %s314 = sand.u32 %s48, 1
          %s315 = scalar_lea.sflag [#allocation4], %s314
          %s316 = sand.u32 %s48, 1
          %s317 = smul.addr %s316, 64
          %s318 = scalar_lea.vmem [#allocation3], %s317
          %s319 = smul.u32 16, %s32
          %s321 = ssub.s32 1024, 1024
          %322 = vsyncadd %s315, %s321
          %s323 = smul.addr %s31, 16
          %s324 = sadd.s32 %s319, %s323
          %s325 = smul.addr %s324, 64
          %s326 = scalar_lea.hbm %s0, %s325
          %s327 = sshll.u32 %s318, 4
          %s328 = int_to_ptr.vmem [resolvable:$true] %s327
          %333 = dma.hbm_to_vmem [thread:$0]  %s326, 1024, %s328, %s315, 64, 64, 4
        $region44: #{tpu_custom_call.1} parent=39 // pred_fallthru
          _
        // Predicated region
        $region45: #{tpu_custom_call.1} parent=39 // pred_check
          %p334 = pneg %p84
        $region46: #{tpu_custom_call.1} parent=39 // pred_check_branch
          %336 = sbr.rel (%p334) target = $region48
        $region47: #{tpu_custom_call.1} parent=39 // pred_region
          %s337 = sand.u32 %s24, 1
          %s338 = scalar_lea.sflag [#allocation7], %s337
          %s339 = sand.u32 %s74, 1
          %s340 = smul.addr %s339, 64
          %s341 = scalar_lea.vmem [#allocation6], %s340
          %s343 = ssub.s32 1024, 1024
          %344 = vsyncadd %s338, %s343
          %s345 = smul.addr %s31, 16
          %s346 = smul.addr %s345, 64
          %s347 = scalar_lea.hbm %s1, %s346
          %s348 = sshll.u32 %s341, 4
          %s349 = int_to_ptr.vmem [resolvable:$true] %s348
          %354 = dma.hbm_to_vmem [thread:$0]  %s347, 1024, %s349, %s338, 64, 64, 4
        $region48: #{tpu_custom_call.1} parent=39 // pred_fallthru
          _
      $region40: #{tpu_custom_call.1} parent=5 // pred_fallthru
        _
      %p355 = scmp.le.s32.totalorder 1, %s24
      %p356 = scmp.lt.s32.totalorder %s24, 3
      %p357 = pnand %p355, %p356
      %p358 = pneg %p357
      // Predicated region
      $region49: #{tpu_custom_call.1} parent=5 // pred_check
        _
      $region50: #{tpu_custom_call.1} parent=5 // pred_check_branch
        %360 = sbr.rel (%p357) target = $region52
      $region51: #{tpu_custom_call.1} parent=5 // pred_region
        %s361 = ssub.s32 %s24, 1
        %s362 = sand.u32 %s51, 1
        %s363 = scalar_lea.sflag [#allocation4], %s362
        %s364 = sand.u32 %s51, 1
        %s365 = smul.addr %s364, 64
        %s366 = scalar_lea.vmem [#allocation3], %s365
        // Predicated region
        $region53: #{tpu_custom_call.1} parent=51 // pred_check
          %p367 = pneg %p64
        $region54: #{tpu_custom_call.1} parent=51 // pred_check_branch
          %369 = sbr.rel (%p367) target = $region56
        $region55: #{tpu_custom_call.1} parent=51 // pred_region
          %370 = dma.done %s363, 1024
        $region56: #{tpu_custom_call.1} parent=51 // pred_fallthru
          _
        %s371 = sand.u32 %s29, 1
        %s372 = scalar_lea.sflag [#allocation7], %s371
        %s373 = sand.u32 %s77, 1
        %s374 = smul.addr %s373, 64
        %s375 = scalar_lea.vmem [#allocation6], %s374
        // Predicated region
        $region57: #{tpu_custom_call.1} parent=51 // pred_check
          %p376 = pneg %p90
        $region58: #{tpu_custom_call.1} parent=51 // pred_check_branch
          %378 = sbr.rel (%p376) target = $region60
        $region59: #{tpu_custom_call.1} parent=51 // pred_region
          %379 = dma.done %s372, 1024
        $region60: #{tpu_custom_call.1} parent=51 // pred_fallthru
          _
        // Predicated region
        $region61: #{tpu_custom_call.1} parent=51 // pred_check
          %p380 = pneg %p111
        $region62: #{tpu_custom_call.1} parent=51 // pred_check_branch
          %382 = sbr.rel (%p380) target = $region64
        $region63: #{tpu_custom_call.1} parent=51 // pred_region
          %383 = dma.done [#allocation7], 1024
        $region64: #{tpu_custom_call.1} parent=51 // pred_fallthru
          _
        // Predicated region
        $region65: #{tpu_custom_call.1} parent=51 // pred_check
          %p384 = pneg %p153
        $region66: #{tpu_custom_call.1} parent=51 // pred_check_branch
          %386 = sbr.rel (%p384) target = $region68
        $region67: #{tpu_custom_call.1} parent=51 // pred_region
          %387 = dma.done [#allocation10], 2048
        $region68: #{tpu_custom_call.1} parent=51 // pred_fallthru
          _
        // Predicated region
        $region69: #{tpu_custom_call.1} parent=51 // pred_check
          %p388 = pneg %p195
        $region70: #{tpu_custom_call.1} parent=51 // pred_check_branch
          %390 = sbr.rel (%p388) target = $region72
        $region71: #{tpu_custom_call.1} parent=51 // pred_region
          %391 = dma.done [#allocation10], 1024
        $region72: #{tpu_custom_call.1} parent=51 // pred_fallthru
          _
        %s392 = sand.u32 %s51, 1
        %s393 = scalar_lea.sflag [#allocation4], %s392
        %s394 = sand.u32 %s51, 1
        %s395 = smul.addr %s394, 64
        %s396 = scalar_lea.vmem [#allocation3], %s395
        %p397 = pneg %p64
        %p398 = pneg %p61
        %s399 = sand.u32 %s29, 1
        %s400 = scalar_lea.sflag [#allocation7], %s399
        %s401 = sand.u32 %s77, 1
        %s402 = smul.addr %s401, 64
        %s403 = scalar_lea.vmem [#allocation6], %s402
        %p404 = pneg %p90
        %p405 = pneg %p87
        %p406 = pneg %p111
        %p407 = pneg %p108
        %p408 = pneg %p132
        %p409 = pneg %p129
        %p410 = pneg %p153
        %p411 = pneg %p150
        %p412 = pneg %p174
        %p413 = pneg %p171
        %p414 = pneg %p195
        %p415 = pneg %p192
        %p416 = pneg %p216
        %p417 = pneg %p213
        %p418 = pneg %p244
        %p419 = pneg %p241
        %s420 = sand.u32 %s231, 1
        %s421 = scalar_lea.sflag [#allocation5], %s420
        %s422 = sand.u32 %s231, 1
        %s423 = smul.addr %s422, 128
        %s424 = scalar_lea.vmem [#allocation12], %s423
        %s425 = smul.u32 16, %s34
        %s426 = smul.u32 16, %s34
        %p428 = scmp.eq.s32.totalorder %s34, 0
        // Predicated region
        $region73: #{tpu_custom_call.1} parent=51 // pred_check
          %p429 = pneg %p428
        $region74: #{tpu_custom_call.1} parent=51 // pred_check_branch
          %431 = sbr.rel (%p429) target = $region76
        $region75: #{tpu_custom_call.1} parent=51 // pred_region
          %v432 = vld [vmem:[%s375] sm:$0xf]
          %v433 = vld [vmem:[%s375 + $0x4] sm:$0xf]
          %v434 = vld [vmem:[%s375 + $0x8] sm:$0xf]
          %v435 = vld [vmem:[%s375 + $0xc] sm:$0xf]
          %v436 = vld [vmem:[%s375 + $0x10] sm:$0xf]
          %v437 = vld [vmem:[%s375 + $0x14] sm:$0xf]
          %v438 = vld [vmem:[%s375 + $0x18] sm:$0xf]
          %v439 = vld [vmem:[%s375 + $0x1c] sm:$0xf]
          %v440 = vld [vmem:[%s375 + $0x20] sm:$0xf]
          %v441 = vld [vmem:[%s375 + $0x24] sm:$0xf]
          %v442 = vld [vmem:[%s375 + $0x28] sm:$0xf]
          %v443 = vld [vmem:[%s375 + $0x2c] sm:$0xf]
          %v444 = vld [vmem:[%s375 + $0x30] sm:$0xf]
          %v445 = vld [vmem:[%s375 + $0x34] sm:$0xf]
          %v446 = vld [vmem:[%s375 + $0x38] sm:$0xf]
          %v447 = vld [vmem:[%s375 + $0x3c] sm:$0xf]
          %v448 = vld [vmem:[#allocation9] sm:$0xff]
          %v449 = vld [vmem:[#allocation9 + $0x8] sm:$0xff]
          %v450 = vld [vmem:[#allocation9 + $0x10] sm:$0xff]
          %v451 = vld [vmem:[#allocation9 + $0x18] sm:$0xff]
          %v452 = vld [vmem:[#allocation9 + $0x20] sm:$0xff]
          %v453 = vld [vmem:[#allocation9 + $0x28] sm:$0xff]
          %v454 = vld [vmem:[#allocation9 + $0x30] sm:$0xff]
          %v455 = vld [vmem:[#allocation9 + $0x38] sm:$0xff]
          %v456 = vld [vmem:[#allocation9 + $0x40] sm:$0xff]
          %v457 = vld [vmem:[#allocation9 + $0x48] sm:$0xff]
          %v458 = vld [vmem:[#allocation9 + $0x50] sm:$0xff]
          %v459 = vld [vmem:[#allocation9 + $0x58] sm:$0xff]
          %v460 = vld [vmem:[#allocation9 + $0x60] sm:$0xff]
          %v461 = vld [vmem:[#allocation9 + $0x68] sm:$0xff]
          %v462 = vld [vmem:[#allocation9 + $0x70] sm:$0xff]
          %v463 = vld [vmem:[#allocation9 + $0x78] sm:$0xff]
          %v464 = vld [vmem:[%s5] sm:$0x3]
          %v466 = vlaneseq
          %v467 = vshrl.u32 %v466, 7
          %v468 = vsub.s32 0, %v467
          %v469 = vrot.slane %v464, %v468
          %v470 = vlaneseq
          %v471 = vshrl.u32 %v470, 7
          %v472 = vsub.s32 1, %v471
          %v473 = vrot.slane %v464, %v472
          %v492 = vunpack.c.l.b16 %v432
          %v493 = vunpack.c.l.b16 %v433
          %v494 = vunpack.c.l.b16 %v434
          %v495 = vunpack.c.l.b16 %v435
          %v496 = vunpack.c.l.b16 %v436
          %v497 = vunpack.c.l.b16 %v437
          %v498 = vunpack.c.l.b16 %v438
          %v499 = vunpack.c.l.b16 %v439
          %v500 = vunpack.c.l.b16 %v440
          %v501 = vunpack.c.l.b16 %v441
          %v502 = vunpack.c.l.b16 %v442
          %v503 = vunpack.c.l.b16 %v443
          %v504 = vunpack.c.l.b16 %v444
          %v505 = vunpack.c.l.b16 %v445
          %v506 = vunpack.c.l.b16 %v446
          %v507 = vunpack.c.l.b16 %v447
          %v508 = vpack.c.b16 %v493, %v492
          %v509 = vpack.c.b16 %v495, %v494
          %v510 = vpack.c.b16 %v497, %v496
          %v511 = vpack.c.b16 %v499, %v498
          %v512 = vpack.c.b16 %v501, %v500
          %v513 = vpack.c.b16 %v503, %v502
          %v514 = vpack.c.b16 %v505, %v504
          %v515 = vpack.c.b16 %v507, %v506
          %v540 = vunpack.c.l.b16 %v448
          %v541 = vunpack.c.h.b16 %v448
          %v542 = vunpack.c.l.b16 %v449
          %v543 = vunpack.c.h.b16 %v449
          %v544 = vunpack.c.l.b16 %v450
          %v545 = vunpack.c.h.b16 %v450
          %v546 = vunpack.c.l.b16 %v451
          %v547 = vunpack.c.h.b16 %v451
          %v548 = vunpack.c.l.b16 %v452
          %v549 = vunpack.c.h.b16 %v452
          %v550 = vunpack.c.l.b16 %v453
          %v551 = vunpack.c.h.b16 %v453
          %v552 = vunpack.c.l.b16 %v454
          %v553 = vunpack.c.h.b16 %v454
          %v554 = vunpack.c.l.b16 %v455
          %v555 = vunpack.c.h.b16 %v455
          %v556 = vunpack.c.l.b16 %v456
          %v557 = vunpack.c.h.b16 %v456
          %v558 = vunpack.c.l.b16 %v457
          %v559 = vunpack.c.h.b16 %v457
          %v560 = vunpack.c.l.b16 %v458
          %v561 = vunpack.c.h.b16 %v458
          %v562 = vunpack.c.l.b16 %v459
          %v563 = vunpack.c.h.b16 %v459
          %v564 = vunpack.c.l.b16 %v460
          %v565 = vunpack.c.h.b16 %v460
          %v566 = vunpack.c.l.b16 %v461
          %v567 = vunpack.c.h.b16 %v461
          %v568 = vunpack.c.l.b16 %v462
          %v569 = vunpack.c.h.b16 %v462
          %v570 = vunpack.c.l.b16 %v463
          %v571 = vunpack.c.h.b16 %v463
          %v572 = vpack.c.b16 %v542, %v540
          %v573 = vpack.c.b16 %v543, %v541
          %v574 = vpack.c.b16 %v546, %v544
          %v575 = vpack.c.b16 %v547, %v545
          %v576 = vpack.c.b16 %v550, %v548
          %v577 = vpack.c.b16 %v551, %v549
          %v578 = vpack.c.b16 %v554, %v552
          %v579 = vpack.c.b16 %v555, %v553
          %v580 = vpack.c.b16 %v558, %v556
          %v581 = vpack.c.b16 %v559, %v557
          %v582 = vpack.c.b16 %v562, %v560
          %v583 = vpack.c.b16 %v563, %v561
          %v584 = vpack.c.b16 %v566, %v564
          %v585 = vpack.c.b16 %v567, %v565
          %v586 = vpack.c.b16 %v570, %v568
          %v587 = vpack.c.b16 %v571, %v569
          %604 = vmatprep.subr.bf16.mxu0 %v573
          %605 = vmatpush1.bf16.msra.mxu0 %v572
          %606 = vmatprep.subr.bf16.mxu0 %v575
          %607 = vmatpush1.bf16.msra.mxu0 %v574
          %608 = vmatprep.subr.bf16.mxu0 %v577
          %609 = vmatpush1.bf16.msra.mxu0 %v576
          %610 = vmatprep.subr.bf16.mxu0 %v579
          %611 = vmatpush1.bf16.msra.mxu0 %v578
          %612 = vmatprep.subr.bf16.mxu0 %v581
          %613 = vmatpush1.bf16.msra.mxu0 %v580
          %614 = vmatprep.subr.bf16.mxu0 %v583
          %615 = vmatpush1.bf16.msra.mxu0 %v582
          %616 = vmatprep.subr.bf16.mxu0 %v585
          %617 = vmatpush1.bf16.msra.mxu0 %v584
          %618 = vmatprep.subr.bf16.mxu0 %v587
          %619 = vmatpush1.bf16.msra.mxu0 %v586
          %620 = vmatprep.subr.bf16.mxu0 0
          %621 = vmatpush1.bf16.msra.mxu0 0
          %622 = vmatprep.subr.bf16.mxu0 0
          %623 = vmatpush1.bf16.msra.mxu0 0
          %624 = vmatprep.subr.bf16.mxu0 0
          %625 = vmatpush1.bf16.msra.mxu0 0
          %626 = vmatprep.subr.bf16.mxu0 0
          %627 = vmatpush1.bf16.msra.mxu0 0
          %628 = vmatprep.subr.bf16.mxu0 0
          %629 = vmatpush1.bf16.msra.mxu0 0
          %630 = vmatprep.subr.bf16.mxu0 0
          %631 = vmatpush1.bf16.msra.mxu0 0
          %632 = vmatprep.subr.bf16.mxu0 0
          %633 = vmatpush1.bf16.msra.mxu0 0
          %634 = vmatprep.subr.bf16.mxu0 0
          %635 = vmatpush1.bf16.msra.mxu0 0
          %636 = vmatprep.mubr.bf16.mxu0 0
          %637 = vmatmul.mubr.bf16.gmra.mrb[0].mxu0 %v508
          %v638 = vpop.f32.mrb[0].mxu0
          %v639 = vadd.f32 %v469, %v638
          %v640 = vpop.f32.mrb[0].mxu0
          %v641 = vadd.f32 %v473, %v640
          %v642 = vpop.f32.mrb[0].mxu0
          %v643 = vadd.f32 %v469, %v642
          %v644 = vpop.f32.mrb[0].mxu0
          %v645 = vadd.f32 %v473, %v644
          %646 = vmatprep.mubr.bf16.mxu0 0
          %647 = vmatmul.mubr.bf16.gmra.mrb[0].mxu0 %v509
          %v648 = vpop.f32.mrb[0].mxu0
          %v649 = vadd.f32 %v469, %v648
          %v650 = vpop.f32.mrb[0].mxu0
          %v651 = vadd.f32 %v473, %v650
          %v652 = vpop.f32.mrb[0].mxu0
          %v653 = vadd.f32 %v469, %v652
          %v654 = vpop.f32.mrb[0].mxu0
          %v655 = vadd.f32 %v473, %v654
          %656 = vmatprep.mubr.bf16.mxu0 0
          %657 = vmatmul.mubr.bf16.gmra.mrb[0].mxu0 %v510
          %v658 = vpop.f32.mrb[0].mxu0
          %v659 = vadd.f32 %v469, %v658
          %v660 = vpop.f32.mrb[0].mxu0
          %v661 = vadd.f32 %v473, %v660
          %v662 = vpop.f32.mrb[0].mxu0
          %v663 = vadd.f32 %v469, %v662
          %v664 = vpop.f32.mrb[0].mxu0
          %v665 = vadd.f32 %v473, %v664
          %666 = vmatprep.mubr.bf16.mxu0 0
          %667 = vmatmul.mubr.bf16.gmra.mrb[0].mxu0 %v511
          %v668 = vpop.f32.mrb[0].mxu0
          %v669 = vadd.f32 %v469, %v668
          %v670 = vpop.f32.mrb[0].mxu0
          %v671 = vadd.f32 %v473, %v670
          %v672 = vpop.f32.mrb[0].mxu0
          %v673 = vadd.f32 %v469, %v672
          %v674 = vpop.f32.mrb[0].mxu0
          %v675 = vadd.f32 %v473, %v674
          %676 = vmatprep.mubr.bf16.mxu0 0
          %677 = vmatmul.mubr.bf16.gmra.mrb[0].mxu0 %v512
          %v678 = vpop.f32.mrb[0].mxu0
          %v679 = vadd.f32 %v469, %v678
          %v680 = vpop.f32.mrb[0].mxu0
          %v681 = vadd.f32 %v473, %v680
          %v682 = vpop.f32.mrb[0].mxu0
          %v683 = vadd.f32 %v469, %v682
          %v684 = vpop.f32.mrb[0].mxu0
          %v685 = vadd.f32 %v473, %v684
          %686 = vmatprep.mubr.bf16.mxu0 0
          %687 = vmatmul.mubr.bf16.gmra.mrb[0].mxu0 %v513
          %v688 = vpop.f32.mrb[0].mxu0
          %v689 = vadd.f32 %v469, %v688
          %v690 = vpop.f32.mrb[0].mxu0
          %v691 = vadd.f32 %v473, %v690
          %v692 = vpop.f32.mrb[0].mxu0
          %v693 = vadd.f32 %v469, %v692
          %v694 = vpop.f32.mrb[0].mxu0
          %v695 = vadd.f32 %v473, %v694
          %696 = vmatprep.mubr.bf16.mxu0 0
          %697 = vmatmul.mubr.bf16.gmra.mrb[0].mxu0 %v514
          %v698 = vpop.f32.mrb[0].mxu0
          %v699 = vadd.f32 %v469, %v698
          %v700 = vpop.f32.mrb[0].mxu0
          %v701 = vadd.f32 %v473, %v700
          %v702 = vpop.f32.mrb[0].mxu0
          %v703 = vadd.f32 %v469, %v702
          %v704 = vpop.f32.mrb[0].mxu0
          %v705 = vadd.f32 %v473, %v704
          %706 = vmatprep.mubr.bf16.mxu0 0
          %707 = vmatmul.mubr.bf16.gmra.mrb[0].mxu0 %v515
          %v708 = vpop.f32.mrb[0].mxu0
          %v709 = vadd.f32 %v469, %v708
          %v710 = vpop.f32.mrb[0].mxu0
          %v711 = vadd.f32 %v473, %v710
          %v712 = vpop.f32.mrb[0].mxu0
          %v713 = vadd.f32 %v469, %v712
          %v714 = vpop.f32.mrb[0].mxu0
          %v715 = vadd.f32 %v473, %v714
          %716 = vdwg.mxu0
          %v717 = vpack.c.bf16 %v643, %v639
          %v718 = vpack.c.bf16 %v645, %v641
          %v719 = vpack.c.bf16 %v653, %v649
          %v720 = vpack.c.bf16 %v655, %v651
          %v721 = vpack.c.bf16 %v663, %v659
          %v722 = vpack.c.bf16 %v665, %v661
          %v723 = vpack.c.bf16 %v673, %v669
          %v724 = vpack.c.bf16 %v675, %v671
          %v725 = vpack.c.bf16 %v683, %v679
          %v726 = vpack.c.bf16 %v685, %v681
          %v727 = vpack.c.bf16 %v693, %v689
          %v728 = vpack.c.bf16 %v695, %v691
          %v729 = vpack.c.bf16 %v703, %v699
          %v730 = vpack.c.bf16 %v705, %v701
          %v731 = vpack.c.bf16 %v713, %v709
          %v732 = vpack.c.bf16 %v715, %v711
          %733 = vst [vmem:[#allocation2] sm:$0xff] %v717
          %734 = vst [vmem:[#allocation2 + $0x8] sm:$0xff] %v718
          %735 = vst [vmem:[#allocation2 + $0x10] sm:$0xff] %v719
          %736 = vst [vmem:[#allocation2 + $0x18] sm:$0xff] %v720
          %737 = vst [vmem:[#allocation2 + $0x20] sm:$0xff] %v721
          %738 = vst [vmem:[#allocation2 + $0x28] sm:$0xff] %v722
          %739 = vst [vmem:[#allocation2 + $0x30] sm:$0xff] %v723
          %740 = vst [vmem:[#allocation2 + $0x38] sm:$0xff] %v724
          %741 = vst [vmem:[#allocation2 + $0x40] sm:$0xff] %v725
          %742 = vst [vmem:[#allocation2 + $0x48] sm:$0xff] %v726
          %743 = vst [vmem:[#allocation2 + $0x50] sm:$0xff] %v727
          %744 = vst [vmem:[#allocation2 + $0x58] sm:$0xff] %v728
          %745 = vst [vmem:[#allocation2 + $0x60] sm:$0xff] %v729
          %746 = vst [vmem:[#allocation2 + $0x68] sm:$0xff] %v730
          %747 = vst [vmem:[#allocation2 + $0x70] sm:$0xff] %v731
          %748 = vst [vmem:[#allocation2 + $0x78] sm:$0xff] %v732
        $region76: #{tpu_custom_call.1} parent=51 // pred_fallthru
          _
        %v749 = vld [vmem:[%s366] sm:$0xf]
        %v750 = vld [vmem:[%s366 + $0x4] sm:$0xf]
        %v751 = vld [vmem:[%s366 + $0x8] sm:$0xf]
        %v752 = vld [vmem:[%s366 + $0xc] sm:$0xf]
        %v753 = vld [vmem:[%s366 + $0x10] sm:$0xf]
        %v754 = vld [vmem:[%s366 + $0x14] sm:$0xf]
        %v755 = vld [vmem:[%s366 + $0x18] sm:$0xf]
        %v756 = vld [vmem:[%s366 + $0x1c] sm:$0xf]
        %v757 = vld [vmem:[%s366 + $0x20] sm:$0xf]
        %v758 = vld [vmem:[%s366 + $0x24] sm:$0xf]
        %v759 = vld [vmem:[%s366 + $0x28] sm:$0xf]
        %v760 = vld [vmem:[%s366 + $0x2c] sm:$0xf]
        %v761 = vld [vmem:[%s366 + $0x30] sm:$0xf]
        %v762 = vld [vmem:[%s366 + $0x34] sm:$0xf]
        %v763 = vld [vmem:[%s366 + $0x38] sm:$0xf]
        %v764 = vld [vmem:[%s366 + $0x3c] sm:$0xf]
        %v765 = vld [vmem:[#allocation8] sm:$0xf]
        %v766 = vld [vmem:[#allocation8 + $0x4] sm:$0xf]
        %v767 = vld [vmem:[#allocation8 + $0x8] sm:$0xf]
        %v768 = vld [vmem:[#allocation8 + $0xc] sm:$0xf]
        %v769 = vld [vmem:[#allocation8 + $0x10] sm:$0xf]
        %v770 = vld [vmem:[#allocation8 + $0x14] sm:$0xf]
        %v771 = vld [vmem:[#allocation8 + $0x18] sm:$0xf]
        %v772 = vld [vmem:[#allocation8 + $0x1c] sm:$0xf]
        %v773 = vld [vmem:[#allocation8 + $0x20] sm:$0xf]
        %v774 = vld [vmem:[#allocation8 + $0x24] sm:$0xf]
        %v775 = vld [vmem:[#allocation8 + $0x28] sm:$0xf]
        %v776 = vld [vmem:[#allocation8 + $0x2c] sm:$0xf]
        %v777 = vld [vmem:[#allocation8 + $0x30] sm:$0xf]
        %v778 = vld [vmem:[#allocation8 + $0x34] sm:$0xf]
        %v779 = vld [vmem:[#allocation8 + $0x38] sm:$0xf]
        %v780 = vld [vmem:[#allocation8 + $0x3c] sm:$0xf]
        %v781 = vld [vmem:[%s3] sm:$0x1]
        %v783 = vlaneseq
        %v784 = vshrl.u32 %v783, 7
        %v785 = vsub.s32 0, %v784
        %v786 = vrot.slane %v781, %v785
        %v804 = vunpack.c.l.b16 %v749
        %v805 = vunpack.c.l.b16 %v750
        %v806 = vunpack.c.l.b16 %v751
        %v807 = vunpack.c.l.b16 %v752
        %v808 = vunpack.c.l.b16 %v753
        %v809 = vunpack.c.l.b16 %v754
        %v810 = vunpack.c.l.b16 %v755
        %v811 = vunpack.c.l.b16 %v756
        %v812 = vunpack.c.l.b16 %v757
        %v813 = vunpack.c.l.b16 %v758
        %v814 = vunpack.c.l.b16 %v759
        %v815 = vunpack.c.l.b16 %v760
        %v816 = vunpack.c.l.b16 %v761
        %v817 = vunpack.c.l.b16 %v762
        %v818 = vunpack.c.l.b16 %v763
        %v819 = vunpack.c.l.b16 %v764
        %v820 = vpack.c.b16 %v805, %v804
        %v821 = vpack.c.b16 %v807, %v806
        %v822 = vpack.c.b16 %v809, %v808
        %v823 = vpack.c.b16 %v811, %v810
        %v824 = vpack.c.b16 %v813, %v812
        %v825 = vpack.c.b16 %v815, %v814
        %v826 = vpack.c.b16 %v817, %v816
        %v827 = vpack.c.b16 %v819, %v818
        %v852 = vunpack.c.l.b16 %v765
        %v853 = vunpack.c.l.b16 %v766
        %v854 = vunpack.c.l.b16 %v767
        %v855 = vunpack.c.l.b16 %v768
        %v856 = vunpack.c.l.b16 %v769
        %v857 = vunpack.c.l.b16 %v770
        %v858 = vunpack.c.l.b16 %v771
        %v859 = vunpack.c.l.b16 %v772
        %v860 = vunpack.c.l.b16 %v773
        %v861 = vunpack.c.l.b16 %v774
        %v862 = vunpack.c.l.b16 %v775
        %v863 = vunpack.c.l.b16 %v776
        %v864 = vunpack.c.l.b16 %v777
        %v865 = vunpack.c.l.b16 %v778
        %v866 = vunpack.c.l.b16 %v779
        %v867 = vunpack.c.l.b16 %v780
        %v868 = vpack.c.b16 %v853, %v852
        %v869 = vpack.c.b16 %v855, %v854
        %v870 = vpack.c.b16 %v857, %v856
        %v871 = vpack.c.b16 %v859, %v858
        %v872 = vpack.c.b16 %v861, %v860
        %v873 = vpack.c.b16 %v863, %v862
        %v874 = vpack.c.b16 %v865, %v864
        %v875 = vpack.c.b16 %v867, %v866
        %884 = vmatprep.subr.bf16.mxu0 0
        %885 = vmatpush1.bf16.msra.mxu0 %v868
        %886 = vmatprep.subr.bf16.mxu0 0
        %887 = vmatpush1.bf16.msra.mxu0 %v869
        %888 = vmatprep.subr.bf16.mxu0 0
        %889 = vmatpush1.bf16.msra.mxu0 %v870
        %890 = vmatprep.subr.bf16.mxu0 0
        %891 = vmatpush1.bf16.msra.mxu0 %v871
        %892 = vmatprep.subr.bf16.mxu0 0
        %893 = vmatpush1.bf16.msra.mxu0 %v872
        %894 = vmatprep.subr.bf16.mxu0 0
        %895 = vmatpush1.bf16.msra.mxu0 %v873
        %896 = vmatprep.subr.bf16.mxu0 0
        %897 = vmatpush1.bf16.msra.mxu0 %v874
        %898 = vmatprep.subr.bf16.mxu0 0
        %899 = vmatpush1.bf16.msra.mxu0 %v875
        %900 = vmatprep.subr.bf16.mxu0 0
        %901 = vmatpush1.bf16.msra.mxu0 0
        %902 = vmatprep.subr.bf16.mxu0 0
        %903 = vmatpush1.bf16.msra.mxu0 0
        %904 = vmatprep.subr.bf16.mxu0 0
        %905 = vmatpush1.bf16.msra.mxu0 0
        %906 = vmatprep.subr.bf16.mxu0 0
        %907 = vmatpush1.bf16.msra.mxu0 0
        %908 = vmatprep.subr.bf16.mxu0 0
        %909 = vmatpush1.bf16.msra.mxu0 0
        %910 = vmatprep.subr.bf16.mxu0 0
        %911 = vmatpush1.bf16.msra.mxu0 0
        %912 = vmatprep.subr.bf16.mxu0 0
        %913 = vmatpush1.bf16.msra.mxu0 0
        %914 = vmatprep.subr.bf16.mxu0 0
        %915 = vmatpush1.bf16.msra.mxu0 0
        %916 = vmatprep.mubr.bf16.mxu0 0
        %917 = vmatmul.mubr.bf16.gmra.mrb[0].mxu0 %v820
        %v918 = vpop.f32.mrb[0].mxu0
        %v919 = vadd.f32 %v786, %v918
        %v920 = vpop.f32.mrb[0].mxu0
        %v921 = vpop.f32.mrb[0].mxu0
        %v922 = vadd.f32 %v786, %v921
        %v923 = vpop.f32.mrb[0].mxu0
        %924 = vmatprep.mubr.bf16.mxu0 0
        %925 = vmatmul.mubr.bf16.gmra.mrb[0].mxu0 %v821
        %v926 = vpop.f32.mrb[0].mxu0
        %v927 = vadd.f32 %v786, %v926
        %v928 = vpop.f32.mrb[0].mxu0
        %v929 = vpop.f32.mrb[0].mxu0
        %v930 = vadd.f32 %v786, %v929
        %v931 = vpop.f32.mrb[0].mxu0
        %932 = vmatprep.mubr.bf16.mxu0 0
        %933 = vmatmul.mubr.bf16.gmra.mrb[0].mxu0 %v822
        %v934 = vpop.f32.mrb[0].mxu0
        %v935 = vadd.f32 %v786, %v934
        %v936 = vpop.f32.mrb[0].mxu0
        %v937 = vpop.f32.mrb[0].mxu0
        %v938 = vadd.f32 %v786, %v937
        %v939 = vpop.f32.mrb[0].mxu0
        %940 = vmatprep.mubr.bf16.mxu0 0
        %941 = vmatmul.mubr.bf16.gmra.mrb[0].mxu0 %v823
        %v942 = vpop.f32.mrb[0].mxu0
        %v943 = vadd.f32 %v786, %v942
        %v944 = vpop.f32.mrb[0].mxu0
        %v945 = vpop.f32.mrb[0].mxu0
        %v946 = vadd.f32 %v786, %v945
        %v947 = vpop.f32.mrb[0].mxu0
        %948 = vmatprep.mubr.bf16.mxu0 0
        %949 = vmatmul.mubr.bf16.gmra.mrb[0].mxu0 %v824
        %v950 = vpop.f32.mrb[0].mxu0
        %v951 = vadd.f32 %v786, %v950
        %v952 = vpop.f32.mrb[0].mxu0
        %v953 = vpop.f32.mrb[0].mxu0
        %v954 = vadd.f32 %v786, %v953
        %v955 = vpop.f32.mrb[0].mxu0
        %956 = vmatprep.mubr.bf16.mxu0 0
        %957 = vmatmul.mubr.bf16.gmra.mrb[0].mxu0 %v825
        %v958 = vpop.f32.mrb[0].mxu0
        %v959 = vadd.f32 %v786, %v958
        %v960 = vpop.f32.mrb[0].mxu0
        %v961 = vpop.f32.mrb[0].mxu0
        %v962 = vadd.f32 %v786, %v961
        %v963 = vpop.f32.mrb[0].mxu0
        %964 = vmatprep.mubr.bf16.mxu0 0
        %965 = vmatmul.mubr.bf16.gmra.mrb[0].mxu0 %v826
        %v966 = vpop.f32.mrb[0].mxu0
        %v967 = vadd.f32 %v786, %v966
        %v968 = vpop.f32.mrb[0].mxu0
        %v969 = vpop.f32.mrb[0].mxu0
        %v970 = vadd.f32 %v786, %v969
        %v971 = vpop.f32.mrb[0].mxu0
        %972 = vmatprep.mubr.bf16.mxu0 0
        %973 = vmatmul.mubr.bf16.gmra.mrb[0].mxu0 %v827
        %v974 = vpop.f32.mrb[0].mxu0
        %v975 = vadd.f32 %v786, %v974
        %v976 = vpop.f32.mrb[0].mxu0
        %v977 = vpop.f32.mrb[0].mxu0
        %v978 = vadd.f32 %v786, %v977
        %v979 = vpop.f32.mrb[0].mxu0
        %980 = vdwg.mxu0
        %v981 = vpack.c.bf16 %v922, %v919
        %v982 = vpack.c.bf16 %v930, %v927
        %v983 = vpack.c.bf16 %v938, %v935
        %v984 = vpack.c.bf16 %v946, %v943
        %v985 = vpack.c.bf16 %v954, %v951
        %v986 = vpack.c.bf16 %v962, %v959
        %v987 = vpack.c.bf16 %v970, %v967
        %v988 = vpack.c.bf16 %v978, %v975
        %v989 = vld [vmem:[#allocation2] sm:$0xff]
        %v990 = vld [vmem:[#allocation2 + $0x8] sm:$0xff]
        %v991 = vld [vmem:[#allocation2 + $0x10] sm:$0xff]
        %v992 = vld [vmem:[#allocation2 + $0x18] sm:$0xff]
        %v993 = vld [vmem:[#allocation2 + $0x20] sm:$0xff]
        %v994 = vld [vmem:[#allocation2 + $0x28] sm:$0xff]
        %v995 = vld [vmem:[#allocation2 + $0x30] sm:$0xff]
        %v996 = vld [vmem:[#allocation2 + $0x38] sm:$0xff]
        %v997 = vld [vmem:[#allocation2 + $0x40] sm:$0xff]
        %v998 = vld [vmem:[#allocation2 + $0x48] sm:$0xff]
        %v999 = vld [vmem:[#allocation2 + $0x50] sm:$0xff]
        %v1000 = vld [vmem:[#allocation2 + $0x58] sm:$0xff]
        %v1001 = vld [vmem:[#allocation2 + $0x60] sm:$0xff]
        %v1002 = vld [vmem:[#allocation2 + $0x68] sm:$0xff]
        %v1003 = vld [vmem:[#allocation2 + $0x70] sm:$0xff]
        %v1004 = vld [vmem:[#allocation2 + $0x78] sm:$0xff]
        %vm1005 = vcmask 261120
        %v1007 = vsel %vm1005, %v981, 0
        %v1010 = vsel %vm1005, %v982, 0
        %v1013 = vsel %vm1005, %v983, 0
        %v1016 = vsel %vm1005, %v984, 0
        %v1019 = vsel %vm1005, %v985, 0
        %v1022 = vsel %vm1005, %v986, 0
        %v1025 = vsel %vm1005, %v987, 0
        %v1028 = vsel %vm1005, %v988, 0
        %v1031 = vsel %vm1005, %v989, 0
        %v1034 = vsel %vm1005, %v991, 0
        %v1037 = vsel %vm1005, %v993, 0
        %v1040 = vsel %vm1005, %v995, 0
        %v1043 = vsel %vm1005, %v997, 0
        %v1046 = vsel %vm1005, %v999, 0
        %v1049 = vsel %vm1005, %v1001, 0
        %v1052 = vsel %vm1005, %v1003, 0
        %1054 = vmatprep.subr.bf16.mxu0 0
        %1055 = vmatpush1.bf16.xpose.msra.mxu0 %v1031
        %1056 = vmatprep.subr.bf16.mxu0 0
        %1057 = vmatpush1.bf16.xpose.msra.mxu0 %v1034
        %1058 = vmatprep.subr.bf16.mxu0 0
        %1059 = vmatpush1.bf16.xpose.msra.mxu0 %v1037
        %1060 = vmatprep.subr.bf16.mxu0 0
        %1061 = vmatpush1.bf16.xpose.msra.mxu0 %v1040
        %1062 = vmatprep.subr.bf16.mxu0 0
        %1063 = vmatpush1.bf16.xpose.msra.mxu0 %v1043
        %1064 = vmatprep.subr.bf16.mxu0 0
        %1065 = vmatpush1.bf16.xpose.msra.mxu0 %v1046
        %1066 = vmatprep.subr.bf16.mxu0 0
        %1067 = vmatpush1.bf16.xpose.msra.mxu0 %v1049
        %1068 = vmatprep.subr.bf16.mxu0 0
        %1069 = vmatpush1.bf16.xpose.msra.mxu0 %v1052
        %1070 = vmatprep.subr.bf16.mxu0 0
        %1071 = vmatpush1.bf16.xpose.msra.mxu0 0
        %1072 = vmatprep.subr.bf16.mxu0 0
        %1073 = vmatpush1.bf16.xpose.msra.mxu0 0
        %1074 = vmatprep.subr.bf16.mxu0 0
        %1075 = vmatpush1.bf16.xpose.msra.mxu0 0
        %1076 = vmatprep.subr.bf16.mxu0 0
        %1077 = vmatpush1.bf16.xpose.msra.mxu0 0
        %1078 = vmatprep.subr.bf16.mxu0 0
        %1079 = vmatpush1.bf16.xpose.msra.mxu0 0
        %1080 = vmatprep.subr.bf16.mxu0 0
        %1081 = vmatpush1.bf16.xpose.msra.mxu0 0
        %1082 = vmatprep.subr.bf16.mxu0 0
        %1083 = vmatpush1.bf16.xpose.msra.mxu0 0
        %1084 = vmatprep.subr.bf16.mxu0 0
        %1085 = vmatpush1.bf16.xpose.msra.mxu0 0
        %1086 = vmatprep.mubr.bf16.mxu0 0
        %1087 = vmatmul.mubr.bf16.gmra.mrb[0].mxu0 %v1007
        %v1088 = vpop.f32.mrb[0].mxu0
        %v1089 = vadd.f32 0.0, %v1088
        %v1090 = vpop.f32.mrb[0].mxu0
        %v1091 = vpop.f32.mrb[0].mxu0
        %v1092 = vadd.f32 0.0, %v1091
        %v1093 = vpop.f32.mrb[0].mxu0
        %1094 = vmatprep.mubr.bf16.mxu0 0
        %1095 = vmatmul.mubr.bf16.gmra.mrb[0].mxu0 %v1010
        %v1096 = vpop.f32.mrb[0].mxu0
        %v1097 = vadd.f32 0.0, %v1096
        %v1098 = vpop.f32.mrb[0].mxu0
        %v1099 = vpop.f32.mrb[0].mxu0
        %v1100 = vadd.f32 0.0, %v1099
        %v1101 = vpop.f32.mrb[0].mxu0
        %1102 = vmatprep.mubr.bf16.mxu0 0
        %1103 = vmatmul.mubr.bf16.gmra.mrb[0].mxu0 %v1013
        %v1104 = vpop.f32.mrb[0].mxu0
        %v1105 = vadd.f32 0.0, %v1104
        %v1106 = vpop.f32.mrb[0].mxu0
        %v1107 = vpop.f32.mrb[0].mxu0
        %v1108 = vadd.f32 0.0, %v1107
        %v1109 = vpop.f32.mrb[0].mxu0
        %1110 = vmatprep.mubr.bf16.mxu0 0
        %1111 = vmatmul.mubr.bf16.gmra.mrb[0].mxu0 %v1016
        %v1112 = vpop.f32.mrb[0].mxu0
        %v1113 = vadd.f32 0.0, %v1112
        %v1114 = vpop.f32.mrb[0].mxu0
        %v1115 = vpop.f32.mrb[0].mxu0
        %v1116 = vadd.f32 0.0, %v1115
        %v1117 = vpop.f32.mrb[0].mxu0
        %1118 = vmatprep.mubr.bf16.mxu0 0
        %1119 = vmatmul.mubr.bf16.gmra.mrb[0].mxu0 %v1019
        %v1120 = vpop.f32.mrb[0].mxu0
        %v1121 = vadd.f32 0.0, %v1120
        %v1122 = vpop.f32.mrb[0].mxu0
        %v1123 = vpop.f32.mrb[0].mxu0
        %v1124 = vadd.f32 0.0, %v1123
        %v1125 = vpop.f32.mrb[0].mxu0
        %1126 = vmatprep.mubr.bf16.mxu0 0
        %1127 = vmatmul.mubr.bf16.gmra.mrb[0].mxu0 %v1022
        %v1128 = vpop.f32.mrb[0].mxu0
        %v1129 = vadd.f32 0.0, %v1128
        %v1130 = vpop.f32.mrb[0].mxu0
        %v1131 = vpop.f32.mrb[0].mxu0
        %v1132 = vadd.f32 0.0, %v1131
        %v1133 = vpop.f32.mrb[0].mxu0
        %1134 = vmatprep.mubr.bf16.mxu0 0
        %1135 = vmatmul.mubr.bf16.gmra.mrb[0].mxu0 %v1025
        %v1136 = vpop.f32.mrb[0].mxu0
        %v1137 = vadd.f32 0.0, %v1136
        %v1138 = vpop.f32.mrb[0].mxu0
        %v1139 = vpop.f32.mrb[0].mxu0
        %v1140 = vadd.f32 0.0, %v1139
        %v1141 = vpop.f32.mrb[0].mxu0
        %1142 = vmatprep.mubr.bf16.mxu0 0
        %1143 = vmatmul.mubr.bf16.gmra.mrb[0].mxu0 %v1028
        %v1144 = vpop.f32.mrb[0].mxu0
        %v1145 = vadd.f32 0.0, %v1144
        %v1146 = vpop.f32.mrb[0].mxu0
        %v1147 = vpop.f32.mrb[0].mxu0
        %v1148 = vadd.f32 0.0, %v1147
        %v1149 = vpop.f32.mrb[0].mxu0
        %1150 = vdwg.mxu0
        %v1151 = vmul.f32 %v1089, 0.17677669
        %v1152 = vmul.f32 %v1092, 0.17677669
        %v1153 = vmul.f32 %v1097, 0.17677669
        %v1154 = vmul.f32 %v1100, 0.17677669
        %v1155 = vmul.f32 %v1105, 0.17677669
        %v1156 = vmul.f32 %v1108, 0.17677669
        %v1157 = vmul.f32 %v1113, 0.17677669
        %v1158 = vmul.f32 %v1116, 0.17677669
        %v1159 = vmul.f32 %v1121, 0.17677669
        %v1160 = vmul.f32 %v1124, 0.17677669
        %v1161 = vmul.f32 %v1129, 0.17677669
        %v1162 = vmul.f32 %v1132, 0.17677669
        %v1163 = vmul.f32 %v1137, 0.17677669
        %v1164 = vmul.f32 %v1140, 0.17677669
        %v1165 = vmul.f32 %v1145, 0.17677669
        %v1166 = vmul.f32 %v1148, 0.17677669
        %1167 = vmax.xlane.f32.xlu0 %v1151
        %v1168 = vpop.xlane.xlu0 %1167
        %1169 = vmax.xlane.f32.xlu0 %v1152
        %v1170 = vpop.xlane.xlu0 %1169
        %1171 = vmax.xlane.f32.xlu0 %v1153
        %v1172 = vpop.xlane.xlu0 %1171
        %1173 = vmax.xlane.f32.xlu0 %v1154
        %v1174 = vpop.xlane.xlu0 %1173
        %1175 = vmax.xlane.f32.xlu0 %v1155
        %v1176 = vpop.xlane.xlu0 %1175
        %1177 = vmax.xlane.f32.xlu0 %v1156
        %v1178 = vpop.xlane.xlu0 %1177
        %1179 = vmax.xlane.f32.xlu0 %v1157
        %v1180 = vpop.xlane.xlu0 %1179
        %1181 = vmax.xlane.f32.xlu0 %v1158
        %v1182 = vpop.xlane.xlu0 %1181
        %1183 = vmax.xlane.f32.xlu0 %v1159
        %v1184 = vpop.xlane.xlu0 %1183
        %1185 = vmax.xlane.f32.xlu0 %v1160
        %v1186 = vpop.xlane.xlu0 %1185
        %1187 = vmax.xlane.f32.xlu0 %v1161
        %v1188 = vpop.xlane.xlu0 %1187
        %1189 = vmax.xlane.f32.xlu0 %v1162
        %v1190 = vpop.xlane.xlu0 %1189
        %1191 = vmax.xlane.f32.xlu0 %v1163
        %v1192 = vpop.xlane.xlu0 %1191
        %1193 = vmax.xlane.f32.xlu0 %v1164
        %v1194 = vpop.xlane.xlu0 %1193
        %1195 = vmax.xlane.f32.xlu0 %v1165
        %v1196 = vpop.xlane.xlu0 %1195
        %1197 = vmax.xlane.f32.xlu0 %v1166
        %v1198 = vpop.xlane.xlu0 %1197
        %v1199 = vsub.f32 %v1151, %v1168
        %v1200 = vsub.f32 %v1152, %v1170
        %v1201 = vsub.f32 %v1153, %v1172
        %v1202 = vsub.f32 %v1154, %v1174
        %v1203 = vsub.f32 %v1155, %v1176
        %v1204 = vsub.f32 %v1156, %v1178
        %v1205 = vsub.f32 %v1157, %v1180
        %v1206 = vsub.f32 %v1158, %v1182
        %v1207 = vsub.f32 %v1159, %v1184
        %v1208 = vsub.f32 %v1160, %v1186
        %v1209 = vsub.f32 %v1161, %v1188
        %v1210 = vsub.f32 %v1162, %v1190
        %v1211 = vsub.f32 %v1163, %v1192
        %v1212 = vsub.f32 %v1164, %v1194
        %v1213 = vsub.f32 %v1165, %v1196
        %v1214 = vsub.f32 %v1166, %v1198
        %v1215 = vmul.f32 %v1199, 1.442695
        %v1216 = vpow.pop %v1215
        %v1217 = vmul.f32 %v1200, 1.442695
        %v1218 = vpow.pop %v1217
        %v1219 = vmul.f32 %v1201, 1.442695
        %v1220 = vpow.pop %v1219
        %v1221 = vmul.f32 %v1202, 1.442695
        %v1222 = vpow.pop %v1221
        %v1223 = vmul.f32 %v1203, 1.442695
        %v1224 = vpow.pop %v1223
        %v1225 = vmul.f32 %v1204, 1.442695
        %v1226 = vpow.pop %v1225
        %v1227 = vmul.f32 %v1205, 1.442695
        %v1228 = vpow.pop %v1227
        %v1229 = vmul.f32 %v1206, 1.442695
        %v1230 = vpow.pop %v1229
        %v1231 = vmul.f32 %v1207, 1.442695
        %v1232 = vpow.pop %v1231
        %v1233 = vmul.f32 %v1208, 1.442695
        %v1234 = vpow.pop %v1233
        %v1235 = vmul.f32 %v1209, 1.442695
        %v1236 = vpow.pop %v1235
        %v1237 = vmul.f32 %v1210, 1.442695
        %v1238 = vpow.pop %v1237
        %v1239 = vmul.f32 %v1211, 1.442695
        %v1240 = vpow.pop %v1239
        %v1241 = vmul.f32 %v1212, 1.442695
        %v1242 = vpow.pop %v1241
        %v1243 = vmul.f32 %v1213, 1.442695
        %v1244 = vpow.pop %v1243
        %v1245 = vmul.f32 %v1214, 1.442695
        %v1246 = vpow.pop %v1245
        %1247 = vadd.xlane.f32.xlu0 %v1216
        %v1248 = vpop.xlane.xlu0 %1247
        %1249 = vadd.xlane.f32.xlu0 %v1218
        %v1250 = vpop.xlane.xlu0 %1249
        %1251 = vadd.xlane.f32.xlu0 %v1220
        %v1252 = vpop.xlane.xlu0 %1251
        %1253 = vadd.xlane.f32.xlu0 %v1222
        %v1254 = vpop.xlane.xlu0 %1253
        %1255 = vadd.xlane.f32.xlu0 %v1224
        %v1256 = vpop.xlane.xlu0 %1255
        %1257 = vadd.xlane.f32.xlu0 %v1226
        %v1258 = vpop.xlane.xlu0 %1257
        %1259 = vadd.xlane.f32.xlu0 %v1228
        %v1260 = vpop.xlane.xlu0 %1259
        %1261 = vadd.xlane.f32.xlu0 %v1230
        %v1262 = vpop.xlane.xlu0 %1261
        %1263 = vadd.xlane.f32.xlu0 %v1232
        %v1264 = vpop.xlane.xlu0 %1263
        %1265 = vadd.xlane.f32.xlu0 %v1234
        %v1266 = vpop.xlane.xlu0 %1265
        %1267 = vadd.xlane.f32.xlu0 %v1236
        %v1268 = vpop.xlane.xlu0 %1267
        %1269 = vadd.xlane.f32.xlu0 %v1238
        %v1270 = vpop.xlane.xlu0 %1269
        %1271 = vadd.xlane.f32.xlu0 %v1240
        %v1272 = vpop.xlane.xlu0 %1271
        %1273 = vadd.xlane.f32.xlu0 %v1242
        %v1274 = vpop.xlane.xlu0 %1273
        %1275 = vadd.xlane.f32.xlu0 %v1244
        %v1276 = vpop.xlane.xlu0 %1275
        %1277 = vadd.xlane.f32.xlu0 %v1246
        %v1278 = vpop.xlane.xlu0 %1277
        %v1279 = vrcp.pop %v1248
        %v1280 = vrcp.pop %v1250
        %v1281 = vrcp.pop %v1252
        %v1282 = vrcp.pop %v1254
        %v1283 = vrcp.pop %v1256
        %v1284 = vrcp.pop %v1258
        %v1285 = vrcp.pop %v1260
        %v1286 = vrcp.pop %v1262
        %v1287 = vrcp.pop %v1264
        %v1288 = vrcp.pop %v1266
        %v1289 = vrcp.pop %v1268
        %v1290 = vrcp.pop %v1270
        %v1291 = vrcp.pop %v1272
        %v1292 = vrcp.pop %v1274
        %v1293 = vrcp.pop %v1276
        %v1294 = vrcp.pop %v1278
        %v1295 = vmul.f32 %v1216, %v1279
        %v1296 = vmul.f32 %v1218, %v1280
        %v1297 = vmul.f32 %v1220, %v1281
        %v1298 = vmul.f32 %v1222, %v1282
        %v1299 = vmul.f32 %v1224, %v1283
        %v1300 = vmul.f32 %v1226, %v1284
        %v1301 = vmul.f32 %v1228, %v1285
        %v1302 = vmul.f32 %v1230, %v1286
        %v1303 = vmul.f32 %v1232, %v1287
        %v1304 = vmul.f32 %v1234, %v1288
        %v1305 = vmul.f32 %v1236, %v1289
        %v1306 = vmul.f32 %v1238, %v1290
        %v1307 = vmul.f32 %v1240, %v1291
        %v1308 = vmul.f32 %v1242, %v1292
        %v1309 = vmul.f32 %v1244, %v1293
        %v1310 = vmul.f32 %v1246, %v1294
        %v1311 = vpack.c.bf16 %v1296, %v1295
        %v1312 = vpack.c.bf16 %v1298, %v1297
        %v1313 = vpack.c.bf16 %v1300, %v1299
        %v1314 = vpack.c.bf16 %v1302, %v1301
        %v1315 = vpack.c.bf16 %v1304, %v1303
        %v1316 = vpack.c.bf16 %v1306, %v1305
        %v1317 = vpack.c.bf16 %v1308, %v1307
        %v1318 = vpack.c.bf16 %v1310, %v1309
        %1319 = vmatprep.subr.bf16.mxu0 0
        %1320 = vmatpush1.bf16.msra.mxu0 %v990
        %1321 = vmatprep.subr.bf16.mxu0 0
        %1322 = vmatpush1.bf16.msra.mxu0 %v992
        %1323 = vmatprep.subr.bf16.mxu0 0
        %1324 = vmatpush1.bf16.msra.mxu0 %v994
        %1325 = vmatprep.subr.bf16.mxu0 0
        %1326 = vmatpush1.bf16.msra.mxu0 %v996
        %1327 = vmatprep.subr.bf16.mxu0 0
        %1328 = vmatpush1.bf16.msra.mxu0 %v998
        %1329 = vmatprep.subr.bf16.mxu0 0
        %1330 = vmatpush1.bf16.msra.mxu0 %v1000
        %1331 = vmatprep.subr.bf16.mxu0 0
        %1332 = vmatpush1.bf16.msra.mxu0 %v1002
        %1333 = vmatprep.subr.bf16.mxu0 0
        %1334 = vmatpush1.bf16.msra.mxu0 %v1004
        %1335 = vmatprep.subr.bf16.mxu0 0
        %1336 = vmatpush1.bf16.msra.mxu0 0
        %1337 = vmatprep.subr.bf16.mxu0 0
        %1338 = vmatpush1.bf16.msra.mxu0 0
        %1339 = vmatprep.subr.bf16.mxu0 0
        %1340 = vmatpush1.bf16.msra.mxu0 0
        %1341 = vmatprep.subr.bf16.mxu0 0
        %1342 = vmatpush1.bf16.msra.mxu0 0
        %1343 = vmatprep.subr.bf16.mxu0 0
        %1344 = vmatpush1.bf16.msra.mxu0 0
        %1345 = vmatprep.subr.bf16.mxu0 0
        %1346 = vmatpush1.bf16.msra.mxu0 0
        %1347 = vmatprep.subr.bf16.mxu0 0
        %1348 = vmatpush1.bf16.msra.mxu0 0
        %1349 = vmatprep.subr.bf16.mxu0 0
        %1350 = vmatpush1.bf16.msra.mxu0 0
        %1351 = vmatprep.mubr.bf16.mxu0 0
        %1352 = vmatmul.mubr.bf16.gmra.mrb[0].mxu0 %v1311
        %v1353 = vpop.f32.mrb[0].mxu0
        %v1354 = vadd.f32 0.0, %v1353
        %v1355 = vpop.f32.mrb[0].mxu0
        %v1356 = vpop.f32.mrb[0].mxu0
        %v1357 = vadd.f32 0.0, %v1356
        %v1358 = vpop.f32.mrb[0].mxu0
        %1359 = vmatprep.mubr.bf16.mxu0 0
        %1360 = vmatmul.mubr.bf16.gmra.mrb[0].mxu0 %v1312
        %v1361 = vpop.f32.mrb[0].mxu0
        %v1362 = vadd.f32 0.0, %v1361
        %v1363 = vpop.f32.mrb[0].mxu0
        %v1364 = vpop.f32.mrb[0].mxu0
        %v1365 = vadd.f32 0.0, %v1364
        %v1366 = vpop.f32.mrb[0].mxu0
        %1367 = vmatprep.mubr.bf16.mxu0 0
        %1368 = vmatmul.mubr.bf16.gmra.mrb[0].mxu0 %v1313
        %v1369 = vpop.f32.mrb[0].mxu0
        %v1370 = vadd.f32 0.0, %v1369
        %v1371 = vpop.f32.mrb[0].mxu0
        %v1372 = vpop.f32.mrb[0].mxu0
        %v1373 = vadd.f32 0.0, %v1372
        %v1374 = vpop.f32.mrb[0].mxu0
        %1375 = vmatprep.mubr.bf16.mxu0 0
        %1376 = vmatmul.mubr.bf16.gmra.mrb[0].mxu0 %v1314
        %v1377 = vpop.f32.mrb[0].mxu0
        %v1378 = vadd.f32 0.0, %v1377
        %v1379 = vpop.f32.mrb[0].mxu0
        %v1380 = vpop.f32.mrb[0].mxu0
        %v1381 = vadd.f32 0.0, %v1380
        %v1382 = vpop.f32.mrb[0].mxu0
        %1383 = vmatprep.mubr.bf16.mxu0 0
        %1384 = vmatmul.mubr.bf16.gmra.mrb[0].mxu0 %v1315
        %v1385 = vpop.f32.mrb[0].mxu0
        %v1386 = vadd.f32 0.0, %v1385
        %v1387 = vpop.f32.mrb[0].mxu0
        %v1388 = vpop.f32.mrb[0].mxu0
        %v1389 = vadd.f32 0.0, %v1388
        %v1390 = vpop.f32.mrb[0].mxu0
        %1391 = vmatprep.mubr.bf16.mxu0 0
        %1392 = vmatmul.mubr.bf16.gmra.mrb[0].mxu0 %v1316
        %v1393 = vpop.f32.mrb[0].mxu0
        %v1394 = vadd.f32 0.0, %v1393
        %v1395 = vpop.f32.mrb[0].mxu0
        %v1396 = vpop.f32.mrb[0].mxu0
        %v1397 = vadd.f32 0.0, %v1396
        %v1398 = vpop.f32.mrb[0].mxu0
        %1399 = vmatprep.mubr.bf16.mxu0 0
        %1400 = vmatmul.mubr.bf16.gmra.mrb[0].mxu0 %v1317
        %v1401 = vpop.f32.mrb[0].mxu0
        %v1402 = vadd.f32 0.0, %v1401
        %v1403 = vpop.f32.mrb[0].mxu0
        %v1404 = vpop.f32.mrb[0].mxu0
        %v1405 = vadd.f32 0.0, %v1404
        %v1406 = vpop.f32.mrb[0].mxu0
        %1407 = vmatprep.mubr.bf16.mxu0 0
        %1408 = vmatmul.mubr.bf16.gmra.mrb[0].mxu0 %v1318
        %v1409 = vpop.f32.mrb[0].mxu0
        %v1410 = vadd.f32 0.0, %v1409
        %v1411 = vpop.f32.mrb[0].mxu0
        %v1412 = vpop.f32.mrb[0].mxu0
        %v1413 = vadd.f32 0.0, %v1412
        %v1414 = vpop.f32.mrb[0].mxu0
        %1415 = vdwg.mxu0
        %v1416 = vpack.c.bf16 %v1357, %v1354
        %v1417 = vpack.c.bf16 %v1365, %v1362
        %v1418 = vpack.c.bf16 %v1373, %v1370
        %v1419 = vpack.c.bf16 %v1381, %v1378
        %v1420 = vpack.c.bf16 %v1389, %v1386
        %v1421 = vpack.c.bf16 %v1397, %v1394
        %v1422 = vpack.c.bf16 %v1405, %v1402
        %v1423 = vpack.c.bf16 %v1413, %v1410
        %v1424 = vld [vmem:[#allocation11] sm:$0xf]
        %v1425 = vld [vmem:[#allocation11 + $0x4] sm:$0xf]
        %v1426 = vld [vmem:[#allocation11 + $0x8] sm:$0xf]
        %v1427 = vld [vmem:[#allocation11 + $0xc] sm:$0xf]
        %1436 = vrot.lane.b32.xlu0 %v981, 96
        %v1437 = vpop.permute.xlu0 %1436
        %1438 = vrot.lane.b32.xlu0 %v982, 96
        %v1439 = vpop.permute.xlu0 %1438
        %1440 = vrot.lane.b32.xlu0 %v983, 96
        %v1441 = vpop.permute.xlu0 %1440
        %1442 = vrot.lane.b32.xlu0 %v984, 96
        %v1443 = vpop.permute.xlu0 %1442
        %1444 = vrot.lane.b32.xlu0 %v985, 96
        %v1445 = vpop.permute.xlu0 %1444
        %1446 = vrot.lane.b32.xlu0 %v986, 96
        %v1447 = vpop.permute.xlu0 %1446
        %1448 = vrot.lane.b32.xlu0 %v987, 96
        %v1449 = vpop.permute.xlu0 %1448
        %1450 = vrot.lane.b32.xlu0 %v988, 96
        %v1451 = vpop.permute.xlu0 %1450
        %1460 = vrot.lane.b32.xlu0 %v989, 96
        %v1461 = vpop.permute.xlu0 %1460
        %1462 = vrot.lane.b32.xlu0 %v991, 96
        %v1463 = vpop.permute.xlu0 %1462
        %1464 = vrot.lane.b32.xlu0 %v993, 96
        %v1465 = vpop.permute.xlu0 %1464
        %1466 = vrot.lane.b32.xlu0 %v995, 96
        %v1467 = vpop.permute.xlu0 %1466
        %1468 = vrot.lane.b32.xlu0 %v997, 96
        %v1469 = vpop.permute.xlu0 %1468
        %1470 = vrot.lane.b32.xlu0 %v999, 96
        %v1471 = vpop.permute.xlu0 %1470
        %1472 = vrot.lane.b32.xlu0 %v1001, 96
        %v1473 = vpop.permute.xlu0 %1472
        %1474 = vrot.lane.b32.xlu0 %v1003, 96
        %v1475 = vpop.permute.xlu0 %1474
        %v1477 = vsel %vm1005, %v1437, 0
        %v1480 = vsel %vm1005, %v1439, 0
        %v1483 = vsel %vm1005, %v1441, 0
        %v1486 = vsel %vm1005, %v1443, 0
        %v1489 = vsel %vm1005, %v1445, 0
        %v1492 = vsel %vm1005, %v1447, 0
        %v1495 = vsel %vm1005, %v1449, 0
        %v1498 = vsel %vm1005, %v1451, 0
        %v1501 = vsel %vm1005, %v1461, 0
        %v1504 = vsel %vm1005, %v1463, 0
        %v1507 = vsel %vm1005, %v1465, 0
        %v1510 = vsel %vm1005, %v1467, 0
        %v1513 = vsel %vm1005, %v1469, 0
        %v1516 = vsel %vm1005, %v1471, 0
        %v1519 = vsel %vm1005, %v1473, 0
        %v1522 = vsel %vm1005, %v1475, 0
        %1524 = vmatprep.subr.bf16.mxu0 0
        %1525 = vmatpush1.bf16.xpose.msra.mxu0 %v1501
        %1526 = vmatprep.subr.bf16.mxu0 0
        %1527 = vmatpush1.bf16.xpose.msra.mxu0 %v1504
        %1528 = vmatprep.subr.bf16.mxu0 0
        %1529 = vmatpush1.bf16.xpose.msra.mxu0 %v1507
        %1530 = vmatprep.subr.bf16.mxu0 0
        %1531 = vmatpush1.bf16.xpose.msra.mxu0 %v1510
        %1532 = vmatprep.subr.bf16.mxu0 0
        %1533 = vmatpush1.bf16.xpose.msra.mxu0 %v1513
        %1534 = vmatprep.subr.bf16.mxu0 0
        %1535 = vmatpush1.bf16.xpose.msra.mxu0 %v1516
        %1536 = vmatprep.subr.bf16.mxu0 0
        %1537 = vmatpush1.bf16.xpose.msra.mxu0 %v1519
        %1538 = vmatprep.subr.bf16.mxu0 0
        %1539 = vmatpush1.bf16.xpose.msra.mxu0 %v1522
        %1540 = vmatprep.subr.bf16.mxu0 0
        %1541 = vmatpush1.bf16.xpose.msra.mxu0 0
        %1542 = vmatprep.subr.bf16.mxu0 0
        %1543 = vmatpush1.bf16.xpose.msra.mxu0 0
        %1544 = vmatprep.subr.bf16.mxu0 0
        %1545 = vmatpush1.bf16.xpose.msra.mxu0 0
        %1546 = vmatprep.subr.bf16.mxu0 0
        %1547 = vmatpush1.bf16.xpose.msra.mxu0 0
        %1548 = vmatprep.subr.bf16.mxu0 0
        %1549 = vmatpush1.bf16.xpose.msra.mxu0 0
        %1550 = vmatprep.subr.bf16.mxu0 0
        %1551 = vmatpush1.bf16.xpose.msra.mxu0 0
        %1552 = vmatprep.subr.bf16.mxu0 0
        %1553 = vmatpush1.bf16.xpose.msra.mxu0 0
        %1554 = vmatprep.subr.bf16.mxu0 0
        %1555 = vmatpush1.bf16.xpose.msra.mxu0 0
        %1556 = vmatprep.mubr.bf16.mxu0 0
        %1557 = vmatmul.mubr.bf16.gmra.mrb[0].mxu0 %v1477
        %v1558 = vpop.f32.mrb[0].mxu0
        %v1559 = vadd.f32 0.0, %v1558
        %v1560 = vpop.f32.mrb[0].mxu0
        %v1561 = vpop.f32.mrb[0].mxu0
        %v1562 = vadd.f32 0.0, %v1561
        %v1563 = vpop.f32.mrb[0].mxu0
        %1564 = vmatprep.mubr.bf16.mxu0 0
        %1565 = vmatmul.mubr.bf16.gmra.mrb[0].mxu0 %v1480
        %v1566 = vpop.f32.mrb[0].mxu0
        %v1567 = vadd.f32 0.0, %v1566
        %v1568 = vpop.f32.mrb[0].mxu0
        %v1569 = vpop.f32.mrb[0].mxu0
        %v1570 = vadd.f32 0.0, %v1569
        %v1571 = vpop.f32.mrb[0].mxu0
        %1572 = vmatprep.mubr.bf16.mxu0 0
        %1573 = vmatmul.mubr.bf16.gmra.mrb[0].mxu0 %v1483
        %v1574 = vpop.f32.mrb[0].mxu0
        %v1575 = vadd.f32 0.0, %v1574
        %v1576 = vpop.f32.mrb[0].mxu0
        %v1577 = vpop.f32.mrb[0].mxu0
        %v1578 = vadd.f32 0.0, %v1577
        %v1579 = vpop.f32.mrb[0].mxu0
        %1580 = vmatprep.mubr.bf16.mxu0 0
        %1581 = vmatmul.mubr.bf16.gmra.mrb[0].mxu0 %v1486
        %v1582 = vpop.f32.mrb[0].mxu0
        %v1583 = vadd.f32 0.0, %v1582
        %v1584 = vpop.f32.mrb[0].mxu0
        %v1585 = vpop.f32.mrb[0].mxu0
        %v1586 = vadd.f32 0.0, %v1585
        %v1587 = vpop.f32.mrb[0].mxu0
        %1588 = vmatprep.mubr.bf16.mxu0 0
        %1589 = vmatmul.mubr.bf16.gmra.mrb[0].mxu0 %v1489
        %v1590 = vpop.f32.mrb[0].mxu0
        %v1591 = vadd.f32 0.0, %v1590
        %v1592 = vpop.f32.mrb[0].mxu0
        %v1593 = vpop.f32.mrb[0].mxu0
        %v1594 = vadd.f32 0.0, %v1593
        %v1595 = vpop.f32.mrb[0].mxu0
        %1596 = vmatprep.mubr.bf16.mxu0 0
        %1597 = vmatmul.mubr.bf16.gmra.mrb[0].mxu0 %v1492
        %v1598 = vpop.f32.mrb[0].mxu0
        %v1599 = vadd.f32 0.0, %v1598
        %v1600 = vpop.f32.mrb[0].mxu0
        %v1601 = vpop.f32.mrb[0].mxu0
        %v1602 = vadd.f32 0.0, %v1601
        %v1603 = vpop.f32.mrb[0].mxu0
        %1604 = vmatprep.mubr.bf16.mxu0 0
        %1605 = vmatmul.mubr.bf16.gmra.mrb[0].mxu0 %v1495
        %v1606 = vpop.f32.mrb[0].mxu0
        %v1607 = vadd.f32 0.0, %v1606
        %v1608 = vpop.f32.mrb[0].mxu0
        %v1609 = vpop.f32.mrb[0].mxu0
        %v1610 = vadd.f32 0.0, %v1609
        %v1611 = vpop.f32.mrb[0].mxu0
        %1612 = vmatprep.mubr.bf16.mxu0 0
        %1613 = vmatmul.mubr.bf16.gmra.mrb[0].mxu0 %v1498
        %v1614 = vpop.f32.mrb[0].mxu0
        %v1615 = vadd.f32 0.0, %v1614
        %v1616 = vpop.f32.mrb[0].mxu0
        %v1617 = vpop.f32.mrb[0].mxu0
        %v1618 = vadd.f32 0.0, %v1617
        %v1619 = vpop.f32.mrb[0].mxu0
        %1620 = vdwg.mxu0
        %v1621 = vmul.f32 %v1559, 0.17677669
        %v1622 = vmul.f32 %v1562, 0.17677669
        %v1623 = vmul.f32 %v1567, 0.17677669
        %v1624 = vmul.f32 %v1570, 0.17677669
        %v1625 = vmul.f32 %v1575, 0.17677669
        %v1626 = vmul.f32 %v1578, 0.17677669
        %v1627 = vmul.f32 %v1583, 0.17677669
        %v1628 = vmul.f32 %v1586, 0.17677669
        %v1629 = vmul.f32 %v1591, 0.17677669
        %v1630 = vmul.f32 %v1594, 0.17677669
        %v1631 = vmul.f32 %v1599, 0.17677669
        %v1632 = vmul.f32 %v1602, 0.17677669
        %v1633 = vmul.f32 %v1607, 0.17677669
        %v1634 = vmul.f32 %v1610, 0.17677669
        %v1635 = vmul.f32 %v1615, 0.17677669
        %v1636 = vmul.f32 %v1618, 0.17677669
        %1637 = vmax.xlane.f32.xlu0 %v1621
        %v1638 = vpop.xlane.xlu0 %1637
        %1639 = vmax.xlane.f32.xlu0 %v1622
        %v1640 = vpop.xlane.xlu0 %1639
        %1641 = vmax.xlane.f32.xlu0 %v1623
        %v1642 = vpop.xlane.xlu0 %1641
        %1643 = vmax.xlane.f32.xlu0 %v1624
        %v1644 = vpop.xlane.xlu0 %1643
        %1645 = vmax.xlane.f32.xlu0 %v1625
        %v1646 = vpop.xlane.xlu0 %1645
        %1647 = vmax.xlane.f32.xlu0 %v1626
        %v1648 = vpop.xlane.xlu0 %1647
        %1649 = vmax.xlane.f32.xlu0 %v1627
        %v1650 = vpop.xlane.xlu0 %1649
        %1651 = vmax.xlane.f32.xlu0 %v1628
        %v1652 = vpop.xlane.xlu0 %1651
        %1653 = vmax.xlane.f32.xlu0 %v1629
        %v1654 = vpop.xlane.xlu0 %1653
        %1655 = vmax.xlane.f32.xlu0 %v1630
        %v1656 = vpop.xlane.xlu0 %1655
        %1657 = vmax.xlane.f32.xlu0 %v1631
        %v1658 = vpop.xlane.xlu0 %1657
        %1659 = vmax.xlane.f32.xlu0 %v1632
        %v1660 = vpop.xlane.xlu0 %1659
        %1661 = vmax.xlane.f32.xlu0 %v1633
        %v1662 = vpop.xlane.xlu0 %1661
        %1663 = vmax.xlane.f32.xlu0 %v1634
        %v1664 = vpop.xlane.xlu0 %1663
        %1665 = vmax.xlane.f32.xlu0 %v1635
        %v1666 = vpop.xlane.xlu0 %1665
        %1667 = vmax.xlane.f32.xlu0 %v1636
        %v1668 = vpop.xlane.xlu0 %1667
        %v1669 = vsub.f32 %v1621, %v1638
        %v1670 = vsub.f32 %v1622, %v1640
        %v1671 = vsub.f32 %v1623, %v1642
        %v1672 = vsub.f32 %v1624, %v1644
        %v1673 = vsub.f32 %v1625, %v1646
        %v1674 = vsub.f32 %v1626, %v1648
        %v1675 = vsub.f32 %v1627, %v1650
        %v1676 = vsub.f32 %v1628, %v1652
        %v1677 = vsub.f32 %v1629, %v1654
        %v1678 = vsub.f32 %v1630, %v1656
        %v1679 = vsub.f32 %v1631, %v1658
        %v1680 = vsub.f32 %v1632, %v1660
        %v1681 = vsub.f32 %v1633, %v1662
        %v1682 = vsub.f32 %v1634, %v1664
        %v1683 = vsub.f32 %v1635, %v1666
        %v1684 = vsub.f32 %v1636, %v1668
        %v1685 = vmul.f32 %v1669, 1.442695
        %v1686 = vpow.pop %v1685
        %v1687 = vmul.f32 %v1670, 1.442695
        %v1688 = vpow.pop %v1687
        %v1689 = vmul.f32 %v1671, 1.442695
        %v1690 = vpow.pop %v1689
        %v1691 = vmul.f32 %v1672, 1.442695
        %v1692 = vpow.pop %v1691
        %v1693 = vmul.f32 %v1673, 1.442695
        %v1694 = vpow.pop %v1693
        %v1695 = vmul.f32 %v1674, 1.442695
        %v1696 = vpow.pop %v1695
        %v1697 = vmul.f32 %v1675, 1.442695
        %v1698 = vpow.pop %v1697
        %v1699 = vmul.f32 %v1676, 1.442695
        %v1700 = vpow.pop %v1699
        %v1701 = vmul.f32 %v1677, 1.442695
        %v1702 = vpow.pop %v1701
        %v1703 = vmul.f32 %v1678, 1.442695
        %v1704 = vpow.pop %v1703
        %v1705 = vmul.f32 %v1679, 1.442695
        %v1706 = vpow.pop %v1705
        %v1707 = vmul.f32 %v1680, 1.442695
        %v1708 = vpow.pop %v1707
        %v1709 = vmul.f32 %v1681, 1.442695
        %v1710 = vpow.pop %v1709
        %v1711 = vmul.f32 %v1682, 1.442695
        %v1712 = vpow.pop %v1711
        %v1713 = vmul.f32 %v1683, 1.442695
        %v1714 = vpow.pop %v1713
        %v1715 = vmul.f32 %v1684, 1.442695
        %v1716 = vpow.pop %v1715
        %1717 = vadd.xlane.f32.xlu0 %v1686
        %v1718 = vpop.xlane.xlu0 %1717
        %1719 = vadd.xlane.f32.xlu0 %v1688
        %v1720 = vpop.xlane.xlu0 %1719
        %1721 = vadd.xlane.f32.xlu0 %v1690
        %v1722 = vpop.xlane.xlu0 %1721
        %1723 = vadd.xlane.f32.xlu0 %v1692
        %v1724 = vpop.xlane.xlu0 %1723
        %1725 = vadd.xlane.f32.xlu0 %v1694
        %v1726 = vpop.xlane.xlu0 %1725
        %1727 = vadd.xlane.f32.xlu0 %v1696
        %v1728 = vpop.xlane.xlu0 %1727
        %1729 = vadd.xlane.f32.xlu0 %v1698
        %v1730 = vpop.xlane.xlu0 %1729
        %1731 = vadd.xlane.f32.xlu0 %v1700
        %v1732 = vpop.xlane.xlu0 %1731
        %1733 = vadd.xlane.f32.xlu0 %v1702
        %v1734 = vpop.xlane.xlu0 %1733
        %1735 = vadd.xlane.f32.xlu0 %v1704
        %v1736 = vpop.xlane.xlu0 %1735
        %1737 = vadd.xlane.f32.xlu0 %v1706
        %v1738 = vpop.xlane.xlu0 %1737
        %1739 = vadd.xlane.f32.xlu0 %v1708
        %v1740 = vpop.xlane.xlu0 %1739
        %1741 = vadd.xlane.f32.xlu0 %v1710
        %v1742 = vpop.xlane.xlu0 %1741
        %1743 = vadd.xlane.f32.xlu0 %v1712
        %v1744 = vpop.xlane.xlu0 %1743
        %1745 = vadd.xlane.f32.xlu0 %v1714
        %v1746 = vpop.xlane.xlu0 %1745
        %1747 = vadd.xlane.f32.xlu0 %v1716
        %v1748 = vpop.xlane.xlu0 %1747
        %v1749 = vrcp.pop %v1718
        %v1750 = vrcp.pop %v1720
        %v1751 = vrcp.pop %v1722
        %v1752 = vrcp.pop %v1724
        %v1753 = vrcp.pop %v1726
        %v1754 = vrcp.pop %v1728
        %v1755 = vrcp.pop %v1730
        %v1756 = vrcp.pop %v1732
        %v1757 = vrcp.pop %v1734
        %v1758 = vrcp.pop %v1736
        %v1759 = vrcp.pop %v1738
        %v1760 = vrcp.pop %v1740
        %v1761 = vrcp.pop %v1742
        %v1762 = vrcp.pop %v1744
        %v1763 = vrcp.pop %v1746
        %v1764 = vrcp.pop %v1748
        %v1765 = vmul.f32 %v1686, %v1749
        %v1766 = vmul.f32 %v1688, %v1750
        %v1767 = vmul.f32 %v1690, %v1751
        %v1768 = vmul.f32 %v1692, %v1752
        %v1769 = vmul.f32 %v1694, %v1753
        %v1770 = vmul.f32 %v1696, %v1754
        %v1771 = vmul.f32 %v1698, %v1755
        %v1772 = vmul.f32 %v1700, %v1756
        %v1773 = vmul.f32 %v1702, %v1757
        %v1774 = vmul.f32 %v1704, %v1758
        %v1775 = vmul.f32 %v1706, %v1759
        %v1776 = vmul.f32 %v1708, %v1760
        %v1777 = vmul.f32 %v1710, %v1761
        %v1778 = vmul.f32 %v1712, %v1762
        %v1779 = vmul.f32 %v1714, %v1763
        %v1780 = vmul.f32 %v1716, %v1764
        %v1781 = vpack.c.bf16 %v1766, %v1765
        %v1782 = vpack.c.bf16 %v1768, %v1767
        %v1783 = vpack.c.bf16 %v1770, %v1769
        %v1784 = vpack.c.bf16 %v1772, %v1771
        %v1785 = vpack.c.bf16 %v1774, %v1773
        %v1786 = vpack.c.bf16 %v1776, %v1775
        %v1787 = vpack.c.bf16 %v1778, %v1777
        %v1788 = vpack.c.bf16 %v1780, %v1779
        %1797 = vrot.lane.b32.xlu0 %v990, 96
        %v1798 = vpop.permute.xlu0 %1797
        %1799 = vrot.lane.b32.xlu0 %v992, 96
        %v1800 = vpop.permute.xlu0 %1799
        %1801 = vrot.lane.b32.xlu0 %v994, 96
        %v1802 = vpop.permute.xlu0 %1801
        %1803 = vrot.lane.b32.xlu0 %v996, 96
        %v1804 = vpop.permute.xlu0 %1803
        %1805 = vrot.lane.b32.xlu0 %v998, 96
        %v1806 = vpop.permute.xlu0 %1805
        %1807 = vrot.lane.b32.xlu0 %v1000, 96
        %v1808 = vpop.permute.xlu0 %1807
        %1809 = vrot.lane.b32.xlu0 %v1002, 96
        %v1810 = vpop.permute.xlu0 %1809
        %1811 = vrot.lane.b32.xlu0 %v1004, 96
        %v1812 = vpop.permute.xlu0 %1811
        %1821 = vmatprep.subr.bf16.mxu0 0
        %1822 = vmatpush1.bf16.msra.mxu0 %v1798
        %1823 = vmatprep.subr.bf16.mxu0 0
        %1824 = vmatpush1.bf16.msra.mxu0 %v1800
        %1825 = vmatprep.subr.bf16.mxu0 0
        %1826 = vmatpush1.bf16.msra.mxu0 %v1802
        %1827 = vmatprep.subr.bf16.mxu0 0
        %1828 = vmatpush1.bf16.msra.mxu0 %v1804
        %1829 = vmatprep.subr.bf16.mxu0 0
        %1830 = vmatpush1.bf16.msra.mxu0 %v1806
        %1831 = vmatprep.subr.bf16.mxu0 0
        %1832 = vmatpush1.bf16.msra.mxu0 %v1808
        %1833 = vmatprep.subr.bf16.mxu0 0
        %1834 = vmatpush1.bf16.msra.mxu0 %v1810
        %1835 = vmatprep.subr.bf16.mxu0 0
        %1836 = vmatpush1.bf16.msra.mxu0 %v1812
        %1837 = vmatprep.subr.bf16.mxu0 0
        %1838 = vmatpush1.bf16.msra.mxu0 0
        %1839 = vmatprep.subr.bf16.mxu0 0
        %1840 = vmatpush1.bf16.msra.mxu0 0
        %1841 = vmatprep.subr.bf16.mxu0 0
        %1842 = vmatpush1.bf16.msra.mxu0 0
        %1843 = vmatprep.subr.bf16.mxu0 0
        %1844 = vmatpush1.bf16.msra.mxu0 0
        %1845 = vmatprep.subr.bf16.mxu0 0
        %1846 = vmatpush1.bf16.msra.mxu0 0
        %1847 = vmatprep.subr.bf16.mxu0 0
        %1848 = vmatpush1.bf16.msra.mxu0 0
        %1849 = vmatprep.subr.bf16.mxu0 0
        %1850 = vmatpush1.bf16.msra.mxu0 0
        %1851 = vmatprep.subr.bf16.mxu0 0
        %1852 = vmatpush1.bf16.msra.mxu0 0
        %1853 = vmatprep.mubr.bf16.mxu0 0
        %1854 = vmatmul.mubr.bf16.gmra.mrb[0].mxu0 %v1781
        %v1855 = vpop.f32.mrb[0].mxu0
        %v1856 = vadd.f32 0.0, %v1855
        %v1857 = vpop.f32.mrb[0].mxu0
        %v1858 = vpop.f32.mrb[0].mxu0
        %v1859 = vadd.f32 0.0, %v1858
        %v1860 = vpop.f32.mrb[0].mxu0
        %1861 = vmatprep.mubr.bf16.mxu0 0
        %1862 = vmatmul.mubr.bf16.gmra.mrb[0].mxu0 %v1782
        %v1863 = vpop.f32.mrb[0].mxu0
        %v1864 = vadd.f32 0.0, %v1863
        %v1865 = vpop.f32.mrb[0].mxu0
        %v1866 = vpop.f32.mrb[0].mxu0
        %v1867 = vadd.f32 0.0, %v1866
        %v1868 = vpop.f32.mrb[0].mxu0
        %1869 = vmatprep.mubr.bf16.mxu0 0
        %1870 = vmatmul.mubr.bf16.gmra.mrb[0].mxu0 %v1783
        %v1871 = vpop.f32.mrb[0].mxu0
        %v1872 = vadd.f32 0.0, %v1871
        %v1873 = vpop.f32.mrb[0].mxu0
        %v1874 = vpop.f32.mrb[0].mxu0
        %v1875 = vadd.f32 0.0, %v1874
        %v1876 = vpop.f32.mrb[0].mxu0
        %1877 = vmatprep.mubr.bf16.mxu0 0
        %1878 = vmatmul.mubr.bf16.gmra.mrb[0].mxu0 %v1784
        %v1879 = vpop.f32.mrb[0].mxu0
        %v1880 = vadd.f32 0.0, %v1879
        %v1881 = vpop.f32.mrb[0].mxu0
        %v1882 = vpop.f32.mrb[0].mxu0
        %v1883 = vadd.f32 0.0, %v1882
        %v1884 = vpop.f32.mrb[0].mxu0
        %1885 = vmatprep.mubr.bf16.mxu0 0
        %1886 = vmatmul.mubr.bf16.gmra.mrb[0].mxu0 %v1785
        %v1887 = vpop.f32.mrb[0].mxu0
        %v1888 = vadd.f32 0.0, %v1887
        %v1889 = vpop.f32.mrb[0].mxu0
        %v1890 = vpop.f32.mrb[0].mxu0
        %v1891 = vadd.f32 0.0, %v1890
        %v1892 = vpop.f32.mrb[0].mxu0
        %1893 = vmatprep.mubr.bf16.mxu0 0
        %1894 = vmatmul.mubr.bf16.gmra.mrb[0].mxu0 %v1786
        %v1895 = vpop.f32.mrb[0].mxu0
        %v1896 = vadd.f32 0.0, %v1895
        %v1897 = vpop.f32.mrb[0].mxu0
        %v1898 = vpop.f32.mrb[0].mxu0
        %v1899 = vadd.f32 0.0, %v1898
        %v1900 = vpop.f32.mrb[0].mxu0
        %1901 = vmatprep.mubr.bf16.mxu0 0
        %1902 = vmatmul.mubr.bf16.gmra.mrb[0].mxu0 %v1787
        %v1903 = vpop.f32.mrb[0].mxu0
        %v1904 = vadd.f32 0.0, %v1903
        %v1905 = vpop.f32.mrb[0].mxu0
        %v1906 = vpop.f32.mrb[0].mxu0
        %v1907 = vadd.f32 0.0, %v1906
        %v1908 = vpop.f32.mrb[0].mxu0
        %1909 = vmatprep.mubr.bf16.mxu0 0
        %1910 = vmatmul.mubr.bf16.gmra.mrb[0].mxu0 %v1788
        %v1911 = vpop.f32.mrb[0].mxu0
        %v1912 = vadd.f32 0.0, %v1911
        %v1913 = vpop.f32.mrb[0].mxu0
        %v1914 = vpop.f32.mrb[0].mxu0
        %v1915 = vadd.f32 0.0, %v1914
        %v1916 = vpop.f32.mrb[0].mxu0
        %1917 = vdwg.mxu0
        %v1918 = vpack.c.bf16 %v1859, %v1856
        %v1919 = vpack.c.bf16 %v1867, %v1864
        %v1920 = vpack.c.bf16 %v1875, %v1872
        %v1921 = vpack.c.bf16 %v1883, %v1880
        %v1922 = vpack.c.bf16 %v1891, %v1888
        %v1923 = vpack.c.bf16 %v1899, %v1896
        %v1924 = vpack.c.bf16 %v1907, %v1904
        %v1925 = vpack.c.bf16 %v1915, %v1912
        %v1926 = vld [vmem:[#allocation11 + $0x10] sm:$0xf]
        %v1927 = vld [vmem:[#allocation11 + $0x14] sm:$0xf]
        %v1928 = vld [vmem:[#allocation11 + $0x18] sm:$0xf]
        %v1929 = vld [vmem:[#allocation11 + $0x1c] sm:$0xf]
        %v1934 = vunpack.c.l.b16 %v1926
        %v1935 = vunpack.c.l.b16 %v1927
        %v1936 = vunpack.c.l.b16 %v1928
        %v1937 = vunpack.c.l.b16 %v1929
        %v1938 = vpack.c.b16 %v1935, %v1934
        %v1939 = vpack.c.b16 %v1937, %v1936
        %v1943 = vsel %vm1005, %v1918, 0
        %v1946 = vsel %vm1005, %v1919, 0
        %v1949 = vsel %vm1005, %v1920, 0
        %v1952 = vsel %vm1005, %v1921, 0
        %v1955 = vsel %vm1005, %v1922, 0
        %v1958 = vsel %vm1005, %v1923, 0
        %v1961 = vsel %vm1005, %v1924, 0
        %v1964 = vsel %vm1005, %v1925, 0
        %1966 = vmatprep.subr.bf16.mxu0 0
        %1967 = vmatpush1.bf16.msra.mxu0 %v1938
        %1968 = vmatprep.subr.bf16.mxu0 0
        %1969 = vmatpush1.bf16.msra.mxu0 %v1939
        %1970 = vmatprep.subr.bf16.mxu0 0
        %1971 = vmatpush1.bf16.msra.mxu0 0
        %1972 = vmatprep.subr.bf16.mxu0 0
        %1973 = vmatpush1.bf16.msra.mxu0 0
        %1974 = vmatprep.subr.bf16.mxu0 0
        %1975 = vmatpush1.bf16.msra.mxu0 0
        %1976 = vmatprep.subr.bf16.mxu0 0
        %1977 = vmatpush1.bf16.msra.mxu0 0
        %1978 = vmatprep.subr.bf16.mxu0 0
        %1979 = vmatpush1.bf16.msra.mxu0 0
        %1980 = vmatprep.subr.bf16.mxu0 0
        %1981 = vmatpush1.bf16.msra.mxu0 0
        %1982 = vmatprep.subr.bf16.mxu0 0
        %1983 = vmatpush1.bf16.msra.mxu0 0
        %1984 = vmatprep.subr.bf16.mxu0 0
        %1985 = vmatpush1.bf16.msra.mxu0 0
        %1986 = vmatprep.subr.bf16.mxu0 0
        %1987 = vmatpush1.bf16.msra.mxu0 0
        %1988 = vmatprep.subr.bf16.mxu0 0
        %1989 = vmatpush1.bf16.msra.mxu0 0
        %1990 = vmatprep.subr.bf16.mxu0 0
        %1991 = vmatpush1.bf16.msra.mxu0 0
        %1992 = vmatprep.subr.bf16.mxu0 0
        %1993 = vmatpush1.bf16.msra.mxu0 0
        %1994 = vmatprep.subr.bf16.mxu0 0
        %1995 = vmatpush1.bf16.msra.mxu0 0
        %1996 = vmatprep.subr.bf16.mxu0 0
        %1997 = vmatpush1.bf16.msra.mxu0 0
        %1998 = vmatprep.mubr.bf16.mxu0 0
        %1999 = vmatmul.mubr.bf16.gmra.mrb[0].mxu0 %v1943
        %v2000 = vpop.f32.mrb[0].mxu0
        %v2001 = vadd.f32 0.0, %v2000
        %v2002 = vpop.f32.mrb[0].mxu0
        %v2003 = vpop.f32.mrb[0].mxu0
        %v2004 = vadd.f32 0.0, %v2003
        %v2005 = vpop.f32.mrb[0].mxu0
        %2006 = vmatprep.mubr.bf16.mxu0 0
        %2007 = vmatmul.mubr.bf16.gmra.mrb[0].mxu0 %v1946
        %v2008 = vpop.f32.mrb[0].mxu0
        %v2009 = vadd.f32 0.0, %v2008
        %v2010 = vpop.f32.mrb[0].mxu0
        %v2011 = vpop.f32.mrb[0].mxu0
        %v2012 = vadd.f32 0.0, %v2011
        %v2013 = vpop.f32.mrb[0].mxu0
        %2014 = vmatprep.mubr.bf16.mxu0 0
        %2015 = vmatmul.mubr.bf16.gmra.mrb[0].mxu0 %v1949
        %v2016 = vpop.f32.mrb[0].mxu0
        %v2017 = vadd.f32 0.0, %v2016
        %v2018 = vpop.f32.mrb[0].mxu0
        %v2019 = vpop.f32.mrb[0].mxu0
        %v2020 = vadd.f32 0.0, %v2019
        %v2021 = vpop.f32.mrb[0].mxu0
        %2022 = vmatprep.mubr.bf16.mxu0 0
        %2023 = vmatmul.mubr.bf16.gmra.mrb[0].mxu0 %v1952
        %v2024 = vpop.f32.mrb[0].mxu0
        %v2025 = vadd.f32 0.0, %v2024
        %v2026 = vpop.f32.mrb[0].mxu0
        %v2027 = vpop.f32.mrb[0].mxu0
        %v2028 = vadd.f32 0.0, %v2027
        %v2029 = vpop.f32.mrb[0].mxu0
        %2030 = vmatprep.mubr.bf16.mxu0 0
        %2031 = vmatmul.mubr.bf16.gmra.mrb[0].mxu0 %v1955
        %v2032 = vpop.f32.mrb[0].mxu0
        %v2033 = vadd.f32 0.0, %v2032
        %v2034 = vpop.f32.mrb[0].mxu0
        %v2035 = vpop.f32.mrb[0].mxu0
        %v2036 = vadd.f32 0.0, %v2035
        %v2037 = vpop.f32.mrb[0].mxu0
        %2038 = vmatprep.mubr.bf16.mxu0 0
        %2039 = vmatmul.mubr.bf16.gmra.mrb[0].mxu0 %v1958
        %v2040 = vpop.f32.mrb[0].mxu0
        %v2041 = vadd.f32 0.0, %v2040
        %v2042 = vpop.f32.mrb[0].mxu0
        %v2043 = vpop.f32.mrb[0].mxu0
        %v2044 = vadd.f32 0.0, %v2043
        %v2045 = vpop.f32.mrb[0].mxu0
        %2046 = vmatprep.mubr.bf16.mxu0 0
        %2047 = vmatmul.mubr.bf16.gmra.mrb[0].mxu0 %v1961
        %v2048 = vpop.f32.mrb[0].mxu0
        %v2049 = vadd.f32 0.0, %v2048
        %v2050 = vpop.f32.mrb[0].mxu0
        %v2051 = vpop.f32.mrb[0].mxu0
        %v2052 = vadd.f32 0.0, %v2051
        %v2053 = vpop.f32.mrb[0].mxu0
        %2054 = vmatprep.mubr.bf16.mxu0 0
        %2055 = vmatmul.mubr.bf16.gmra.mrb[0].mxu0 %v1964
        %v2056 = vpop.f32.mrb[0].mxu0
        %v2057 = vadd.f32 0.0, %v2056
        %v2058 = vpop.f32.mrb[0].mxu0
        %v2059 = vpop.f32.mrb[0].mxu0
        %v2060 = vadd.f32 0.0, %v2059
        %v2061 = vpop.f32.mrb[0].mxu0
        %2062 = vdwg.mxu0
        %v2067 = vunpack.c.l.b16 %v1424
        %v2068 = vunpack.c.l.b16 %v1425
        %v2069 = vunpack.c.l.b16 %v1426
        %v2070 = vunpack.c.l.b16 %v1427
        %v2071 = vpack.c.b16 %v2068, %v2067
        %v2072 = vpack.c.b16 %v2070, %v2069
        %v2076 = vsel %vm1005, %v1416, 0
        %v2079 = vsel %vm1005, %v1417, 0
        %v2082 = vsel %vm1005, %v1418, 0
        %v2085 = vsel %vm1005, %v1419, 0
        %v2088 = vsel %vm1005, %v1420, 0
        %v2091 = vsel %vm1005, %v1421, 0
        %v2094 = vsel %vm1005, %v1422, 0
        %v2097 = vsel %vm1005, %v1423, 0
        %2099 = vmatprep.subr.bf16.mxu0 0
        %2100 = vmatpush1.bf16.msra.mxu0 %v2071
        %2101 = vmatprep.subr.bf16.mxu0 0
        %2102 = vmatpush1.bf16.msra.mxu0 %v2072
        %2103 = vmatprep.subr.bf16.mxu0 0
        %2104 = vmatpush1.bf16.msra.mxu0 0
        %2105 = vmatprep.subr.bf16.mxu0 0
        %2106 = vmatpush1.bf16.msra.mxu0 0
        %2107 = vmatprep.subr.bf16.mxu0 0
        %2108 = vmatpush1.bf16.msra.mxu0 0
        %2109 = vmatprep.subr.bf16.mxu0 0
        %2110 = vmatpush1.bf16.msra.mxu0 0
        %2111 = vmatprep.subr.bf16.mxu0 0
        %2112 = vmatpush1.bf16.msra.mxu0 0
        %2113 = vmatprep.subr.bf16.mxu0 0
        %2114 = vmatpush1.bf16.msra.mxu0 0
        %2115 = vmatprep.subr.bf16.mxu0 0
        %2116 = vmatpush1.bf16.msra.mxu0 0
        %2117 = vmatprep.subr.bf16.mxu0 0
        %2118 = vmatpush1.bf16.msra.mxu0 0
        %2119 = vmatprep.subr.bf16.mxu0 0
        %2120 = vmatpush1.bf16.msra.mxu0 0
        %2121 = vmatprep.subr.bf16.mxu0 0
        %2122 = vmatpush1.bf16.msra.mxu0 0
        %2123 = vmatprep.subr.bf16.mxu0 0
        %2124 = vmatpush1.bf16.msra.mxu0 0
        %2125 = vmatprep.subr.bf16.mxu0 0
        %2126 = vmatpush1.bf16.msra.mxu0 0
        %2127 = vmatprep.subr.bf16.mxu0 0
        %2128 = vmatpush1.bf16.msra.mxu0 0
        %2129 = vmatprep.subr.bf16.mxu0 0
        %2130 = vmatpush1.bf16.msra.mxu0 0
        %2131 = vmatprep.mubr.bf16.mxu0 0
        %2132 = vmatmul.mubr.bf16.gmra.mrb[0].mxu0 %v2076
        %v2133 = vpop.f32.mrb[0].mxu0
        %v2134 = vadd.f32 %v2001, %v2133
        %v2135 = vpop.f32.mrb[0].mxu0
        %v2136 = vpop.f32.mrb[0].mxu0
        %v2137 = vadd.f32 %v2004, %v2136
        %v2138 = vpop.f32.mrb[0].mxu0
        %2139 = vmatprep.mubr.bf16.mxu0 0
        %2140 = vmatmul.mubr.bf16.gmra.mrb[0].mxu0 %v2079
        %v2141 = vpop.f32.mrb[0].mxu0
        %v2142 = vadd.f32 %v2009, %v2141
        %v2143 = vpop.f32.mrb[0].mxu0
        %v2144 = vpop.f32.mrb[0].mxu0
        %v2145 = vadd.f32 %v2012, %v2144
        %v2146 = vpop.f32.mrb[0].mxu0
        %2147 = vmatprep.mubr.bf16.mxu0 0
        %2148 = vmatmul.mubr.bf16.gmra.mrb[0].mxu0 %v2082
        %v2149 = vpop.f32.mrb[0].mxu0
        %v2150 = vadd.f32 %v2017, %v2149
        %v2151 = vpop.f32.mrb[0].mxu0
        %v2152 = vpop.f32.mrb[0].mxu0
        %v2153 = vadd.f32 %v2020, %v2152
        %v2154 = vpop.f32.mrb[0].mxu0
        %2155 = vmatprep.mubr.bf16.mxu0 0
        %2156 = vmatmul.mubr.bf16.gmra.mrb[0].mxu0 %v2085
        %v2157 = vpop.f32.mrb[0].mxu0
        %v2158 = vadd.f32 %v2025, %v2157
        %v2159 = vpop.f32.mrb[0].mxu0
        %v2160 = vpop.f32.mrb[0].mxu0
        %v2161 = vadd.f32 %v2028, %v2160
        %v2162 = vpop.f32.mrb[0].mxu0
        %2163 = vmatprep.mubr.bf16.mxu0 0
        %2164 = vmatmul.mubr.bf16.gmra.mrb[0].mxu0 %v2088
        %v2165 = vpop.f32.mrb[0].mxu0
        %v2166 = vadd.f32 %v2033, %v2165
        %v2167 = vpop.f32.mrb[0].mxu0
        %v2168 = vpop.f32.mrb[0].mxu0
        %v2169 = vadd.f32 %v2036, %v2168
        %v2170 = vpop.f32.mrb[0].mxu0
        %2171 = vmatprep.mubr.bf16.mxu0 0
        %2172 = vmatmul.mubr.bf16.gmra.mrb[0].mxu0 %v2091
        %v2173 = vpop.f32.mrb[0].mxu0
        %v2174 = vadd.f32 %v2041, %v2173
        %v2175 = vpop.f32.mrb[0].mxu0
        %v2176 = vpop.f32.mrb[0].mxu0
        %v2177 = vadd.f32 %v2044, %v2176
        %v2178 = vpop.f32.mrb[0].mxu0
        %2179 = vmatprep.mubr.bf16.mxu0 0
        %2180 = vmatmul.mubr.bf16.gmra.mrb[0].mxu0 %v2094
        %v2181 = vpop.f32.mrb[0].mxu0
        %v2182 = vadd.f32 %v2049, %v2181
        %v2183 = vpop.f32.mrb[0].mxu0
        %v2184 = vpop.f32.mrb[0].mxu0
        %v2185 = vadd.f32 %v2052, %v2184
        %v2186 = vpop.f32.mrb[0].mxu0
        %2187 = vmatprep.mubr.bf16.mxu0 0
        %2188 = vmatmul.mubr.bf16.gmra.mrb[0].mxu0 %v2097
        %v2189 = vpop.f32.mrb[0].mxu0
        %v2190 = vadd.f32 %v2057, %v2189
        %v2191 = vpop.f32.mrb[0].mxu0
        %v2192 = vpop.f32.mrb[0].mxu0
        %v2193 = vadd.f32 %v2060, %v2192
        %v2194 = vpop.f32.mrb[0].mxu0
        %2195 = vdwg.mxu0
        %2196 = vrot.lane.b32.xlu0 %v981, 64
        %v2197 = vpop.permute.xlu0 %2196
        %2198 = vrot.lane.b32.xlu0 %v982, 64
        %v2199 = vpop.permute.xlu0 %2198
        %2200 = vrot.lane.b32.xlu0 %v983, 64
        %v2201 = vpop.permute.xlu0 %2200
        %2202 = vrot.lane.b32.xlu0 %v984, 64
        %v2203 = vpop.permute.xlu0 %2202
        %2204 = vrot.lane.b32.xlu0 %v985, 64
        %v2205 = vpop.permute.xlu0 %2204
        %2206 = vrot.lane.b32.xlu0 %v986, 64
        %v2207 = vpop.permute.xlu0 %2206
        %2208 = vrot.lane.b32.xlu0 %v987, 64
        %v2209 = vpop.permute.xlu0 %2208
        %2210 = vrot.lane.b32.xlu0 %v988, 64
        %v2211 = vpop.permute.xlu0 %2210
        %2212 = vrot.lane.b32.xlu0 %v989, 64
        %v2213 = vpop.permute.xlu0 %2212
        %2214 = vrot.lane.b32.xlu0 %v991, 64
        %v2215 = vpop.permute.xlu0 %2214
        %2216 = vrot.lane.b32.xlu0 %v993, 64
        %v2217 = vpop.permute.xlu0 %2216
        %2218 = vrot.lane.b32.xlu0 %v995, 64
        %v2219 = vpop.permute.xlu0 %2218
        %2220 = vrot.lane.b32.xlu0 %v997, 64
        %v2221 = vpop.permute.xlu0 %2220
        %2222 = vrot.lane.b32.xlu0 %v999, 64
        %v2223 = vpop.permute.xlu0 %2222
        %2224 = vrot.lane.b32.xlu0 %v1001, 64
        %v2225 = vpop.permute.xlu0 %2224
        %2226 = vrot.lane.b32.xlu0 %v1003, 64
        %v2227 = vpop.permute.xlu0 %2226
        %v2229 = vsel %vm1005, %v2197, 0
        %v2232 = vsel %vm1005, %v2199, 0
        %v2235 = vsel %vm1005, %v2201, 0
        %v2238 = vsel %vm1005, %v2203, 0
        %v2241 = vsel %vm1005, %v2205, 0
        %v2244 = vsel %vm1005, %v2207, 0
        %v2247 = vsel %vm1005, %v2209, 0
        %v2250 = vsel %vm1005, %v2211, 0
        %v2253 = vsel %vm1005, %v2213, 0
        %v2256 = vsel %vm1005, %v2215, 0
        %v2259 = vsel %vm1005, %v2217, 0
        %v2262 = vsel %vm1005, %v2219, 0
        %v2265 = vsel %vm1005, %v2221, 0
        %v2268 = vsel %vm1005, %v2223, 0
        %v2271 = vsel %vm1005, %v2225, 0
        %v2274 = vsel %vm1005, %v2227, 0
        %2276 = vmatprep.subr.bf16.mxu0 0
        %2277 = vmatpush1.bf16.xpose.msra.mxu0 %v2253
        %2278 = vmatprep.subr.bf16.mxu0 0
        %2279 = vmatpush1.bf16.xpose.msra.mxu0 %v2256
        %2280 = vmatprep.subr.bf16.mxu0 0
        %2281 = vmatpush1.bf16.xpose.msra.mxu0 %v2259
        %2282 = vmatprep.subr.bf16.mxu0 0
        %2283 = vmatpush1.bf16.xpose.msra.mxu0 %v2262
        %2284 = vmatprep.subr.bf16.mxu0 0
        %2285 = vmatpush1.bf16.xpose.msra.mxu0 %v2265
        %2286 = vmatprep.subr.bf16.mxu0 0
        %2287 = vmatpush1.bf16.xpose.msra.mxu0 %v2268
        %2288 = vmatprep.subr.bf16.mxu0 0
        %2289 = vmatpush1.bf16.xpose.msra.mxu0 %v2271
        %2290 = vmatprep.subr.bf16.mxu0 0
        %2291 = vmatpush1.bf16.xpose.msra.mxu0 %v2274
        %2292 = vmatprep.subr.bf16.mxu0 0
        %2293 = vmatpush1.bf16.xpose.msra.mxu0 0
        %2294 = vmatprep.subr.bf16.mxu0 0
        %2295 = vmatpush1.bf16.xpose.msra.mxu0 0
        %2296 = vmatprep.subr.bf16.mxu0 0
        %2297 = vmatpush1.bf16.xpose.msra.mxu0 0
        %2298 = vmatprep.subr.bf16.mxu0 0
        %2299 = vmatpush1.bf16.xpose.msra.mxu0 0
        %2300 = vmatprep.subr.bf16.mxu0 0
        %2301 = vmatpush1.bf16.xpose.msra.mxu0 0
        %2302 = vmatprep.subr.bf16.mxu0 0
        %2303 = vmatpush1.bf16.xpose.msra.mxu0 0
        %2304 = vmatprep.subr.bf16.mxu0 0
        %2305 = vmatpush1.bf16.xpose.msra.mxu0 0
        %2306 = vmatprep.subr.bf16.mxu0 0
        %2307 = vmatpush1.bf16.xpose.msra.mxu0 0
        %2308 = vmatprep.mubr.bf16.mxu0 0
        %2309 = vmatmul.mubr.bf16.gmra.mrb[0].mxu0 %v2229
        %v2310 = vpop.f32.mrb[0].mxu0
        %v2311 = vadd.f32 0.0, %v2310
        %v2312 = vpop.f32.mrb[0].mxu0
        %v2313 = vpop.f32.mrb[0].mxu0
        %v2314 = vadd.f32 0.0, %v2313
        %v2315 = vpop.f32.mrb[0].mxu0
        %2316 = vmatprep.mubr.bf16.mxu0 0
        %2317 = vmatmul.mubr.bf16.gmra.mrb[0].mxu0 %v2232
        %v2318 = vpop.f32.mrb[0].mxu0
        %v2319 = vadd.f32 0.0, %v2318
        %v2320 = vpop.f32.mrb[0].mxu0
        %v2321 = vpop.f32.mrb[0].mxu0
        %v2322 = vadd.f32 0.0, %v2321
        %v2323 = vpop.f32.mrb[0].mxu0
        %2324 = vmatprep.mubr.bf16.mxu0 0
        %2325 = vmatmul.mubr.bf16.gmra.mrb[0].mxu0 %v2235
        %v2326 = vpop.f32.mrb[0].mxu0
        %v2327 = vadd.f32 0.0, %v2326
        %v2328 = vpop.f32.mrb[0].mxu0
        %v2329 = vpop.f32.mrb[0].mxu0
        %v2330 = vadd.f32 0.0, %v2329
        %v2331 = vpop.f32.mrb[0].mxu0
        %2332 = vmatprep.mubr.bf16.mxu0 0
        %2333 = vmatmul.mubr.bf16.gmra.mrb[0].mxu0 %v2238
        %v2334 = vpop.f32.mrb[0].mxu0
        %v2335 = vadd.f32 0.0, %v2334
        %v2336 = vpop.f32.mrb[0].mxu0
        %v2337 = vpop.f32.mrb[0].mxu0
        %v2338 = vadd.f32 0.0, %v2337
        %v2339 = vpop.f32.mrb[0].mxu0
        %2340 = vmatprep.mubr.bf16.mxu0 0
        %2341 = vmatmul.mubr.bf16.gmra.mrb[0].mxu0 %v2241
        %v2342 = vpop.f32.mrb[0].mxu0
        %v2343 = vadd.f32 0.0, %v2342
        %v2344 = vpop.f32.mrb[0].mxu0
        %v2345 = vpop.f32.mrb[0].mxu0
        %v2346 = vadd.f32 0.0, %v2345
        %v2347 = vpop.f32.mrb[0].mxu0
        %2348 = vmatprep.mubr.bf16.mxu0 0
        %2349 = vmatmul.mubr.bf16.gmra.mrb[0].mxu0 %v2244
        %v2350 = vpop.f32.mrb[0].mxu0
        %v2351 = vadd.f32 0.0, %v2350
        %v2352 = vpop.f32.mrb[0].mxu0
        %v2353 = vpop.f32.mrb[0].mxu0
        %v2354 = vadd.f32 0.0, %v2353
        %v2355 = vpop.f32.mrb[0].mxu0
        %2356 = vmatprep.mubr.bf16.mxu0 0
        %2357 = vmatmul.mubr.bf16.gmra.mrb[0].mxu0 %v2247
        %v2358 = vpop.f32.mrb[0].mxu0
        %v2359 = vadd.f32 0.0, %v2358
        %v2360 = vpop.f32.mrb[0].mxu0
        %v2361 = vpop.f32.mrb[0].mxu0
        %v2362 = vadd.f32 0.0, %v2361
        %v2363 = vpop.f32.mrb[0].mxu0
        %2364 = vmatprep.mubr.bf16.mxu0 0
        %2365 = vmatmul.mubr.bf16.gmra.mrb[0].mxu0 %v2250
        %v2366 = vpop.f32.mrb[0].mxu0
        %v2367 = vadd.f32 0.0, %v2366
        %v2368 = vpop.f32.mrb[0].mxu0
        %v2369 = vpop.f32.mrb[0].mxu0
        %v2370 = vadd.f32 0.0, %v2369
        %v2371 = vpop.f32.mrb[0].mxu0
        %2372 = vdwg.mxu0
        %v2373 = vmul.f32 %v2311, 0.17677669
        %v2374 = vmul.f32 %v2314, 0.17677669
        %v2375 = vmul.f32 %v2319, 0.17677669
        %v2376 = vmul.f32 %v2322, 0.17677669
        %v2377 = vmul.f32 %v2327, 0.17677669
        %v2378 = vmul.f32 %v2330, 0.17677669
        %v2379 = vmul.f32 %v2335, 0.17677669
        %v2380 = vmul.f32 %v2338, 0.17677669
        %v2381 = vmul.f32 %v2343, 0.17677669
        %v2382 = vmul.f32 %v2346, 0.17677669
        %v2383 = vmul.f32 %v2351, 0.17677669
        %v2384 = vmul.f32 %v2354, 0.17677669
        %v2385 = vmul.f32 %v2359, 0.17677669
        %v2386 = vmul.f32 %v2362, 0.17677669
        %v2387 = vmul.f32 %v2367, 0.17677669
        %v2388 = vmul.f32 %v2370, 0.17677669
        %2389 = vmax.xlane.f32.xlu0 %v2373
        %v2390 = vpop.xlane.xlu0 %2389
        %2391 = vmax.xlane.f32.xlu0 %v2374
        %v2392 = vpop.xlane.xlu0 %2391
        %2393 = vmax.xlane.f32.xlu0 %v2375
        %v2394 = vpop.xlane.xlu0 %2393
        %2395 = vmax.xlane.f32.xlu0 %v2376
        %v2396 = vpop.xlane.xlu0 %2395
        %2397 = vmax.xlane.f32.xlu0 %v2377
        %v2398 = vpop.xlane.xlu0 %2397
        %2399 = vmax.xlane.f32.xlu0 %v2378
        %v2400 = vpop.xlane.xlu0 %2399
        %2401 = vmax.xlane.f32.xlu0 %v2379
        %v2402 = vpop.xlane.xlu0 %2401
        %2403 = vmax.xlane.f32.xlu0 %v2380
        %v2404 = vpop.xlane.xlu0 %2403
        %2405 = vmax.xlane.f32.xlu0 %v2381
        %v2406 = vpop.xlane.xlu0 %2405
        %2407 = vmax.xlane.f32.xlu0 %v2382
        %v2408 = vpop.xlane.xlu0 %2407
        %2409 = vmax.xlane.f32.xlu0 %v2383
        %v2410 = vpop.xlane.xlu0 %2409
        %2411 = vmax.xlane.f32.xlu0 %v2384
        %v2412 = vpop.xlane.xlu0 %2411
        %2413 = vmax.xlane.f32.xlu0 %v2385
        %v2414 = vpop.xlane.xlu0 %2413
        %2415 = vmax.xlane.f32.xlu0 %v2386
        %v2416 = vpop.xlane.xlu0 %2415
        %2417 = vmax.xlane.f32.xlu0 %v2387
        %v2418 = vpop.xlane.xlu0 %2417
        %2419 = vmax.xlane.f32.xlu0 %v2388
        %v2420 = vpop.xlane.xlu0 %2419
        %v2421 = vsub.f32 %v2373, %v2390
        %v2422 = vsub.f32 %v2374, %v2392
        %v2423 = vsub.f32 %v2375, %v2394
        %v2424 = vsub.f32 %v2376, %v2396
        %v2425 = vsub.f32 %v2377, %v2398
        %v2426 = vsub.f32 %v2378, %v2400
        %v2427 = vsub.f32 %v2379, %v2402
        %v2428 = vsub.f32 %v2380, %v2404
        %v2429 = vsub.f32 %v2381, %v2406
        %v2430 = vsub.f32 %v2382, %v2408
        %v2431 = vsub.f32 %v2383, %v2410
        %v2432 = vsub.f32 %v2384, %v2412
        %v2433 = vsub.f32 %v2385, %v2414
        %v2434 = vsub.f32 %v2386, %v2416
        %v2435 = vsub.f32 %v2387, %v2418
        %v2436 = vsub.f32 %v2388, %v2420
        %v2437 = vmul.f32 %v2421, 1.442695
        %v2438 = vpow.pop %v2437
        %v2439 = vmul.f32 %v2422, 1.442695
        %v2440 = vpow.pop %v2439
        %v2441 = vmul.f32 %v2423, 1.442695
        %v2442 = vpow.pop %v2441
        %v2443 = vmul.f32 %v2424, 1.442695
        %v2444 = vpow.pop %v2443
        %v2445 = vmul.f32 %v2425, 1.442695
        %v2446 = vpow.pop %v2445
        %v2447 = vmul.f32 %v2426, 1.442695
        %v2448 = vpow.pop %v2447
        %v2449 = vmul.f32 %v2427, 1.442695
        %v2450 = vpow.pop %v2449
        %v2451 = vmul.f32 %v2428, 1.442695
        %v2452 = vpow.pop %v2451
        %v2453 = vmul.f32 %v2429, 1.442695
        %v2454 = vpow.pop %v2453
        %v2455 = vmul.f32 %v2430, 1.442695
        %v2456 = vpow.pop %v2455
        %v2457 = vmul.f32 %v2431, 1.442695
        %v2458 = vpow.pop %v2457
        %v2459 = vmul.f32 %v2432, 1.442695
        %v2460 = vpow.pop %v2459
        %v2461 = vmul.f32 %v2433, 1.442695
        %v2462 = vpow.pop %v2461
        %v2463 = vmul.f32 %v2434, 1.442695
        %v2464 = vpow.pop %v2463
        %v2465 = vmul.f32 %v2435, 1.442695
        %v2466 = vpow.pop %v2465
        %v2467 = vmul.f32 %v2436, 1.442695
        %v2468 = vpow.pop %v2467
        %2469 = vadd.xlane.f32.xlu0 %v2438
        %v2470 = vpop.xlane.xlu0 %2469
        %2471 = vadd.xlane.f32.xlu0 %v2440
        %v2472 = vpop.xlane.xlu0 %2471
        %2473 = vadd.xlane.f32.xlu0 %v2442
        %v2474 = vpop.xlane.xlu0 %2473
        %2475 = vadd.xlane.f32.xlu0 %v2444
        %v2476 = vpop.xlane.xlu0 %2475
        %2477 = vadd.xlane.f32.xlu0 %v2446
        %v2478 = vpop.xlane.xlu0 %2477
        %2479 = vadd.xlane.f32.xlu0 %v2448
        %v2480 = vpop.xlane.xlu0 %2479
        %2481 = vadd.xlane.f32.xlu0 %v2450
        %v2482 = vpop.xlane.xlu0 %2481
        %2483 = vadd.xlane.f32.xlu0 %v2452
        %v2484 = vpop.xlane.xlu0 %2483
        %2485 = vadd.xlane.f32.xlu0 %v2454
        %v2486 = vpop.xlane.xlu0 %2485
        %2487 = vadd.xlane.f32.xlu0 %v2456
        %v2488 = vpop.xlane.xlu0 %2487
        %2489 = vadd.xlane.f32.xlu0 %v2458
        %v2490 = vpop.xlane.xlu0 %2489
        %2491 = vadd.xlane.f32.xlu0 %v2460
        %v2492 = vpop.xlane.xlu0 %2491
        %2493 = vadd.xlane.f32.xlu0 %v2462
        %v2494 = vpop.xlane.xlu0 %2493
        %2495 = vadd.xlane.f32.xlu0 %v2464
        %v2496 = vpop.xlane.xlu0 %2495
        %2497 = vadd.xlane.f32.xlu0 %v2466
        %v2498 = vpop.xlane.xlu0 %2497
        %2499 = vadd.xlane.f32.xlu0 %v2468
        %v2500 = vpop.xlane.xlu0 %2499
        %v2501 = vrcp.pop %v2470
        %v2502 = vrcp.pop %v2472
        %v2503 = vrcp.pop %v2474
        %v2504 = vrcp.pop %v2476
        %v2505 = vrcp.pop %v2478
        %v2506 = vrcp.pop %v2480
        %v2507 = vrcp.pop %v2482
        %v2508 = vrcp.pop %v2484
        %v2509 = vrcp.pop %v2486
        %v2510 = vrcp.pop %v2488
        %v2511 = vrcp.pop %v2490
        %v2512 = vrcp.pop %v2492
        %v2513 = vrcp.pop %v2494
        %v2514 = vrcp.pop %v2496
        %v2515 = vrcp.pop %v2498
        %v2516 = vrcp.pop %v2500
        %v2517 = vmul.f32 %v2438, %v2501
        %v2518 = vmul.f32 %v2440, %v2502
        %v2519 = vmul.f32 %v2442, %v2503
        %v2520 = vmul.f32 %v2444, %v2504
        %v2521 = vmul.f32 %v2446, %v2505
        %v2522 = vmul.f32 %v2448, %v2506
        %v2523 = vmul.f32 %v2450, %v2507
        %v2524 = vmul.f32 %v2452, %v2508
        %v2525 = vmul.f32 %v2454, %v2509
        %v2526 = vmul.f32 %v2456, %v2510
        %v2527 = vmul.f32 %v2458, %v2511
        %v2528 = vmul.f32 %v2460, %v2512
        %v2529 = vmul.f32 %v2462, %v2513
        %v2530 = vmul.f32 %v2464, %v2514
        %v2531 = vmul.f32 %v2466, %v2515
        %v2532 = vmul.f32 %v2468, %v2516
        %v2533 = vpack.c.bf16 %v2518, %v2517
        %v2534 = vpack.c.bf16 %v2520, %v2519
        %v2535 = vpack.c.bf16 %v2522, %v2521
        %v2536 = vpack.c.bf16 %v2524, %v2523
        %v2537 = vpack.c.bf16 %v2526, %v2525
        %v2538 = vpack.c.bf16 %v2528, %v2527
        %v2539 = vpack.c.bf16 %v2530, %v2529
        %v2540 = vpack.c.bf16 %v2532, %v2531
        %2541 = vrot.lane.b32.xlu0 %v990, 64
        %v2542 = vpop.permute.xlu0 %2541
        %2543 = vrot.lane.b32.xlu0 %v992, 64
        %v2544 = vpop.permute.xlu0 %2543
        %2545 = vrot.lane.b32.xlu0 %v994, 64
        %v2546 = vpop.permute.xlu0 %2545
        %2547 = vrot.lane.b32.xlu0 %v996, 64
        %v2548 = vpop.permute.xlu0 %2547
        %2549 = vrot.lane.b32.xlu0 %v998, 64
        %v2550 = vpop.permute.xlu0 %2549
        %2551 = vrot.lane.b32.xlu0 %v1000, 64
        %v2552 = vpop.permute.xlu0 %2551
        %2553 = vrot.lane.b32.xlu0 %v1002, 64
        %v2554 = vpop.permute.xlu0 %2553
        %2555 = vrot.lane.b32.xlu0 %v1004, 64
        %v2556 = vpop.permute.xlu0 %2555
        %2565 = vmatprep.subr.bf16.mxu0 0
        %2566 = vmatpush1.bf16.msra.mxu0 %v2542
        %2567 = vmatprep.subr.bf16.mxu0 0
        %2568 = vmatpush1.bf16.msra.mxu0 %v2544
        %2569 = vmatprep.subr.bf16.mxu0 0
        %2570 = vmatpush1.bf16.msra.mxu0 %v2546
        %2571 = vmatprep.subr.bf16.mxu0 0
        %2572 = vmatpush1.bf16.msra.mxu0 %v2548
        %2573 = vmatprep.subr.bf16.mxu0 0
        %2574 = vmatpush1.bf16.msra.mxu0 %v2550
        %2575 = vmatprep.subr.bf16.mxu0 0
        %2576 = vmatpush1.bf16.msra.mxu0 %v2552
        %2577 = vmatprep.subr.bf16.mxu0 0
        %2578 = vmatpush1.bf16.msra.mxu0 %v2554
        %2579 = vmatprep.subr.bf16.mxu0 0
        %2580 = vmatpush1.bf16.msra.mxu0 %v2556
        %2581 = vmatprep.subr.bf16.mxu0 0
        %2582 = vmatpush1.bf16.msra.mxu0 0
        %2583 = vmatprep.subr.bf16.mxu0 0
        %2584 = vmatpush1.bf16.msra.mxu0 0
        %2585 = vmatprep.subr.bf16.mxu0 0
        %2586 = vmatpush1.bf16.msra.mxu0 0
        %2587 = vmatprep.subr.bf16.mxu0 0
        %2588 = vmatpush1.bf16.msra.mxu0 0
        %2589 = vmatprep.subr.bf16.mxu0 0
        %2590 = vmatpush1.bf16.msra.mxu0 0
        %2591 = vmatprep.subr.bf16.mxu0 0
        %2592 = vmatpush1.bf16.msra.mxu0 0
        %2593 = vmatprep.subr.bf16.mxu0 0
        %2594 = vmatpush1.bf16.msra.mxu0 0
        %2595 = vmatprep.subr.bf16.mxu0 0
        %2596 = vmatpush1.bf16.msra.mxu0 0
        %2597 = vmatprep.mubr.bf16.mxu0 0
        %2598 = vmatmul.mubr.bf16.gmra.mrb[0].mxu0 %v2533
        %v2599 = vpop.f32.mrb[0].mxu0
        %v2600 = vadd.f32 0.0, %v2599
        %v2601 = vpop.f32.mrb[0].mxu0
        %v2602 = vpop.f32.mrb[0].mxu0
        %v2603 = vadd.f32 0.0, %v2602
        %v2604 = vpop.f32.mrb[0].mxu0
        %2605 = vmatprep.mubr.bf16.mxu0 0
        %2606 = vmatmul.mubr.bf16.gmra.mrb[0].mxu0 %v2534
        %v2607 = vpop.f32.mrb[0].mxu0
        %v2608 = vadd.f32 0.0, %v2607
        %v2609 = vpop.f32.mrb[0].mxu0
        %v2610 = vpop.f32.mrb[0].mxu0
        %v2611 = vadd.f32 0.0, %v2610
        %v2612 = vpop.f32.mrb[0].mxu0
        %2613 = vmatprep.mubr.bf16.mxu0 0
        %2614 = vmatmul.mubr.bf16.gmra.mrb[0].mxu0 %v2535
        %v2615 = vpop.f32.mrb[0].mxu0
        %v2616 = vadd.f32 0.0, %v2615
        %v2617 = vpop.f32.mrb[0].mxu0
        %v2618 = vpop.f32.mrb[0].mxu0
        %v2619 = vadd.f32 0.0, %v2618
        %v2620 = vpop.f32.mrb[0].mxu0
        %2621 = vmatprep.mubr.bf16.mxu0 0
        %2622 = vmatmul.mubr.bf16.gmra.mrb[0].mxu0 %v2536
        %v2623 = vpop.f32.mrb[0].mxu0
        %v2624 = vadd.f32 0.0, %v2623
        %v2625 = vpop.f32.mrb[0].mxu0
        %v2626 = vpop.f32.mrb[0].mxu0
        %v2627 = vadd.f32 0.0, %v2626
        %v2628 = vpop.f32.mrb[0].mxu0
        %2629 = vmatprep.mubr.bf16.mxu0 0
        %2630 = vmatmul.mubr.bf16.gmra.mrb[0].mxu0 %v2537
        %v2631 = vpop.f32.mrb[0].mxu0
        %v2632 = vadd.f32 0.0, %v2631
        %v2633 = vpop.f32.mrb[0].mxu0
        %v2634 = vpop.f32.mrb[0].mxu0
        %v2635 = vadd.f32 0.0, %v2634
        %v2636 = vpop.f32.mrb[0].mxu0
        %2637 = vmatprep.mubr.bf16.mxu0 0
        %2638 = vmatmul.mubr.bf16.gmra.mrb[0].mxu0 %v2538
        %v2639 = vpop.f32.mrb[0].mxu0
        %v2640 = vadd.f32 0.0, %v2639
        %v2641 = vpop.f32.mrb[0].mxu0
        %v2642 = vpop.f32.mrb[0].mxu0
        %v2643 = vadd.f32 0.0, %v2642
        %v2644 = vpop.f32.mrb[0].mxu0
        %2645 = vmatprep.mubr.bf16.mxu0 0
        %2646 = vmatmul.mubr.bf16.gmra.mrb[0].mxu0 %v2539
        %v2647 = vpop.f32.mrb[0].mxu0
        %v2648 = vadd.f32 0.0, %v2647
        %v2649 = vpop.f32.mrb[0].mxu0
        %v2650 = vpop.f32.mrb[0].mxu0
        %v2651 = vadd.f32 0.0, %v2650
        %v2652 = vpop.f32.mrb[0].mxu0
        %2653 = vmatprep.mubr.bf16.mxu0 0
        %2654 = vmatmul.mubr.bf16.gmra.mrb[0].mxu0 %v2540
        %v2655 = vpop.f32.mrb[0].mxu0
        %v2656 = vadd.f32 0.0, %v2655
        %v2657 = vpop.f32.mrb[0].mxu0
        %v2658 = vpop.f32.mrb[0].mxu0
        %v2659 = vadd.f32 0.0, %v2658
        %v2660 = vpop.f32.mrb[0].mxu0
        %2661 = vdwg.mxu0
        %v2662 = vpack.c.bf16 %v2603, %v2600
        %v2663 = vpack.c.bf16 %v2611, %v2608
        %v2664 = vpack.c.bf16 %v2619, %v2616
        %v2665 = vpack.c.bf16 %v2627, %v2624
        %v2666 = vpack.c.bf16 %v2635, %v2632
        %v2667 = vpack.c.bf16 %v2643, %v2640
        %v2668 = vpack.c.bf16 %v2651, %v2648
        %v2669 = vpack.c.bf16 %v2659, %v2656
        %v2670 = vld [vmem:[#allocation11 + $0x20] sm:$0xf]
        %v2671 = vld [vmem:[#allocation11 + $0x24] sm:$0xf]
        %v2672 = vld [vmem:[#allocation11 + $0x28] sm:$0xf]
        %v2673 = vld [vmem:[#allocation11 + $0x2c] sm:$0xf]
        %v2678 = vunpack.c.l.b16 %v2670
        %v2679 = vunpack.c.l.b16 %v2671
        %v2680 = vunpack.c.l.b16 %v2672
        %v2681 = vunpack.c.l.b16 %v2673
        %v2682 = vpack.c.b16 %v2679, %v2678
        %v2683 = vpack.c.b16 %v2681, %v2680
        %v2687 = vsel %vm1005, %v2662, 0
        %v2690 = vsel %vm1005, %v2663, 0
        %v2693 = vsel %vm1005, %v2664, 0
        %v2696 = vsel %vm1005, %v2665, 0
        %v2699 = vsel %vm1005, %v2666, 0
        %v2702 = vsel %vm1005, %v2667, 0
        %v2705 = vsel %vm1005, %v2668, 0
        %v2708 = vsel %vm1005, %v2669, 0
        %2710 = vmatprep.subr.bf16.mxu0 0
        %2711 = vmatpush1.bf16.msra.mxu0 %v2682
        %2712 = vmatprep.subr.bf16.mxu0 0
        %2713 = vmatpush1.bf16.msra.mxu0 %v2683
        %2714 = vmatprep.subr.bf16.mxu0 0
        %2715 = vmatpush1.bf16.msra.mxu0 0
        %2716 = vmatprep.subr.bf16.mxu0 0
        %2717 = vmatpush1.bf16.msra.mxu0 0
        %2718 = vmatprep.subr.bf16.mxu0 0
        %2719 = vmatpush1.bf16.msra.mxu0 0
        %2720 = vmatprep.subr.bf16.mxu0 0
        %2721 = vmatpush1.bf16.msra.mxu0 0
        %2722 = vmatprep.subr.bf16.mxu0 0
        %2723 = vmatpush1.bf16.msra.mxu0 0
        %2724 = vmatprep.subr.bf16.mxu0 0
        %2725 = vmatpush1.bf16.msra.mxu0 0
        %2726 = vmatprep.subr.bf16.mxu0 0
        %2727 = vmatpush1.bf16.msra.mxu0 0
        %2728 = vmatprep.subr.bf16.mxu0 0
        %2729 = vmatpush1.bf16.msra.mxu0 0
        %2730 = vmatprep.subr.bf16.mxu0 0
        %2731 = vmatpush1.bf16.msra.mxu0 0
        %2732 = vmatprep.subr.bf16.mxu0 0
        %2733 = vmatpush1.bf16.msra.mxu0 0
        %2734 = vmatprep.subr.bf16.mxu0 0
        %2735 = vmatpush1.bf16.msra.mxu0 0
        %2736 = vmatprep.subr.bf16.mxu0 0
        %2737 = vmatpush1.bf16.msra.mxu0 0
        %2738 = vmatprep.subr.bf16.mxu0 0
        %2739 = vmatpush1.bf16.msra.mxu0 0
        %2740 = vmatprep.subr.bf16.mxu0 0
        %2741 = vmatpush1.bf16.msra.mxu0 0
        %2742 = vmatprep.mubr.bf16.mxu0 0
        %2743 = vmatmul.mubr.bf16.gmra.mrb[0].mxu0 %v2687
        %v2744 = vpop.f32.mrb[0].mxu0
        %v2745 = vadd.f32 0.0, %v2744
        %v2746 = vpop.f32.mrb[0].mxu0
        %v2747 = vpop.f32.mrb[0].mxu0
        %v2748 = vadd.f32 0.0, %v2747
        %v2749 = vpop.f32.mrb[0].mxu0
        %2750 = vmatprep.mubr.bf16.mxu0 0
        %2751 = vmatmul.mubr.bf16.gmra.mrb[0].mxu0 %v2690
        %v2752 = vpop.f32.mrb[0].mxu0
        %v2753 = vadd.f32 0.0, %v2752
        %v2754 = vpop.f32.mrb[0].mxu0
        %v2755 = vpop.f32.mrb[0].mxu0
        %v2756 = vadd.f32 0.0, %v2755
        %v2757 = vpop.f32.mrb[0].mxu0
        %2758 = vmatprep.mubr.bf16.mxu0 0
        %2759 = vmatmul.mubr.bf16.gmra.mrb[0].mxu0 %v2693
        %v2760 = vpop.f32.mrb[0].mxu0
        %v2761 = vadd.f32 0.0, %v2760
        %v2762 = vpop.f32.mrb[0].mxu0
        %v2763 = vpop.f32.mrb[0].mxu0
        %v2764 = vadd.f32 0.0, %v2763
        %v2765 = vpop.f32.mrb[0].mxu0
        %2766 = vmatprep.mubr.bf16.mxu0 0
        %2767 = vmatmul.mubr.bf16.gmra.mrb[0].mxu0 %v2696
        %v2768 = vpop.f32.mrb[0].mxu0
        %v2769 = vadd.f32 0.0, %v2768
        %v2770 = vpop.f32.mrb[0].mxu0
        %v2771 = vpop.f32.mrb[0].mxu0
        %v2772 = vadd.f32 0.0, %v2771
        %v2773 = vpop.f32.mrb[0].mxu0
        %2774 = vmatprep.mubr.bf16.mxu0 0
        %2775 = vmatmul.mubr.bf16.gmra.mrb[0].mxu0 %v2699
        %v2776 = vpop.f32.mrb[0].mxu0
        %v2777 = vadd.f32 0.0, %v2776
        %v2778 = vpop.f32.mrb[0].mxu0
        %v2779 = vpop.f32.mrb[0].mxu0
        %v2780 = vadd.f32 0.0, %v2779
        %v2781 = vpop.f32.mrb[0].mxu0
        %2782 = vmatprep.mubr.bf16.mxu0 0
        %2783 = vmatmul.mubr.bf16.gmra.mrb[0].mxu0 %v2702
        %v2784 = vpop.f32.mrb[0].mxu0
        %v2785 = vadd.f32 0.0, %v2784
        %v2786 = vpop.f32.mrb[0].mxu0
        %v2787 = vpop.f32.mrb[0].mxu0
        %v2788 = vadd.f32 0.0, %v2787
        %v2789 = vpop.f32.mrb[0].mxu0
        %2790 = vmatprep.mubr.bf16.mxu0 0
        %2791 = vmatmul.mubr.bf16.gmra.mrb[0].mxu0 %v2705
        %v2792 = vpop.f32.mrb[0].mxu0
        %v2793 = vadd.f32 0.0, %v2792
        %v2794 = vpop.f32.mrb[0].mxu0
        %v2795 = vpop.f32.mrb[0].mxu0
        %v2796 = vadd.f32 0.0, %v2795
        %v2797 = vpop.f32.mrb[0].mxu0
        %2798 = vmatprep.mubr.bf16.mxu0 0
        %2799 = vmatmul.mubr.bf16.gmra.mrb[0].mxu0 %v2708
        %v2800 = vpop.f32.mrb[0].mxu0
        %v2801 = vadd.f32 0.0, %v2800
        %v2802 = vpop.f32.mrb[0].mxu0
        %v2803 = vpop.f32.mrb[0].mxu0
        %v2804 = vadd.f32 0.0, %v2803
        %v2805 = vpop.f32.mrb[0].mxu0
        %2806 = vdwg.mxu0
        %v2807 = vadd.f32 %v2134, %v2745
        %v2808 = vadd.f32 %v2137, %v2748
        %v2809 = vadd.f32 %v2142, %v2753
        %v2810 = vadd.f32 %v2145, %v2756
        %v2811 = vadd.f32 %v2150, %v2761
        %v2812 = vadd.f32 %v2153, %v2764
        %v2813 = vadd.f32 %v2158, %v2769
        %v2814 = vadd.f32 %v2161, %v2772
        %v2815 = vadd.f32 %v2166, %v2777
        %v2816 = vadd.f32 %v2169, %v2780
        %v2817 = vadd.f32 %v2174, %v2785
        %v2818 = vadd.f32 %v2177, %v2788
        %v2819 = vadd.f32 %v2182, %v2793
        %v2820 = vadd.f32 %v2185, %v2796
        %v2821 = vadd.f32 %v2190, %v2801
        %v2822 = vadd.f32 %v2193, %v2804
        %2823 = vrot.lane.b32.xlu0 %v981, 32
        %v2824 = vpop.permute.xlu0 %2823
        %2825 = vrot.lane.b32.xlu0 %v982, 32
        %v2826 = vpop.permute.xlu0 %2825
        %2827 = vrot.lane.b32.xlu0 %v983, 32
        %v2828 = vpop.permute.xlu0 %2827
        %2829 = vrot.lane.b32.xlu0 %v984, 32
        %v2830 = vpop.permute.xlu0 %2829
        %2831 = vrot.lane.b32.xlu0 %v985, 32
        %v2832 = vpop.permute.xlu0 %2831
        %2833 = vrot.lane.b32.xlu0 %v986, 32
        %v2834 = vpop.permute.xlu0 %2833
        %2835 = vrot.lane.b32.xlu0 %v987, 32
        %v2836 = vpop.permute.xlu0 %2835
        %2837 = vrot.lane.b32.xlu0 %v988, 32
        %v2838 = vpop.permute.xlu0 %2837
        %2839 = vrot.lane.b32.xlu0 %v989, 32
        %v2840 = vpop.permute.xlu0 %2839
        %2841 = vrot.lane.b32.xlu0 %v991, 32
        %v2842 = vpop.permute.xlu0 %2841
        %2843 = vrot.lane.b32.xlu0 %v993, 32
        %v2844 = vpop.permute.xlu0 %2843
        %2845 = vrot.lane.b32.xlu0 %v995, 32
        %v2846 = vpop.permute.xlu0 %2845
        %2847 = vrot.lane.b32.xlu0 %v997, 32
        %v2848 = vpop.permute.xlu0 %2847
        %2849 = vrot.lane.b32.xlu0 %v999, 32
        %v2850 = vpop.permute.xlu0 %2849
        %2851 = vrot.lane.b32.xlu0 %v1001, 32
        %v2852 = vpop.permute.xlu0 %2851
        %2853 = vrot.lane.b32.xlu0 %v1003, 32
        %v2854 = vpop.permute.xlu0 %2853
        %v2856 = vsel %vm1005, %v2824, 0
        %v2859 = vsel %vm1005, %v2826, 0
        %v2862 = vsel %vm1005, %v2828, 0
        %v2865 = vsel %vm1005, %v2830, 0
        %v2868 = vsel %vm1005, %v2832, 0
        %v2871 = vsel %vm1005, %v2834, 0
        %v2874 = vsel %vm1005, %v2836, 0
        %v2877 = vsel %vm1005, %v2838, 0
        %v2880 = vsel %vm1005, %v2840, 0
        %v2883 = vsel %vm1005, %v2842, 0
        %v2886 = vsel %vm1005, %v2844, 0
        %v2889 = vsel %vm1005, %v2846, 0
        %v2892 = vsel %vm1005, %v2848, 0
        %v2895 = vsel %vm1005, %v2850, 0
        %v2898 = vsel %vm1005, %v2852, 0
        %v2901 = vsel %vm1005, %v2854, 0
        %2903 = vmatprep.subr.bf16.mxu0 0
        %2904 = vmatpush1.bf16.xpose.msra.mxu0 %v2880
        %2905 = vmatprep.subr.bf16.mxu0 0
        %2906 = vmatpush1.bf16.xpose.msra.mxu0 %v2883
        %2907 = vmatprep.subr.bf16.mxu0 0
        %2908 = vmatpush1.bf16.xpose.msra.mxu0 %v2886
        %2909 = vmatprep.subr.bf16.mxu0 0
        %2910 = vmatpush1.bf16.xpose.msra.mxu0 %v2889
        %2911 = vmatprep.subr.bf16.mxu0 0
        %2912 = vmatpush1.bf16.xpose.msra.mxu0 %v2892
        %2913 = vmatprep.subr.bf16.mxu0 0
        %2914 = vmatpush1.bf16.xpose.msra.mxu0 %v2895
        %2915 = vmatprep.subr.bf16.mxu0 0
        %2916 = vmatpush1.bf16.xpose.msra.mxu0 %v2898
        %2917 = vmatprep.subr.bf16.mxu0 0
        %2918 = vmatpush1.bf16.xpose.msra.mxu0 %v2901
        %2919 = vmatprep.subr.bf16.mxu0 0
        %2920 = vmatpush1.bf16.xpose.msra.mxu0 0
        %2921 = vmatprep.subr.bf16.mxu0 0
        %2922 = vmatpush1.bf16.xpose.msra.mxu0 0
        %2923 = vmatprep.subr.bf16.mxu0 0
        %2924 = vmatpush1.bf16.xpose.msra.mxu0 0
        %2925 = vmatprep.subr.bf16.mxu0 0
        %2926 = vmatpush1.bf16.xpose.msra.mxu0 0
        %2927 = vmatprep.subr.bf16.mxu0 0
        %2928 = vmatpush1.bf16.xpose.msra.mxu0 0
        %2929 = vmatprep.subr.bf16.mxu0 0
        %2930 = vmatpush1.bf16.xpose.msra.mxu0 0
        %2931 = vmatprep.subr.bf16.mxu0 0
        %2932 = vmatpush1.bf16.xpose.msra.mxu0 0
        %2933 = vmatprep.subr.bf16.mxu0 0
        %2934 = vmatpush1.bf16.xpose.msra.mxu0 0
        %2935 = vmatprep.mubr.bf16.mxu0 0
        %2936 = vmatmul.mubr.bf16.gmra.mrb[0].mxu0 %v2856
        %v2937 = vpop.f32.mrb[0].mxu0
        %v2938 = vadd.f32 0.0, %v2937
        %v2939 = vpop.f32.mrb[0].mxu0
        %v2940 = vpop.f32.mrb[0].mxu0
        %v2941 = vadd.f32 0.0, %v2940
        %v2942 = vpop.f32.mrb[0].mxu0
        %2943 = vmatprep.mubr.bf16.mxu0 0
        %2944 = vmatmul.mubr.bf16.gmra.mrb[0].mxu0 %v2859
        %v2945 = vpop.f32.mrb[0].mxu0
        %v2946 = vadd.f32 0.0, %v2945
        %v2947 = vpop.f32.mrb[0].mxu0
        %v2948 = vpop.f32.mrb[0].mxu0
        %v2949 = vadd.f32 0.0, %v2948
        %v2950 = vpop.f32.mrb[0].mxu0
        %2951 = vmatprep.mubr.bf16.mxu0 0
        %2952 = vmatmul.mubr.bf16.gmra.mrb[0].mxu0 %v2862
        %v2953 = vpop.f32.mrb[0].mxu0
        %v2954 = vadd.f32 0.0, %v2953
        %v2955 = vpop.f32.mrb[0].mxu0
        %v2956 = vpop.f32.mrb[0].mxu0
        %v2957 = vadd.f32 0.0, %v2956
        %v2958 = vpop.f32.mrb[0].mxu0
        %2959 = vmatprep.mubr.bf16.mxu0 0
        %2960 = vmatmul.mubr.bf16.gmra.mrb[0].mxu0 %v2865
        %v2961 = vpop.f32.mrb[0].mxu0
        %v2962 = vadd.f32 0.0, %v2961
        %v2963 = vpop.f32.mrb[0].mxu0
        %v2964 = vpop.f32.mrb[0].mxu0
        %v2965 = vadd.f32 0.0, %v2964
        %v2966 = vpop.f32.mrb[0].mxu0
        %2967 = vmatprep.mubr.bf16.mxu0 0
        %2968 = vmatmul.mubr.bf16.gmra.mrb[0].mxu0 %v2868
        %v2969 = vpop.f32.mrb[0].mxu0
        %v2970 = vadd.f32 0.0, %v2969
        %v2971 = vpop.f32.mrb[0].mxu0
        %v2972 = vpop.f32.mrb[0].mxu0
        %v2973 = vadd.f32 0.0, %v2972
        %v2974 = vpop.f32.mrb[0].mxu0
        %2975 = vmatprep.mubr.bf16.mxu0 0
        %2976 = vmatmul.mubr.bf16.gmra.mrb[0].mxu0 %v2871
        %v2977 = vpop.f32.mrb[0].mxu0
        %v2978 = vadd.f32 0.0, %v2977
        %v2979 = vpop.f32.mrb[0].mxu0
        %v2980 = vpop.f32.mrb[0].mxu0
        %v2981 = vadd.f32 0.0, %v2980
        %v2982 = vpop.f32.mrb[0].mxu0
        %2983 = vmatprep.mubr.bf16.mxu0 0
        %2984 = vmatmul.mubr.bf16.gmra.mrb[0].mxu0 %v2874
        %v2985 = vpop.f32.mrb[0].mxu0
        %v2986 = vadd.f32 0.0, %v2985
        %v2987 = vpop.f32.mrb[0].mxu0
        %v2988 = vpop.f32.mrb[0].mxu0
        %v2989 = vadd.f32 0.0, %v2988
        %v2990 = vpop.f32.mrb[0].mxu0
        %2991 = vmatprep.mubr.bf16.mxu0 0
        %2992 = vmatmul.mubr.bf16.gmra.mrb[0].mxu0 %v2877
        %v2993 = vpop.f32.mrb[0].mxu0
        %v2994 = vadd.f32 0.0, %v2993
        %v2995 = vpop.f32.mrb[0].mxu0
        %v2996 = vpop.f32.mrb[0].mxu0
        %v2997 = vadd.f32 0.0, %v2996
        %v2998 = vpop.f32.mrb[0].mxu0
        %2999 = vdwg.mxu0
        %v3000 = vmul.f32 %v2938, 0.17677669
        %v3001 = vmul.f32 %v2941, 0.17677669
        %v3002 = vmul.f32 %v2946, 0.17677669
        %v3003 = vmul.f32 %v2949, 0.17677669
        %v3004 = vmul.f32 %v2954, 0.17677669
        %v3005 = vmul.f32 %v2957, 0.17677669
        %v3006 = vmul.f32 %v2962, 0.17677669
        %v3007 = vmul.f32 %v2965, 0.17677669
        %v3008 = vmul.f32 %v2970, 0.17677669
        %v3009 = vmul.f32 %v2973, 0.17677669
        %v3010 = vmul.f32 %v2978, 0.17677669
        %v3011 = vmul.f32 %v2981, 0.17677669
        %v3012 = vmul.f32 %v2986, 0.17677669
        %v3013 = vmul.f32 %v2989, 0.17677669
        %v3014 = vmul.f32 %v2994, 0.17677669
        %v3015 = vmul.f32 %v2997, 0.17677669
        %3016 = vmax.xlane.f32.xlu0 %v3000
        %v3017 = vpop.xlane.xlu0 %3016
        %3018 = vmax.xlane.f32.xlu0 %v3001
        %v3019 = vpop.xlane.xlu0 %3018
        %3020 = vmax.xlane.f32.xlu0 %v3002
        %v3021 = vpop.xlane.xlu0 %3020
        %3022 = vmax.xlane.f32.xlu0 %v3003
        %v3023 = vpop.xlane.xlu0 %3022
        %3024 = vmax.xlane.f32.xlu0 %v3004
        %v3025 = vpop.xlane.xlu0 %3024
        %3026 = vmax.xlane.f32.xlu0 %v3005
        %v3027 = vpop.xlane.xlu0 %3026
        %3028 = vmax.xlane.f32.xlu0 %v3006
        %v3029 = vpop.xlane.xlu0 %3028
        %3030 = vmax.xlane.f32.xlu0 %v3007
        %v3031 = vpop.xlane.xlu0 %3030
        %3032 = vmax.xlane.f32.xlu0 %v3008
        %v3033 = vpop.xlane.xlu0 %3032
        %3034 = vmax.xlane.f32.xlu0 %v3009
        %v3035 = vpop.xlane.xlu0 %3034
        %3036 = vmax.xlane.f32.xlu0 %v3010
        %v3037 = vpop.xlane.xlu0 %3036
        %3038 = vmax.xlane.f32.xlu0 %v3011
        %v3039 = vpop.xlane.xlu0 %3038
        %3040 = vmax.xlane.f32.xlu0 %v3012
        %v3041 = vpop.xlane.xlu0 %3040
        %3042 = vmax.xlane.f32.xlu0 %v3013
        %v3043 = vpop.xlane.xlu0 %3042
        %3044 = vmax.xlane.f32.xlu0 %v3014
        %v3045 = vpop.xlane.xlu0 %3044
        %3046 = vmax.xlane.f32.xlu0 %v3015
        %v3047 = vpop.xlane.xlu0 %3046
        %v3048 = vsub.f32 %v3000, %v3017
        %v3049 = vsub.f32 %v3001, %v3019
        %v3050 = vsub.f32 %v3002, %v3021
        %v3051 = vsub.f32 %v3003, %v3023
        %v3052 = vsub.f32 %v3004, %v3025
        %v3053 = vsub.f32 %v3005, %v3027
        %v3054 = vsub.f32 %v3006, %v3029
        %v3055 = vsub.f32 %v3007, %v3031
        %v3056 = vsub.f32 %v3008, %v3033
        %v3057 = vsub.f32 %v3009, %v3035
        %v3058 = vsub.f32 %v3010, %v3037
        %v3059 = vsub.f32 %v3011, %v3039
        %v3060 = vsub.f32 %v3012, %v3041
        %v3061 = vsub.f32 %v3013, %v3043
        %v3062 = vsub.f32 %v3014, %v3045
        %v3063 = vsub.f32 %v3015, %v3047
        %v3064 = vmul.f32 %v3048, 1.442695
        %v3065 = vpow.pop %v3064
        %v3066 = vmul.f32 %v3049, 1.442695
        %v3067 = vpow.pop %v3066
        %v3068 = vmul.f32 %v3050, 1.442695
        %v3069 = vpow.pop %v3068
        %v3070 = vmul.f32 %v3051, 1.442695
        %v3071 = vpow.pop %v3070
        %v3072 = vmul.f32 %v3052, 1.442695
        %v3073 = vpow.pop %v3072
        %v3074 = vmul.f32 %v3053, 1.442695
        %v3075 = vpow.pop %v3074
        %v3076 = vmul.f32 %v3054, 1.442695
        %v3077 = vpow.pop %v3076
        %v3078 = vmul.f32 %v3055, 1.442695
        %v3079 = vpow.pop %v3078
        %v3080 = vmul.f32 %v3056, 1.442695
        %v3081 = vpow.pop %v3080
        %v3082 = vmul.f32 %v3057, 1.442695
        %v3083 = vpow.pop %v3082
        %v3084 = vmul.f32 %v3058, 1.442695
        %v3085 = vpow.pop %v3084
        %v3086 = vmul.f32 %v3059, 1.442695
        %v3087 = vpow.pop %v3086
        %v3088 = vmul.f32 %v3060, 1.442695
        %v3089 = vpow.pop %v3088
        %v3090 = vmul.f32 %v3061, 1.442695
        %v3091 = vpow.pop %v3090
        %v3092 = vmul.f32 %v3062, 1.442695
        %v3093 = vpow.pop %v3092
        %v3094 = vmul.f32 %v3063, 1.442695
        %v3095 = vpow.pop %v3094
        %3096 = vadd.xlane.f32.xlu0 %v3065
        %v3097 = vpop.xlane.xlu0 %3096
        %3098 = vadd.xlane.f32.xlu0 %v3067
        %v3099 = vpop.xlane.xlu0 %3098
        %3100 = vadd.xlane.f32.xlu0 %v3069
        %v3101 = vpop.xlane.xlu0 %3100
        %3102 = vadd.xlane.f32.xlu0 %v3071
        %v3103 = vpop.xlane.xlu0 %3102
        %3104 = vadd.xlane.f32.xlu0 %v3073
        %v3105 = vpop.xlane.xlu0 %3104
        %3106 = vadd.xlane.f32.xlu0 %v3075
        %v3107 = vpop.xlane.xlu0 %3106
        %3108 = vadd.xlane.f32.xlu0 %v3077
        %v3109 = vpop.xlane.xlu0 %3108
        %3110 = vadd.xlane.f32.xlu0 %v3079
        %v3111 = vpop.xlane.xlu0 %3110
        %3112 = vadd.xlane.f32.xlu0 %v3081
        %v3113 = vpop.xlane.xlu0 %3112
        %3114 = vadd.xlane.f32.xlu0 %v3083
        %v3115 = vpop.xlane.xlu0 %3114
        %3116 = vadd.xlane.f32.xlu0 %v3085
        %v3117 = vpop.xlane.xlu0 %3116
        %3118 = vadd.xlane.f32.xlu0 %v3087
        %v3119 = vpop.xlane.xlu0 %3118
        %3120 = vadd.xlane.f32.xlu0 %v3089
        %v3121 = vpop.xlane.xlu0 %3120
        %3122 = vadd.xlane.f32.xlu0 %v3091
        %v3123 = vpop.xlane.xlu0 %3122
        %3124 = vadd.xlane.f32.xlu0 %v3093
        %v3125 = vpop.xlane.xlu0 %3124
        %3126 = vadd.xlane.f32.xlu0 %v3095
        %v3127 = vpop.xlane.xlu0 %3126
        %v3128 = vrcp.pop %v3097
        %v3129 = vrcp.pop %v3099
        %v3130 = vrcp.pop %v3101
        %v3131 = vrcp.pop %v3103
        %v3132 = vrcp.pop %v3105
        %v3133 = vrcp.pop %v3107
        %v3134 = vrcp.pop %v3109
        %v3135 = vrcp.pop %v3111
        %v3136 = vrcp.pop %v3113
        %v3137 = vrcp.pop %v3115
        %v3138 = vrcp.pop %v3117
        %v3139 = vrcp.pop %v3119
        %v3140 = vrcp.pop %v3121
        %v3141 = vrcp.pop %v3123
        %v3142 = vrcp.pop %v3125
        %v3143 = vrcp.pop %v3127
        %v3144 = vmul.f32 %v3065, %v3128
        %v3145 = vmul.f32 %v3067, %v3129
        %v3146 = vmul.f32 %v3069, %v3130
        %v3147 = vmul.f32 %v3071, %v3131
        %v3148 = vmul.f32 %v3073, %v3132
        %v3149 = vmul.f32 %v3075, %v3133
        %v3150 = vmul.f32 %v3077, %v3134
        %v3151 = vmul.f32 %v3079, %v3135
        %v3152 = vmul.f32 %v3081, %v3136
        %v3153 = vmul.f32 %v3083, %v3137
        %v3154 = vmul.f32 %v3085, %v3138
        %v3155 = vmul.f32 %v3087, %v3139
        %v3156 = vmul.f32 %v3089, %v3140
        %v3157 = vmul.f32 %v3091, %v3141
        %v3158 = vmul.f32 %v3093, %v3142
        %v3159 = vmul.f32 %v3095, %v3143
        %v3160 = vpack.c.bf16 %v3145, %v3144
        %v3161 = vpack.c.bf16 %v3147, %v3146
        %v3162 = vpack.c.bf16 %v3149, %v3148
        %v3163 = vpack.c.bf16 %v3151, %v3150
        %v3164 = vpack.c.bf16 %v3153, %v3152
        %v3165 = vpack.c.bf16 %v3155, %v3154
        %v3166 = vpack.c.bf16 %v3157, %v3156
        %v3167 = vpack.c.bf16 %v3159, %v3158
        %3168 = vrot.lane.b32.xlu0 %v990, 32
        %v3169 = vpop.permute.xlu0 %3168
        %3170 = vrot.lane.b32.xlu0 %v992, 32
        %v3171 = vpop.permute.xlu0 %3170
        %3172 = vrot.lane.b32.xlu0 %v994, 32
        %v3173 = vpop.permute.xlu0 %3172
        %3174 = vrot.lane.b32.xlu0 %v996, 32
        %v3175 = vpop.permute.xlu0 %3174
        %3176 = vrot.lane.b32.xlu0 %v998, 32
        %v3177 = vpop.permute.xlu0 %3176
        %3178 = vrot.lane.b32.xlu0 %v1000, 32
        %v3179 = vpop.permute.xlu0 %3178
        %3180 = vrot.lane.b32.xlu0 %v1002, 32
        %v3181 = vpop.permute.xlu0 %3180
        %3182 = vrot.lane.b32.xlu0 %v1004, 32
        %v3183 = vpop.permute.xlu0 %3182
        %3192 = vmatprep.subr.bf16.mxu0 0
        %3193 = vmatpush1.bf16.msra.mxu0 %v3169
        %3194 = vmatprep.subr.bf16.mxu0 0
        %3195 = vmatpush1.bf16.msra.mxu0 %v3171
        %3196 = vmatprep.subr.bf16.mxu0 0
        %3197 = vmatpush1.bf16.msra.mxu0 %v3173
        %3198 = vmatprep.subr.bf16.mxu0 0
        %3199 = vmatpush1.bf16.msra.mxu0 %v3175
        %3200 = vmatprep.subr.bf16.mxu0 0
        %3201 = vmatpush1.bf16.msra.mxu0 %v3177
        %3202 = vmatprep.subr.bf16.mxu0 0
        %3203 = vmatpush1.bf16.msra.mxu0 %v3179
        %3204 = vmatprep.subr.bf16.mxu0 0
        %3205 = vmatpush1.bf16.msra.mxu0 %v3181
        %3206 = vmatprep.subr.bf16.mxu0 0
        %3207 = vmatpush1.bf16.msra.mxu0 %v3183
        %3208 = vmatprep.subr.bf16.mxu0 0
        %3209 = vmatpush1.bf16.msra.mxu0 0
        %3210 = vmatprep.subr.bf16.mxu0 0
        %3211 = vmatpush1.bf16.msra.mxu0 0
        %3212 = vmatprep.subr.bf16.mxu0 0
        %3213 = vmatpush1.bf16.msra.mxu0 0
        %3214 = vmatprep.subr.bf16.mxu0 0
        %3215 = vmatpush1.bf16.msra.mxu0 0
        %3216 = vmatprep.subr.bf16.mxu0 0
        %3217 = vmatpush1.bf16.msra.mxu0 0
        %3218 = vmatprep.subr.bf16.mxu0 0
        %3219 = vmatpush1.bf16.msra.mxu0 0
        %3220 = vmatprep.subr.bf16.mxu0 0
        %3221 = vmatpush1.bf16.msra.mxu0 0
        %3222 = vmatprep.subr.bf16.mxu0 0
        %3223 = vmatpush1.bf16.msra.mxu0 0
        %3224 = vmatprep.mubr.bf16.mxu0 0
        %3225 = vmatmul.mubr.bf16.gmra.mrb[0].mxu0 %v3160
        %v3226 = vpop.f32.mrb[0].mxu0
        %v3227 = vadd.f32 0.0, %v3226
        %v3228 = vpop.f32.mrb[0].mxu0
        %v3229 = vpop.f32.mrb[0].mxu0
        %v3230 = vadd.f32 0.0, %v3229
        %v3231 = vpop.f32.mrb[0].mxu0
        %3232 = vmatprep.mubr.bf16.mxu0 0
        %3233 = vmatmul.mubr.bf16.gmra.mrb[0].mxu0 %v3161
        %v3234 = vpop.f32.mrb[0].mxu0
        %v3235 = vadd.f32 0.0, %v3234
        %v3236 = vpop.f32.mrb[0].mxu0
        %v3237 = vpop.f32.mrb[0].mxu0
        %v3238 = vadd.f32 0.0, %v3237
        %v3239 = vpop.f32.mrb[0].mxu0
        %3240 = vmatprep.mubr.bf16.mxu0 0
        %3241 = vmatmul.mubr.bf16.gmra.mrb[0].mxu0 %v3162
        %v3242 = vpop.f32.mrb[0].mxu0
        %v3243 = vadd.f32 0.0, %v3242
        %v3244 = vpop.f32.mrb[0].mxu0
        %v3245 = vpop.f32.mrb[0].mxu0
        %v3246 = vadd.f32 0.0, %v3245
        %v3247 = vpop.f32.mrb[0].mxu0
        %3248 = vmatprep.mubr.bf16.mxu0 0
        %3249 = vmatmul.mubr.bf16.gmra.mrb[0].mxu0 %v3163
        %v3250 = vpop.f32.mrb[0].mxu0
        %v3251 = vadd.f32 0.0, %v3250
        %v3252 = vpop.f32.mrb[0].mxu0
        %v3253 = vpop.f32.mrb[0].mxu0
        %v3254 = vadd.f32 0.0, %v3253
        %v3255 = vpop.f32.mrb[0].mxu0
        %3256 = vmatprep.mubr.bf16.mxu0 0
        %3257 = vmatmul.mubr.bf16.gmra.mrb[0].mxu0 %v3164
        %v3258 = vpop.f32.mrb[0].mxu0
        %v3259 = vadd.f32 0.0, %v3258
        %v3260 = vpop.f32.mrb[0].mxu0
        %v3261 = vpop.f32.mrb[0].mxu0
        %v3262 = vadd.f32 0.0, %v3261
        %v3263 = vpop.f32.mrb[0].mxu0
        %3264 = vmatprep.mubr.bf16.mxu0 0
        %3265 = vmatmul.mubr.bf16.gmra.mrb[0].mxu0 %v3165
        %v3266 = vpop.f32.mrb[0].mxu0
        %v3267 = vadd.f32 0.0, %v3266
        %v3268 = vpop.f32.mrb[0].mxu0
        %v3269 = vpop.f32.mrb[0].mxu0
        %v3270 = vadd.f32 0.0, %v3269
        %v3271 = vpop.f32.mrb[0].mxu0
        %3272 = vmatprep.mubr.bf16.mxu0 0
        %3273 = vmatmul.mubr.bf16.gmra.mrb[0].mxu0 %v3166
        %v3274 = vpop.f32.mrb[0].mxu0
        %v3275 = vadd.f32 0.0, %v3274
        %v3276 = vpop.f32.mrb[0].mxu0
        %v3277 = vpop.f32.mrb[0].mxu0
        %v3278 = vadd.f32 0.0, %v3277
        %v3279 = vpop.f32.mrb[0].mxu0
        %3280 = vmatprep.mubr.bf16.mxu0 0
        %3281 = vmatmul.mubr.bf16.gmra.mrb[0].mxu0 %v3167
        %v3282 = vpop.f32.mrb[0].mxu0
        %v3283 = vadd.f32 0.0, %v3282
        %v3284 = vpop.f32.mrb[0].mxu0
        %v3285 = vpop.f32.mrb[0].mxu0
        %v3286 = vadd.f32 0.0, %v3285
        %v3287 = vpop.f32.mrb[0].mxu0
        %3288 = vdwg.mxu0
        %v3289 = vpack.c.bf16 %v3230, %v3227
        %v3290 = vpack.c.bf16 %v3238, %v3235
        %v3291 = vpack.c.bf16 %v3246, %v3243
        %v3292 = vpack.c.bf16 %v3254, %v3251
        %v3293 = vpack.c.bf16 %v3262, %v3259
        %v3294 = vpack.c.bf16 %v3270, %v3267
        %v3295 = vpack.c.bf16 %v3278, %v3275
        %v3296 = vpack.c.bf16 %v3286, %v3283
        %v3297 = vld [vmem:[#allocation11 + $0x30] sm:$0xf]
        %v3298 = vld [vmem:[#allocation11 + $0x34] sm:$0xf]
        %v3299 = vld [vmem:[#allocation11 + $0x38] sm:$0xf]
        %v3300 = vld [vmem:[#allocation11 + $0x3c] sm:$0xf]
        %v3305 = vunpack.c.l.b16 %v3297
        %v3306 = vunpack.c.l.b16 %v3298
        %v3307 = vunpack.c.l.b16 %v3299
        %v3308 = vunpack.c.l.b16 %v3300
        %v3309 = vpack.c.b16 %v3306, %v3305
        %v3310 = vpack.c.b16 %v3308, %v3307
        %v3314 = vsel %vm1005, %v3289, 0
        %v3317 = vsel %vm1005, %v3290, 0
        %v3320 = vsel %vm1005, %v3291, 0
        %v3323 = vsel %vm1005, %v3292, 0
        %v3326 = vsel %vm1005, %v3293, 0
        %v3329 = vsel %vm1005, %v3294, 0
        %v3332 = vsel %vm1005, %v3295, 0
        %v3335 = vsel %vm1005, %v3296, 0
        %3337 = vmatprep.subr.bf16.mxu0 0
        %3338 = vmatpush1.bf16.msra.mxu0 %v3309
        %3339 = vmatprep.subr.bf16.mxu0 0
        %3340 = vmatpush1.bf16.msra.mxu0 %v3310
        %3341 = vmatprep.subr.bf16.mxu0 0
        %3342 = vmatpush1.bf16.msra.mxu0 0
        %3343 = vmatprep.subr.bf16.mxu0 0
        %3344 = vmatpush1.bf16.msra.mxu0 0
        %3345 = vmatprep.subr.bf16.mxu0 0
        %3346 = vmatpush1.bf16.msra.mxu0 0
        %3347 = vmatprep.subr.bf16.mxu0 0
        %3348 = vmatpush1.bf16.msra.mxu0 0
        %3349 = vmatprep.subr.bf16.mxu0 0
        %3350 = vmatpush1.bf16.msra.mxu0 0
        %3351 = vmatprep.subr.bf16.mxu0 0
        %3352 = vmatpush1.bf16.msra.mxu0 0
        %3353 = vmatprep.subr.bf16.mxu0 0
        %3354 = vmatpush1.bf16.msra.mxu0 0
        %3355 = vmatprep.subr.bf16.mxu0 0
        %3356 = vmatpush1.bf16.msra.mxu0 0
        %3357 = vmatprep.subr.bf16.mxu0 0
        %3358 = vmatpush1.bf16.msra.mxu0 0
        %3359 = vmatprep.subr.bf16.mxu0 0
        %3360 = vmatpush1.bf16.msra.mxu0 0
        %3361 = vmatprep.subr.bf16.mxu0 0
        %3362 = vmatpush1.bf16.msra.mxu0 0
        %3363 = vmatprep.subr.bf16.mxu0 0
        %3364 = vmatpush1.bf16.msra.mxu0 0
        %3365 = vmatprep.subr.bf16.mxu0 0
        %3366 = vmatpush1.bf16.msra.mxu0 0
        %3367 = vmatprep.subr.bf16.mxu0 0
        %3368 = vmatpush1.bf16.msra.mxu0 0
        %3369 = vmatprep.mubr.bf16.mxu0 0
        %3370 = vmatmul.mubr.bf16.gmra.mrb[0].mxu0 %v3314
        %v3371 = vpop.f32.mrb[0].mxu0
        %v3372 = vadd.f32 0.0, %v3371
        %v3373 = vpop.f32.mrb[0].mxu0
        %v3374 = vpop.f32.mrb[0].mxu0
        %v3375 = vadd.f32 0.0, %v3374
        %v3376 = vpop.f32.mrb[0].mxu0
        %3377 = vmatprep.mubr.bf16.mxu0 0
        %3378 = vmatmul.mubr.bf16.gmra.mrb[0].mxu0 %v3317
        %v3379 = vpop.f32.mrb[0].mxu0
        %v3380 = vadd.f32 0.0, %v3379
        %v3381 = vpop.f32.mrb[0].mxu0
        %v3382 = vpop.f32.mrb[0].mxu0
        %v3383 = vadd.f32 0.0, %v3382
        %v3384 = vpop.f32.mrb[0].mxu0
        %3385 = vmatprep.mubr.bf16.mxu0 0
        %3386 = vmatmul.mubr.bf16.gmra.mrb[0].mxu0 %v3320
        %v3387 = vpop.f32.mrb[0].mxu0
        %v3388 = vadd.f32 0.0, %v3387
        %v3389 = vpop.f32.mrb[0].mxu0
        %v3390 = vpop.f32.mrb[0].mxu0
        %v3391 = vadd.f32 0.0, %v3390
        %v3392 = vpop.f32.mrb[0].mxu0
        %3393 = vmatprep.mubr.bf16.mxu0 0
        %3394 = vmatmul.mubr.bf16.gmra.mrb[0].mxu0 %v3323
        %v3395 = vpop.f32.mrb[0].mxu0
        %v3396 = vadd.f32 0.0, %v3395
        %v3397 = vpop.f32.mrb[0].mxu0
        %v3398 = vpop.f32.mrb[0].mxu0
        %v3399 = vadd.f32 0.0, %v3398
        %v3400 = vpop.f32.mrb[0].mxu0
        %3401 = vmatprep.mubr.bf16.mxu0 0
        %3402 = vmatmul.mubr.bf16.gmra.mrb[0].mxu0 %v3326
        %v3403 = vpop.f32.mrb[0].mxu0
        %v3404 = vadd.f32 0.0, %v3403
        %v3405 = vpop.f32.mrb[0].mxu0
        %v3406 = vpop.f32.mrb[0].mxu0
        %v3407 = vadd.f32 0.0, %v3406
        %v3408 = vpop.f32.mrb[0].mxu0
        %3409 = vmatprep.mubr.bf16.mxu0 0
        %3410 = vmatmul.mubr.bf16.gmra.mrb[0].mxu0 %v3329
        %v3411 = vpop.f32.mrb[0].mxu0
        %v3412 = vadd.f32 0.0, %v3411
        %v3413 = vpop.f32.mrb[0].mxu0
        %v3414 = vpop.f32.mrb[0].mxu0
        %v3415 = vadd.f32 0.0, %v3414
        %v3416 = vpop.f32.mrb[0].mxu0
        %3417 = vmatprep.mubr.bf16.mxu0 0
        %3418 = vmatmul.mubr.bf16.gmra.mrb[0].mxu0 %v3332
        %v3419 = vpop.f32.mrb[0].mxu0
        %v3420 = vadd.f32 0.0, %v3419
        %v3421 = vpop.f32.mrb[0].mxu0
        %v3422 = vpop.f32.mrb[0].mxu0
        %v3423 = vadd.f32 0.0, %v3422
        %v3424 = vpop.f32.mrb[0].mxu0
        %3425 = vmatprep.mubr.bf16.mxu0 0
        %3426 = vmatmul.mubr.bf16.gmra.mrb[0].mxu0 %v3335
        %v3427 = vpop.f32.mrb[0].mxu0
        %v3428 = vadd.f32 0.0, %v3427
        %v3429 = vpop.f32.mrb[0].mxu0
        %v3430 = vpop.f32.mrb[0].mxu0
        %v3431 = vadd.f32 0.0, %v3430
        %v3432 = vpop.f32.mrb[0].mxu0
        %3433 = vdwg.mxu0
        %v3434 = vadd.f32 %v2807, %v3372
        %v3435 = vadd.f32 %v2808, %v3375
        %v3436 = vadd.f32 %v2809, %v3380
        %v3437 = vadd.f32 %v2810, %v3383
        %v3438 = vadd.f32 %v2811, %v3388
        %v3439 = vadd.f32 %v2812, %v3391
        %v3440 = vadd.f32 %v2813, %v3396
        %v3441 = vadd.f32 %v2814, %v3399
        %v3442 = vadd.f32 %v2815, %v3404
        %v3443 = vadd.f32 %v2816, %v3407
        %v3444 = vadd.f32 %v2817, %v3412
        %v3445 = vadd.f32 %v2818, %v3415
        %v3446 = vadd.f32 %v2819, %v3420
        %v3447 = vadd.f32 %v2820, %v3423
        %v3448 = vadd.f32 %v2821, %v3428
        %v3449 = vadd.f32 %v2822, %v3431
        %v3450 = vld [vmem:[%s7] sm:$0x1]
        %v3452 = vlaneseq
        %v3453 = vshrl.u32 %v3452, 7
        %v3454 = vsub.s32 0, %v3453
        %v3455 = vrot.slane %v3450, %v3454
        %v3457 = vadd.f32 %v3434, %v3455
        %v3458 = vadd.f32 %v3435, %v3455
        %v3459 = vadd.f32 %v3436, %v3455
        %v3460 = vadd.f32 %v3437, %v3455
        %v3461 = vadd.f32 %v3438, %v3455
        %v3462 = vadd.f32 %v3439, %v3455
        %v3463 = vadd.f32 %v3440, %v3455
        %v3464 = vadd.f32 %v3441, %v3455
        %v3465 = vadd.f32 %v3442, %v3455
        %v3466 = vadd.f32 %v3443, %v3455
        %v3467 = vadd.f32 %v3444, %v3455
        %v3468 = vadd.f32 %v3445, %v3455
        %v3469 = vadd.f32 %v3446, %v3455
        %v3470 = vadd.f32 %v3447, %v3455
        %v3471 = vadd.f32 %v3448, %v3455
        %v3472 = vadd.f32 %v3449, %v3455
        %3473 = vst [vmem:[%s424] sm:$0xff] %v3457
        %3474 = vst [vmem:[%s424 + $0x8] sm:$0xff] %v3458
        %3475 = vst [vmem:[%s424 + $0x10] sm:$0xff] %v3459
        %3476 = vst [vmem:[%s424 + $0x18] sm:$0xff] %v3460
        %3477 = vst [vmem:[%s424 + $0x20] sm:$0xff] %v3461
        %3478 = vst [vmem:[%s424 + $0x28] sm:$0xff] %v3462
        %3479 = vst [vmem:[%s424 + $0x30] sm:$0xff] %v3463
        %3480 = vst [vmem:[%s424 + $0x38] sm:$0xff] %v3464
        %3481 = vst [vmem:[%s424 + $0x40] sm:$0xff] %v3465
        %3482 = vst [vmem:[%s424 + $0x48] sm:$0xff] %v3466
        %3483 = vst [vmem:[%s424 + $0x50] sm:$0xff] %v3467
        %3484 = vst [vmem:[%s424 + $0x58] sm:$0xff] %v3468
        %3485 = vst [vmem:[%s424 + $0x60] sm:$0xff] %v3469
        %3486 = vst [vmem:[%s424 + $0x68] sm:$0xff] %v3470
        %3487 = vst [vmem:[%s424 + $0x70] sm:$0xff] %v3471
        %3488 = vst [vmem:[%s424 + $0x78] sm:$0xff] %v3472
        %s3489 = sand.u32 %s231, 1
        %s3490 = scalar_lea.sflag [#allocation5], %s3489
        %s3491 = sand.u32 %s231, 1
        %s3492 = smul.addr %s3491, 128
        %s3493 = scalar_lea.vmem [#allocation12], %s3492
        // Predicated region
        $region77: #{tpu_custom_call.1} parent=51 // pred_check
          %p3494 = pneg %p241
        $region78: #{tpu_custom_call.1} parent=51 // pred_check_branch
          %3496 = sbr.rel (%p3494) target = $region80
        $region79: #{tpu_custom_call.1} parent=51 // pred_region
          %s3497 = smul.u32 16, %s34
          %s3499 = ssub.s32 2048, 2048
          %3500 = vsyncadd %s3490, %s3499
          %s3501 = smul.addr %s33, 16
          %s3502 = sadd.s32 %s3497, %s3501
          %s3503 = smul.addr %s3502, 128
          %s3504 = scalar_lea.hbm %s8, %s3503
          %s3505 = sshll.u32 %s3493, 4
          %s3506 = int_to_ptr.vmem [resolvable:$true] %s3505
          %3511 = dma.vmem_to_hbm [thread:$0]  %s3506, 2048, %s3504, %s3490, 128, 128, 8
        $region80: #{tpu_custom_call.1} parent=51 // pred_fallthru
          _
      $region52: #{tpu_custom_call.1} parent=5 // pred_fallthru
        _
      %p3512 = scmp.le.s32.totalorder 2, %s24
      // Predicated region
      $region81: #{tpu_custom_call.1} parent=5 // pred_check
        %p3513 = pneg %p3512
      $region82: #{tpu_custom_call.1} parent=5 // pred_check_branch
        %3515 = sbr.rel (%p3513) target = $region84
      $region83: #{tpu_custom_call.1} parent=5 // pred_region
        %s3516 = ssub.s32 %s24, 2
        // Predicated region
        $region85: #{tpu_custom_call.1} parent=83 // pred_check
          %p3517 = pneg %p247
        $region86: #{tpu_custom_call.1} parent=83 // pred_check_branch
          %3519 = sbr.rel (%p3517) target = $region88
        $region87: #{tpu_custom_call.1} parent=83 // pred_region
          %s3520 = sand.u32 %s232, 1
          %s3521 = scalar_lea.sflag [#allocation5], %s3520
          %s3522 = sand.u32 %s232, 1
          %s3523 = smul.addr %s3522, 128
          %s3524 = scalar_lea.vmem [#allocation12], %s3523
          %3525 = dma.done %s3521, 2048
        $region88: #{tpu_custom_call.1} parent=83 // pred_fallthru
          _
      $region84: #{tpu_custom_call.1} parent=5 // pred_fallthru
        _
    $region6: #{tpu_custom_call.1} parent=1 // loop_footer
      %s28 = sadd.s32 1, %s24
    $region7: #{tpu_custom_call.1} parent=1 // loop_footer_branch
      %23 = sbr.rel target = $region3
    $region8: #{tpu_custom_call.1} parent=1 // loop_exit
      _
    %3526 = vsyncpa [#allocation4], 1
    %s3527 = scalar_lea.sflag [#allocation4], 1
    %3528 = vsyncpa %s3527, 1
    %3529 = vsyncpa [#allocation7], 1
    %s3530 = scalar_lea.sflag [#allocation7], 1
    %3531 = vsyncpa %s3530, 1
    %3532 = vsyncpa [#allocation10], 1
    %3533 = vsyncpa [#allocation5], 1
    %s3534 = scalar_lea.sflag [#allocation5], 1
    %3535 = vsyncpa %s3534, 1

</llo_original>
